<compile_context>
chip_gen: v5e
topology: v5e:2x2
jax: 0.10.0
libtpu: 0.0.40
codegen_flags: <defaults>
</compile_context>

<pallas_src>
import functools

import jax
import jax.numpy as jnp
from jax.experimental import pallas as pl
from jax.experimental.pallas import tpu as pltpu

LATENT = 20
NUM_CLASSES = 10
IMG = 28 * 28          # 784
HID = 256
HEAD_PAD = 128         # mu|logvar (40 lanes) padded to a lane-dense 128


def _cvae_kernel(x_ref, oh_ref, eps_ref,
                 w1x_ref, wc_ref, b1_ref,
                 wh_ref, bh_ref,
                 w3z_ref, b3_ref,
                 w4_ref, b4_ref,
                 recon_ref, stats_ref):
    # x arrives as f32 from HBM; cast to bf16 in-register (no wrapper pass).
    x = x_ref[...].astype(jnp.bfloat16)   # (TB, 784) bf16
    oh = oh_ref[...]                       # (TB, 10)  bf16
    eps = eps_ref[...]                     # (TB, 20)  f32

    # Fused one-hot contribution for both encoder and decoder: (TB, 512).
    oh_proj = jnp.dot(oh, wc_ref[...], preferred_element_type=jnp.float32)
    oh1 = oh_proj[:, :HID]                 # encoder part (lane-aligned split)
    oh3 = oh_proj[:, HID:]                 # decoder part

    # encode: h1 = relu([x | onehot] @ W1 + b1)   (split-weight concat trick)
    h1 = jnp.dot(x, w1x_ref[...], preferred_element_type=jnp.float32)
    h1 = jnp.maximum(h1 + oh1 + b1_ref[...], 0.0)                  # (TB, 256) f32

    # fused mu/logvar heads: one lane-dense (256, 128) matmul
    stats = jnp.dot(h1.astype(jnp.bfloat16), wh_ref[...],
                    preferred_element_type=jnp.float32) + bh_ref[...]  # (TB, 128)
    mu = stats[:, :LATENT]                                          # (TB, 20)
    logvar = stats[:, LATENT:2 * LATENT]                            # (TB, 20)

    # reparameterize: z = mu + eps * exp(0.5 * logvar)
    z = mu + eps * jnp.exp(0.5 * logvar)                            # (TB, 20) f32

    # decode: h3 = relu([z | onehot] @ W3 + b3)
    h3 = jnp.dot(z.astype(jnp.bfloat16), w3z_ref[...],
                 preferred_element_type=jnp.float32)
    h3 = jnp.maximum(h3 + oh3 + b3_ref[...], 0.0)                   # (TB, 256) f32

    logits = jnp.dot(h3.astype(jnp.bfloat16), w4_ref[...],
                     preferred_element_type=jnp.float32) + b4_ref[...]  # (TB, 784)

    # sigmoid via EUP exp + EUP approx reciprocal; clamp so recon stays in
    # [0, 1] (BCE-safe), then store as bf16 (halves recon HBM traffic).
    recon = pl.reciprocal(1.0 + jnp.exp(-logits), approx=True)
    recon = jnp.clip(recon, 0.0, 1.0)
    recon_ref[...] = recon.astype(recon_ref.dtype)
    stats_ref[...] = stats


def init_params(key):
    """Deterministic params matching nn.Linear init (U(-1/sqrt(fan_in), ...)).

    Weights are stored [in_features, out_features] in bf16; biases stay f32.
    fc21/fc22 are packed into a single lane-dense (256, 128) head weight and
    the two one-hot sub-weights (fc1 / fc3) are packed into one (10, 512).
    """
    def linear(k, fan_in, fan_out):
        kw, kb = jax.random.split(k)
        bound = 1.0 / jnp.sqrt(fan_in)
        w = jax.random.uniform(kw, (fan_in, fan_out), jnp.float32, -bound, bound)
        b = jax.random.uniform(kb, (1, fan_out), jnp.float32, -bound, bound)
        return w, b

    k1, k21, k22, k3, k4 = jax.random.split(key, 5)
    w1, b1 = linear(k1, IMG + NUM_CLASSES, HID)        # fc1 : 794 -> 256
    w21, b21 = linear(k21, HID, LATENT)                # fc21: 256 -> 20
    w22, b22 = linear(k22, HID, LATENT)                # fc22: 256 -> 20
    w3, b3 = linear(k3, LATENT + NUM_CLASSES, HID)     # fc3 : 30  -> 256
    w4, b4 = linear(k4, HID, IMG)                      # fc4 : 256 -> 784

    w_heads = jnp.zeros((HID, HEAD_PAD), jnp.float32)
    w_heads = w_heads.at[:, :LATENT].set(w21).at[:, LATENT:2 * LATENT].set(w22)
    b_heads = jnp.zeros((1, HEAD_PAD), jnp.float32)
    b_heads = b_heads.at[:, :LATENT].set(b21).at[:, LATENT:2 * LATENT].set(b22)

    # Fused one-hot weights: lanes 0:256 -> encoder (fc1), 256:512 -> decoder (fc3).
    wc = jnp.concatenate([w1[IMG:], w3[LATENT:]], axis=1)   # (10, 512)

    bf16 = jnp.bfloat16
    return {
        "w1x": w1[:IMG].astype(bf16), "wc": wc.astype(bf16), "b1": b1,
        "w_heads": w_heads.astype(bf16), "b_heads": b_heads,
        "w3z": w3[:LATENT].astype(bf16), "b3": b3,
        "w4": w4.astype(bf16), "b4": b4,
    }


def _pick_tile(batch):
    """Batch row tile: multiple of 16 (bf16 sublane), capped at 512, and
    aiming for >= 4 grid tiles so v7x's two TensorCores each keep >= 2 tiles
    (megacore split + pipelining)."""
    if batch <= 128:
        return max(16, -(-batch // 16) * 16)          # single tile covering batch
    return min(512, max(128, (batch // 4) // 16 * 16))


@functools.partial(jax.jit, static_argnames=("tile",))
def cvae_forward(x, labels, eps, params, *, tile=None):
    """Returns (recon, mu, logvar) exactly like ConditionalVAE.forward."""
    B = x.shape[0]
    TB = _pick_tile(B) if tile is None else tile

    x_flat = x.reshape(B, IMG)                                        # f32, cast in-kernel
    onehot = jax.nn.one_hot(labels, NUM_CLASSES, dtype=jnp.bfloat16)  # eye[labels]
    eps = eps.astype(jnp.float32)

    # Pad the batch up to a multiple of the row tile only if necessary
    # (padded rows are sliced off below; the default tile choice usually
    # divides the batch so this path is normally skipped).
    n_tiles = -(-B // TB)
    B_pad = n_tiles * TB
    if B_pad != B:
        pad = B_pad - B
        x_flat = jnp.pad(x_flat, ((0, pad), (0, 0)))
        onehot = jnp.pad(onehot, ((0, pad), (0, 0)))
        eps = jnp.pad(eps, ((0, pad), (0, 0)))

    row = lambda i: (i, 0)     # pipelined per-batch-tile
    keep = lambda i: (0, 0)    # weights/biases resident across the grid

    in_specs = [
        pl.BlockSpec((TB, IMG), row),              # x (f32)
        pl.BlockSpec((TB, NUM_CLASSES), row),      # onehot (bf16)
        pl.BlockSpec((TB, LATENT), row),           # eps (f32)
        pl.BlockSpec((IMG, HID), keep),            # w1x
        pl.BlockSpec((NUM_CLASSES, 2 * HID), keep),# wc (fused fc1/fc3 one-hot)
        pl.BlockSpec((1, HID), keep),              # b1
        pl.BlockSpec((HID, HEAD_PAD), keep),       # w_heads
        pl.BlockSpec((1, HEAD_PAD), keep),         # b_heads
        pl.BlockSpec((LATENT, HID), keep),         # w3z
        pl.BlockSpec((1, HID), keep),              # b3
        pl.BlockSpec((HID, IMG), keep),            # w4
        pl.BlockSpec((1, IMG), keep),              # b4
    ]
    out_specs = (
        pl.BlockSpec((TB, IMG), row),              # recon (bf16)
        pl.BlockSpec((TB, HEAD_PAD), row),         # stats = [mu | logvar | pad] (f32)
    )
    out_shape = (
        jax.ShapeDtypeStruct((B_pad, IMG), jnp.bfloat16),
        jax.ShapeDtypeStruct((B_pad, HEAD_PAD), jnp.float32),
    )

    # Advisory cost hint so XLA schedules the custom call well in larger graphs.
    flops = 2 * B_pad * (IMG * HID + NUM_CLASSES * 2 * HID + HID * HEAD_PAD
                         + LATENT * HID + HID * IMG)
    transcendentals = B_pad * (LATENT + IMG)
    weight_bytes = 2 * (IMG * HID + NUM_CLASSES * 2 * HID + HID * HEAD_PAD
                        + LATENT * HID + HID * IMG) \
                   + 4 * (HID + HEAD_PAD + HID + IMG)
    io_bytes = B_pad * (4 * IMG + 2 * NUM_CLASSES + 4 * LATENT
                        + 2 * IMG + 4 * HEAD_PAD)
    cost = pl.CostEstimate(flops=flops, transcendentals=transcendentals,
                           bytes_accessed=weight_bytes + io_bytes)

    recon_pad, stats_pad = pl.pallas_call(
        _cvae_kernel,
        out_shape=out_shape,
        grid_spec=pltpu.PrefetchScalarGridSpec(
            num_scalar_prefetch=0,
            grid=(n_tiles,),
            in_specs=in_specs,
            out_specs=out_specs,
        ),
        compiler_params=pltpu.CompilerParams(
            dimension_semantics=("parallel",),   # batch tiles independent
        ),
        cost_estimate=cost,
    )(x_flat, onehot, eps,
      params["w1x"], params["wc"], params["b1"],
      params["w_heads"], params["b_heads"],
      params["w3z"], params["b3"],
      params["w4"], params["b4"])

    recon = recon_pad if B_pad == B else recon_pad[:B]
    mu = stats_pad[:B, :LATENT]
    logvar = stats_pad[:B, LATENT:2 * LATENT]
    return recon, mu, logvar


def _reference(x, labels, eps, params):
    """Pure-JAX reference with the same bf16-weight / f32-accumulate math."""
    B = x.shape[0]
    f32 = jnp.float32
    xf = x.reshape(B, IMG).astype(jnp.bfloat16)
    oh = jax.nn.one_hot(labels, NUM_CLASSES, dtype=jnp.bfloat16)
    eps = eps.astype(f32)

    oh_proj = jnp.dot(oh, params["wc"], preferred_element_type=f32)
    h1 = jnp.maximum(
        jnp.dot(xf, params["w1x"], preferred_element_type=f32)
        + oh_proj[:, :HID] + params["b1"], 0.0)
    stats = jnp.dot(h1.astype(jnp.bfloat16), params["w_heads"],
                    preferred_element_type=f32) + params["b_heads"]
    mu = stats[:, :LATENT]
    logvar = stats[:, LATENT:2 * LATENT]
    z = mu + eps * jnp.exp(0.5 * logvar)
    h3 = jnp.maximum(
        jnp.dot(z.astype(jnp.bfloat16), params["w3z"], preferred_element_type=f32)
        + oh_proj[:, HID:] + params["b3"], 0.0)
    logits = jnp.dot(h3.astype(jnp.bfloat16), params["w4"],
                     preferred_element_type=f32) + params["b4"]
    return jax.nn.sigmoid(logits), mu, logvar


if __name__ == "__main__":
    key = jax.random.PRNGKey(0)
    k_x, k_lab, k_eps, k_par = jax.random.split(key, 4)

    # Batch sized to exercise the pipelined batch grid (2 tiles of 128 rows,
    # no padding needed).
    B = 256
    x = jax.random.uniform(k_x, (B, 1, 28, 28), dtype=jnp.float32)   # NCHW images
    labels = jax.random.randint(k_lab, (B,), 0, NUM_CLASSES)
    # torch.randn_like(std) noise drawn here and passed into the kernel.
    eps = jax.random.normal(k_eps, (B, LATENT), dtype=jnp.float32)
    params = init_params(k_par)

    recon, mu, logvar = cvae_forward(x, labels, eps, params)
    jax.block_until_ready((recon, mu, logvar))

    r_ref, m_ref, lv_ref = _reference(x, labels, eps, params)
    assert recon.shape == (B, IMG) and mu.shape == (B, LATENT) and logvar.shape == (B, LATENT)
    # bf16 weights + bf16 recon + approx-reciprocal sigmoid => compare against
    # the matched bf16 reference with modest tolerances.
    assert jnp.allclose(recon.astype(jnp.float32), r_ref, atol=2e-2, rtol=2e-2)
    assert jnp.allclose(mu, m_ref, atol=2e-2, rtol=2e-2)
    assert jnp.allclose(logvar, lv_ref, atol=2e-2, rtol=2e-2)
    # recon must stay a valid probability (BCE-safe despite approx reciprocal).
    assert float(jnp.min(recon.astype(jnp.float32))) >= 0.0
    assert float(jnp.max(recon.astype(jnp.float32))) <= 1.0

    print("KERNEL_OK")
</pallas_src>

<mosaic_0001>
module attributes {stable_mosaic.version = 11 : i64} {
  func.func @_cvae_kernel(%arg0: i32, %arg1: memref<128x784xf32, #tpu.memory_space<vmem>>, %arg2: memref<128x10xbf16, #tpu.memory_space<vmem>>, %arg3: memref<128x20xf32, #tpu.memory_space<vmem>>, %arg4: memref<784x256xbf16, #tpu.memory_space<vmem>>, %arg5: memref<10x512xbf16, #tpu.memory_space<vmem>>, %arg6: memref<1x256xf32, #tpu.memory_space<vmem>>, %arg7: memref<256x128xbf16, #tpu.memory_space<vmem>>, %arg8: memref<1x128xf32, #tpu.memory_space<vmem>>, %arg9: memref<20x256xbf16, #tpu.memory_space<vmem>>, %arg10: memref<1x256xf32, #tpu.memory_space<vmem>>, %arg11: memref<256x784xbf16, #tpu.memory_space<vmem>>, %arg12: memref<1x784xf32, #tpu.memory_space<vmem>>, %arg13: memref<128x784xbf16, #tpu.memory_space<vmem>>, %arg14: memref<128x128xf32, #tpu.memory_space<vmem>>) attributes {dimension_semantics = [#tpu.dimension_semantics<parallel>], iteration_bounds = array<i64: 2>, scalar_prefetch = 0 : i64, scratch_operands = 0 : i64, tpu.core_type = #tpu.core_type<tc>, window_params = [{transform_indices = @transform_0, window_bounds = array<i64: 128, 784>}, {transform_indices = @transform_1, window_bounds = array<i64: 128, 10>}, {transform_indices = @transform_2, window_bounds = array<i64: 128, 20>}, {pipeline_mode = #tpu.pipeline_mode<synchronous>, transform_indices = @transform_3, window_bounds = array<i64: 784, 256>}, {pipeline_mode = #tpu.pipeline_mode<synchronous>, transform_indices = @transform_4, window_bounds = array<i64: 10, 512>}, {pipeline_mode = #tpu.pipeline_mode<synchronous>, transform_indices = @transform_5, window_bounds = array<i64: 1, 256>}, {pipeline_mode = #tpu.pipeline_mode<synchronous>, transform_indices = @transform_6, window_bounds = array<i64: 256, 128>}, {pipeline_mode = #tpu.pipeline_mode<synchronous>, transform_indices = @transform_7, window_bounds = array<i64: 1, 128>}, {pipeline_mode = #tpu.pipeline_mode<synchronous>, transform_indices = @transform_8, window_bounds = array<i64: 20, 256>}, {pipeline_mode = #tpu.pipeline_mode<synchronous>, transform_indices = @transform_9, window_bounds = array<i64: 1, 256>}, {pipeline_mode = #tpu.pipeline_mode<synchronous>, transform_indices = @transform_10, window_bounds = array<i64: 256, 784>}, {pipeline_mode = #tpu.pipeline_mode<synchronous>, transform_indices = @transform_11, window_bounds = array<i64: 1, 784>}, {transform_indices = @transform_12, window_bounds = array<i64: 128, 784>}, {transform_indices = @transform_13, window_bounds = array<i64: 128, 128>}]} {
    %c0 = arith.constant 0 : index
    %c0_0 = arith.constant 0 : index
    %0 = vector.load %arg1[%c0, %c0_0] : memref<128x784xf32, #tpu.memory_space<vmem>>, vector<128x784xf32>
    %1 = arith.truncf %0 : vector<128x784xf32> to vector<128x784xbf16>
    %c0_1 = arith.constant 0 : index
    %c0_2 = arith.constant 0 : index
    %2 = vector.load %arg2[%c0_1, %c0_2] : memref<128x10xbf16, #tpu.memory_space<vmem>>, vector<128x10xbf16>
    %c0_3 = arith.constant 0 : index
    %c0_4 = arith.constant 0 : index
    %3 = vector.load %arg3[%c0_3, %c0_4] : memref<128x20xf32, #tpu.memory_space<vmem>>, vector<128x20xf32>
    %c0_5 = arith.constant 0 : index
    %c0_6 = arith.constant 0 : index
    %4 = vector.load %arg5[%c0_5, %c0_6] : memref<10x512xbf16, #tpu.memory_space<vmem>>, vector<10x512xbf16>
    %cst = arith.constant dense<0.000000e+00> : vector<128x512xf32>
    %5 = tpu.matmul %2, %4, %cst {dimension_numbers = #tpu.dot_dimension_numbers<[1], [0], [0], [1], [0, 0, 1, 1], [], []>} : vector<128x10xbf16>, vector<10x512xbf16>, vector<128x512xf32> -> vector<128x512xf32>
    %6 = vector.extract_strided_slice %5 {offsets = [0, 0], sizes = [128, 256], strides = [1, 1]} : vector<128x512xf32> to vector<128x256xf32>
    %7 = vector.extract_strided_slice %5 {offsets = [0, 256], sizes = [128, 256], strides = [1, 1]} : vector<128x512xf32> to vector<128x256xf32>
    %c0_7 = arith.constant 0 : index
    %c0_8 = arith.constant 0 : index
    %8 = vector.load %arg4[%c0_7, %c0_8] : memref<784x256xbf16, #tpu.memory_space<vmem>>, vector<784x256xbf16>
    %cst_9 = arith.constant dense<0.000000e+00> : vector<128x256xf32>
    %9 = tpu.matmul %1, %8, %cst_9 {dimension_numbers = #tpu.dot_dimension_numbers<[1], [0], [0], [1], [0, 0, 1, 1], [], []>} : vector<128x784xbf16>, vector<784x256xbf16>, vector<128x256xf32> -> vector<128x256xf32>
    %10 = arith.addf %9, %6 : vector<128x256xf32>
    %c0_10 = arith.constant 0 : index
    %c0_11 = arith.constant 0 : index
    %11 = vector.load %arg6[%c0_10, %c0_11] : memref<1x256xf32, #tpu.memory_space<vmem>>, vector<1x256xf32>
    %12 = vector.broadcast %11 : vector<1x256xf32> to vector<128x256xf32>
    %13 = arith.addf %10, %12 : vector<128x256xf32>
    %cst_12 = arith.constant 0.000000e+00 : f32
    %14 = vector.broadcast %cst_12 : f32 to vector<128x256xf32>
    %15 = arith.maximumf %13, %14 : vector<128x256xf32>
    %16 = arith.truncf %15 : vector<128x256xf32> to vector<128x256xbf16>
    %c0_13 = arith.constant 0 : index
    %c0_14 = arith.constant 0 : index
    %17 = vector.load %arg7[%c0_13, %c0_14] : memref<256x128xbf16, #tpu.memory_space<vmem>>, vector<256x128xbf16>
    %cst_15 = arith.constant dense<0.000000e+00> : vector<128x128xf32>
    %18 = tpu.matmul %16, %17, %cst_15 {dimension_numbers = #tpu.dot_dimension_numbers<[1], [0], [0], [1], [0, 0, 1, 1], [], []>} : vector<128x256xbf16>, vector<256x128xbf16>, vector<128x128xf32> -> vector<128x128xf32>
    %c0_16 = arith.constant 0 : index
    %c0_17 = arith.constant 0 : index
    %19 = vector.load %arg8[%c0_16, %c0_17] : memref<1x128xf32, #tpu.memory_space<vmem>>, vector<1x128xf32>
    %20 = vector.broadcast %19 : vector<1x128xf32> to vector<128x128xf32>
    %21 = arith.addf %18, %20 : vector<128x128xf32>
    %22 = vector.extract_strided_slice %21 {offsets = [0, 0], sizes = [128, 20], strides = [1, 1]} : vector<128x128xf32> to vector<128x20xf32>
    %23 = vector.extract_strided_slice %21 {offsets = [0, 20], sizes = [128, 20], strides = [1, 1]} : vector<128x128xf32> to vector<128x20xf32>
    %cst_18 = arith.constant 5.000000e-01 : f32
    %24 = vector.broadcast %cst_18 : f32 to vector<128x20xf32>
    %25 = arith.mulf %24, %23 : vector<128x20xf32>
    %26 = math.exp %25 : vector<128x20xf32>
    %27 = arith.mulf %3, %26 : vector<128x20xf32>
    %28 = arith.addf %22, %27 : vector<128x20xf32>
    %29 = arith.truncf %28 : vector<128x20xf32> to vector<128x20xbf16>
    %c0_19 = arith.constant 0 : index
    %c0_20 = arith.constant 0 : index
    %30 = vector.load %arg9[%c0_19, %c0_20] : memref<20x256xbf16, #tpu.memory_space<vmem>>, vector<20x256xbf16>
    %cst_21 = arith.constant dense<0.000000e+00> : vector<128x256xf32>
    %31 = tpu.matmul %29, %30, %cst_21 {dimension_numbers = #tpu.dot_dimension_numbers<[1], [0], [0], [1], [0, 0, 1, 1], [], []>} : vector<128x20xbf16>, vector<20x256xbf16>, vector<128x256xf32> -> vector<128x256xf32>
    %32 = arith.addf %31, %7 : vector<128x256xf32>
    %c0_22 = arith.constant 0 : index
    %c0_23 = arith.constant 0 : index
    %33 = vector.load %arg10[%c0_22, %c0_23] : memref<1x256xf32, #tpu.memory_space<vmem>>, vector<1x256xf32>
    %34 = vector.broadcast %33 : vector<1x256xf32> to vector<128x256xf32>
    %35 = arith.addf %32, %34 : vector<128x256xf32>
    %cst_24 = arith.constant 0.000000e+00 : f32
    %36 = vector.broadcast %cst_24 : f32 to vector<128x256xf32>
    %37 = arith.maximumf %35, %36 : vector<128x256xf32>
    %38 = arith.truncf %37 : vector<128x256xf32> to vector<128x256xbf16>
    %c0_25 = arith.constant 0 : index
    %c0_26 = arith.constant 0 : index
    %39 = vector.load %arg11[%c0_25, %c0_26] : memref<256x784xbf16, #tpu.memory_space<vmem>>, vector<256x784xbf16>
    %cst_27 = arith.constant dense<0.000000e+00> : vector<128x784xf32>
    %40 = tpu.matmul %38, %39, %cst_27 {dimension_numbers = #tpu.dot_dimension_numbers<[1], [0], [0], [1], [0, 0, 1, 1], [], []>} : vector<128x256xbf16>, vector<256x784xbf16>, vector<128x784xf32> -> vector<128x784xf32>
    %c0_28 = arith.constant 0 : index
    %c0_29 = arith.constant 0 : index
    %41 = vector.load %arg12[%c0_28, %c0_29] : memref<1x784xf32, #tpu.memory_space<vmem>>, vector<1x784xf32>
    %42 = vector.broadcast %41 : vector<1x784xf32> to vector<128x784xf32>
    %43 = arith.addf %40, %42 : vector<128x784xf32>
    %cst_30 = arith.constant 0.000000e+00 : f32
    %44 = vector.broadcast %cst_30 : f32 to vector<128x784xf32>
    %45 = arith.subf %44, %43 : vector<128x784xf32>
    %46 = math.exp %45 : vector<128x784xf32>
    %cst_31 = arith.constant 1.000000e+00 : f32
    %47 = vector.broadcast %cst_31 : f32 to vector<128x784xf32>
    %48 = arith.addf %47, %46 : vector<128x784xf32>
    %49 = tpu.reciprocal %48 {approx = true} : vector<128x784xf32> -> vector<128x784xf32>
    %cst_32 = arith.constant 0.000000e+00 : f32
    %cst_33 = arith.constant 1.000000e+00 : f32
    %50 = vector.broadcast %cst_32 : f32 to vector<128x784xf32>
    %51 = arith.maximumf %50, %49 : vector<128x784xf32>
    %52 = vector.broadcast %cst_33 : f32 to vector<128x784xf32>
    %53 = arith.minimumf %52, %51 : vector<128x784xf32>
    %54 = arith.truncf %53 : vector<128x784xf32> to vector<128x784xbf16>
    %c0_34 = arith.constant 0 : index
    %c0_35 = arith.constant 0 : index
    %55 = vector.load %arg13[%c0_34, %c0_35] : memref<128x784xbf16, #tpu.memory_space<vmem>>, vector<128x784xbf16>
    tpu.vector_store %arg13[%c0_34, %c0_35], %54 {strides = array<i32>} : memref<128x784xbf16, #tpu.memory_space<vmem>>, vector<128x784xbf16>,
    %c0_36 = arith.constant 0 : index
    %c0_37 = arith.constant 0 : index
    %56 = vector.load %arg14[%c0_36, %c0_37] : memref<128x128xf32, #tpu.memory_space<vmem>>, vector<128x128xf32>
    tpu.vector_store %arg14[%c0_36, %c0_37], %21 {strides = array<i32>} : memref<128x128xf32, #tpu.memory_space<vmem>>, vector<128x128xf32>,
    return
  }
  func.func @transform_0(%arg0: i32) -> (i32, i32) {
    %c0_i32 = arith.constant 0 : i32
    %c0_i32_0 = arith.constant 0 : i32
    return %arg0, %c0_i32 : i32, i32
  }
  func.func @transform_1(%arg0: i32) -> (i32, i32) {
    %c0_i32 = arith.constant 0 : i32
    %c0_i32_0 = arith.constant 0 : i32
    return %arg0, %c0_i32 : i32, i32
  }
  func.func @transform_2(%arg0: i32) -> (i32, i32) {
    %c0_i32 = arith.constant 0 : i32
    %c0_i32_0 = arith.constant 0 : i32
    return %arg0, %c0_i32 : i32, i32
  }
  func.func @transform_3(%arg0: i32) -> (i32, i32) {
    %c0_i32 = arith.constant 0 : i32
    %c0_i32_0 = arith.constant 0 : i32
    %c0_i32_1 = arith.constant 0 : i32
    return %c0_i32, %c0_i32_0 : i32, i32
  }
  func.func @transform_4(%arg0: i32) -> (i32, i32) {
    %c0_i32 = arith.constant 0 : i32
    %c0_i32_0 = arith.constant 0 : i32
    %c0_i32_1 = arith.constant 0 : i32
    return %c0_i32, %c0_i32_0 : i32, i32
  }
  func.func @transform_5(%arg0: i32) -> (i32, i32) {
    %c0_i32 = arith.constant 0 : i32
    %c0_i32_0 = arith.constant 0 : i32
    %c0_i32_1 = arith.constant 0 : i32
    return %c0_i32, %c0_i32_0 : i32, i32
  }
  func.func @transform_6(%arg0: i32) -> (i32, i32) {
    %c0_i32 = arith.constant 0 : i32
    %c0_i32_0 = arith.constant 0 : i32
    %c0_i32_1 = arith.constant 0 : i32
    return %c0_i32, %c0_i32_0 : i32, i32
  }
  func.func @transform_7(%arg0: i32) -> (i32, i32) {
    %c0_i32 = arith.constant 0 : i32
    %c0_i32_0 = arith.constant 0 : i32
    %c0_i32_1 = arith.constant 0 : i32
    return %c0_i32, %c0_i32_0 : i32, i32
  }
  func.func @transform_8(%arg0: i32) -> (i32, i32) {
    %c0_i32 = arith.constant 0 : i32
    %c0_i32_0 = arith.constant 0 : i32
    %c0_i32_1 = arith.constant 0 : i32
    return %c0_i32, %c0_i32_0 : i32, i32
  }
  func.func @transform_9(%arg0: i32) -> (i32, i32) {
    %c0_i32 = arith.constant 0 : i32
    %c0_i32_0 = arith.constant 0 : i32
    %c0_i32_1 = arith.constant 0 : i32
    return %c0_i32, %c0_i32_0 : i32, i32
  }
  func.func @transform_10(%arg0: i32) -> (i32, i32) {
    %c0_i32 = arith.constant 0 : i32
    %c0_i32_0 = arith.constant 0 : i32
    %c0_i32_1 = arith.constant 0 : i32
    return %c0_i32, %c0_i32_0 : i32, i32
  }
  func.func @transform_11(%arg0: i32) -> (i32, i32) {
    %c0_i32 = arith.constant 0 : i32
    %c0_i32_0 = arith.constant 0 : i32
    %c0_i32_1 = arith.constant 0 : i32
    return %c0_i32, %c0_i32_0 : i32, i32
  }
  func.func @transform_12(%arg0: i32) -> (i32, i32) {
    %c0_i32 = arith.constant 0 : i32
    %c0_i32_0 = arith.constant 0 : i32
    return %arg0, %c0_i32 : i32, i32
  }
  func.func @transform_13(%arg0: i32) -> (i32, i32) {
    %c0_i32 = arith.constant 0 : i32
    %c0_i32_0 = arith.constant 0 : i32
    return %arg0, %c0_i32 : i32, i32
  }
}

</mosaic_0001>

<llo_original>
// kernel: cvae_forward.1
$region0: #{cvae_forward.1}
  #allocation0 [shape = 'u32[]', space=smem, size = 0x4, offset = 0x4, fixed_abs, tag = 'smem constant byte address 0x4 - core index']
  #allocation1 [shape = 'u32[72,128]{1,0:T(1,128)}', space=vmem, size = 0x9000, scoped, tag = 'internal scratch']
  %s0 = inlined_call_operand.vmem [shape: f32[256,784], index: 0, kind: input, shape index: {}]
  %s1 = inlined_call_operand.vmem [shape: bf16[256,10], index: 1, kind: input, shape index: {}]
  %s2 = inlined_call_operand.vmem [shape: f32[256,20], index: 2, kind: input, shape index: {}]
  %s3 = inlined_call_operand.vmem [shape: bf16[784,256], index: 3, kind: input, shape index: {}]
  %s4 = inlined_call_operand.vmem [shape: bf16[10,512], index: 4, kind: input, shape index: {}]
  %s5 = inlined_call_operand.vmem [shape: f32[1,256], index: 5, kind: input, shape index: {}]
  %s6 = inlined_call_operand.vmem [shape: bf16[256,128], index: 6, kind: input, shape index: {}]
  %s7 = inlined_call_operand.vmem [shape: f32[1,128], index: 7, kind: input, shape index: {}]
  %s8 = inlined_call_operand.vmem [shape: bf16[20,256], index: 8, kind: input, shape index: {}]
  %s9 = inlined_call_operand.vmem [shape: f32[1,256], index: 9, kind: input, shape index: {}]
  %s10 = inlined_call_operand.vmem [shape: bf16[256,784], index: 10, kind: input, shape index: {}]
  %s11 = inlined_call_operand.vmem [shape: f32[1,784], index: 11, kind: input, shape index: {}]
  %s12 = inlined_call_operand.vmem [shape: bf16[256,784], index: 12, kind: output, shape index: {0}]
  %s13 = inlined_call_operand.vmem [shape: f32[256,128], index: 13, kind: output, shape index: {1}]
  %14 = xla_tuple %s12, %s13
  %s15 = sld [smem:[#allocation0]]
  $region89: #{cvae_forward.1} parent=0
    _
  %s17 = ssub.s32 1, %s15
  %s18 = scalar_select 0, %s17, %s15
  loop: start=0, step=1, limit=4
  $region2: #{cvae_forward.1} parent=0 // loop_pre_header
    _
  $region3: #{cvae_forward.1} parent=0 // loop_header
    %s20 = sphi 0, %s24
    %p21 = scmp.ge.s32.totalorder %s20, 4
    %s30 = sphi 0, %s32
    %s33 = sphi 0, %s30
    %s34 = sphi 0, %s33
    %s50 = sphi 0, %s34
    %s56 = sphi 0, %s58
    %s59 = sphi 0, %s56
    %s60 = sphi 0, %s59
    %s76 = sphi 0, %s60
    %s82 = sphi 0, %s84
    %s85 = sphi 0, %s82
    %s86 = sphi 0, %s85
    %s102 = sphi 0, %s86
    %s106 = sphi 0, %s106
    %s108 = sphi 0, %s106
    %s109 = sphi 0, %s108
    %s123 = sphi 0, %s109
    %s127 = sphi 0, %s127
    %s129 = sphi 0, %s127
    %s130 = sphi 0, %s129
    %s144 = sphi 0, %s130
    %s148 = sphi 0, %s148
    %s150 = sphi 0, %s148
    %s151 = sphi 0, %s150
    %s165 = sphi 0, %s151
    %s169 = sphi 0, %s169
    %s171 = sphi 0, %s169
    %s172 = sphi 0, %s171
    %s186 = sphi 0, %s172
    %s190 = sphi 0, %s190
    %s192 = sphi 0, %s190
    %s193 = sphi 0, %s192
    %s207 = sphi 0, %s193
    %s211 = sphi 0, %s211
    %s213 = sphi 0, %s211
    %s214 = sphi 0, %s213
    %s228 = sphi 0, %s214
    %s232 = sphi 0, %s232
    %s234 = sphi 0, %s232
    %s235 = sphi 0, %s234
    %s249 = sphi 0, %s235
    %s253 = sphi 0, %s253
    %s255 = sphi 0, %s253
    %s256 = sphi 0, %s255
    %s270 = sphi 0, %s256
    %s274 = sphi 0, %s274
    %s276 = sphi 0, %s274
    %s277 = sphi 0, %s276
    %s291 = sphi 0, %s277
    %s297 = sphi 0, %s299
    %s300 = sphi 0, %s297
    %s301 = sphi 0, %s300
    %s317 = sphi 0, %s301
    %s323 = sphi 0, %s325
    %s326 = sphi 0, %s323
    %s327 = sphi 0, %s326
    %s343 = sphi 0, %s327
  $region4: #{cvae_forward.1} parent=0 // loop_header_branch
    %23 = sbr.rel (%p21) target = $region8
  $region5: #{cvae_forward.1} parent=0 // loop_body
    %s25 = ssub.s32 %s20, 1
    %s26 = ssub.s32 %s20, 2
    %s27 = sadd.s32 %s20, 1
    %s28 = ssub.s32 %s20, %s27
    %p29 = scmp.eq.s32.totalorder %s28, 0
    %s31 = sadd.s32 %s30, 1
    %s32 = scalar_select %p29, %s30, %s31
    %p35 = pneg %p29
    %p36 = scmp.eq.s32.totalorder %s20, 1
    %p37 = por %p35, %p36
    %p38 = scmp.ne.s32.totalorder %s30, %s33
    %p39 = scmp.eq.s32.totalorder %s20, 0
    %p40 = por %p38, %p39
    %p41 = scmp.ne.s32.totalorder %s30, %s33
    %p42 = scmp.eq.s32.totalorder %s25, 1
    %p43 = por %p41, %p42
    %p44 = scmp.ne.s32.totalorder %s33, %s34
    %p45 = scmp.eq.s32.totalorder %s25, 0
    %p46 = por %p44, %p45
    %p47 = scmp.ne.s32.totalorder %s33, %s34
    %p48 = scmp.eq.s32.totalorder %s26, 1
    %p49 = por %p47, %p48
    %p51 = scmp.ne.s32.totalorder %s34, %s50
    %p52 = scmp.eq.s32.totalorder %s26, 0
    %p53 = por %p51, %p52
    %s54 = ssub.s32 %s20, %s27
    %p55 = scmp.eq.s32.totalorder %s54, 0
    %s57 = sadd.s32 %s56, 1
    %s58 = scalar_select %p55, %s56, %s57
    %p61 = pneg %p55
    %p62 = scmp.eq.s32.totalorder %s20, 1
    %p63 = por %p61, %p62
    %p64 = scmp.ne.s32.totalorder %s56, %s59
    %p65 = scmp.eq.s32.totalorder %s20, 0
    %p66 = por %p64, %p65
    %p67 = scmp.ne.s32.totalorder %s56, %s59
    %p68 = scmp.eq.s32.totalorder %s25, 1
    %p69 = por %p67, %p68
    %p70 = scmp.ne.s32.totalorder %s59, %s60
    %p71 = scmp.eq.s32.totalorder %s25, 0
    %p72 = por %p70, %p71
    %p73 = scmp.ne.s32.totalorder %s59, %s60
    %p74 = scmp.eq.s32.totalorder %s26, 1
    %p75 = por %p73, %p74
    %p77 = scmp.ne.s32.totalorder %s60, %s76
    %p78 = scmp.eq.s32.totalorder %s26, 0
    %p79 = por %p77, %p78
    %s80 = ssub.s32 %s20, %s27
    %p81 = scmp.eq.s32.totalorder %s80, 0
    %s83 = sadd.s32 %s82, 1
    %s84 = scalar_select %p81, %s82, %s83
    %p87 = pneg %p81
    %p88 = scmp.eq.s32.totalorder %s20, 1
    %p89 = por %p87, %p88
    %p90 = scmp.ne.s32.totalorder %s82, %s85
    %p91 = scmp.eq.s32.totalorder %s20, 0
    %p92 = por %p90, %p91
    %p93 = scmp.ne.s32.totalorder %s82, %s85
    %p94 = scmp.eq.s32.totalorder %s25, 1
    %p95 = por %p93, %p94
    %p96 = scmp.ne.s32.totalorder %s85, %s86
    %p97 = scmp.eq.s32.totalorder %s25, 0
    %p98 = por %p96, %p97
    %p99 = scmp.ne.s32.totalorder %s85, %s86
    %p100 = scmp.eq.s32.totalorder %s26, 1
    %p101 = por %p99, %p100
    %p103 = scmp.ne.s32.totalorder %s86, %s102
    %p104 = scmp.eq.s32.totalorder %s26, 0
    %p105 = por %p103, %p104
    %s107 = sadd.s32 %s106, 1
    %p110 = scmp.eq.s32.totalorder %s20, 1
    %p111 = scmp.ne.s32.totalorder %s106, %s108
    %p112 = scmp.eq.s32.totalorder %s20, 0
    %p113 = por %p111, %p112
    %p114 = scmp.ne.s32.totalorder %s106, %s108
    %p115 = scmp.eq.s32.totalorder %s25, 1
    %p116 = por %p114, %p115
    %p117 = scmp.ne.s32.totalorder %s108, %s109
    %p118 = scmp.eq.s32.totalorder %s25, 0
    %p119 = por %p117, %p118
    %p120 = scmp.ne.s32.totalorder %s108, %s109
    %p121 = scmp.eq.s32.totalorder %s26, 1
    %p122 = por %p120, %p121
    %p124 = scmp.ne.s32.totalorder %s109, %s123
    %p125 = scmp.eq.s32.totalorder %s26, 0
    %p126 = por %p124, %p125
    %s128 = sadd.s32 %s127, 1
    %p131 = scmp.eq.s32.totalorder %s20, 1
    %p132 = scmp.ne.s32.totalorder %s127, %s129
    %p133 = scmp.eq.s32.totalorder %s20, 0
    %p134 = por %p132, %p133
    %p135 = scmp.ne.s32.totalorder %s127, %s129
    %p136 = scmp.eq.s32.totalorder %s25, 1
    %p137 = por %p135, %p136
    %p138 = scmp.ne.s32.totalorder %s129, %s130
    %p139 = scmp.eq.s32.totalorder %s25, 0
    %p140 = por %p138, %p139
    %p141 = scmp.ne.s32.totalorder %s129, %s130
    %p142 = scmp.eq.s32.totalorder %s26, 1
    %p143 = por %p141, %p142
    %p145 = scmp.ne.s32.totalorder %s130, %s144
    %p146 = scmp.eq.s32.totalorder %s26, 0
    %p147 = por %p145, %p146
    %s149 = sadd.s32 %s148, 1
    %p152 = scmp.eq.s32.totalorder %s20, 1
    %p153 = scmp.ne.s32.totalorder %s148, %s150
    %p154 = scmp.eq.s32.totalorder %s20, 0
    %p155 = por %p153, %p154
    %p156 = scmp.ne.s32.totalorder %s148, %s150
    %p157 = scmp.eq.s32.totalorder %s25, 1
    %p158 = por %p156, %p157
    %p159 = scmp.ne.s32.totalorder %s150, %s151
    %p160 = scmp.eq.s32.totalorder %s25, 0
    %p161 = por %p159, %p160
    %p162 = scmp.ne.s32.totalorder %s150, %s151
    %p163 = scmp.eq.s32.totalorder %s26, 1
    %p164 = por %p162, %p163
    %p166 = scmp.ne.s32.totalorder %s151, %s165
    %p167 = scmp.eq.s32.totalorder %s26, 0
    %p168 = por %p166, %p167
    %s170 = sadd.s32 %s169, 1
    %p173 = scmp.eq.s32.totalorder %s20, 1
    %p174 = scmp.ne.s32.totalorder %s169, %s171
    %p175 = scmp.eq.s32.totalorder %s20, 0
    %p176 = por %p174, %p175
    %p177 = scmp.ne.s32.totalorder %s169, %s171
    %p178 = scmp.eq.s32.totalorder %s25, 1
    %p179 = por %p177, %p178
    %p180 = scmp.ne.s32.totalorder %s171, %s172
    %p181 = scmp.eq.s32.totalorder %s25, 0
    %p182 = por %p180, %p181
    %p183 = scmp.ne.s32.totalorder %s171, %s172
    %p184 = scmp.eq.s32.totalorder %s26, 1
    %p185 = por %p183, %p184
    %p187 = scmp.ne.s32.totalorder %s172, %s186
    %p188 = scmp.eq.s32.totalorder %s26, 0
    %p189 = por %p187, %p188
    %s191 = sadd.s32 %s190, 1
    %p194 = scmp.eq.s32.totalorder %s20, 1
    %p195 = scmp.ne.s32.totalorder %s190, %s192
    %p196 = scmp.eq.s32.totalorder %s20, 0
    %p197 = por %p195, %p196
    %p198 = scmp.ne.s32.totalorder %s190, %s192
    %p199 = scmp.eq.s32.totalorder %s25, 1
    %p200 = por %p198, %p199
    %p201 = scmp.ne.s32.totalorder %s192, %s193
    %p202 = scmp.eq.s32.totalorder %s25, 0
    %p203 = por %p201, %p202
    %p204 = scmp.ne.s32.totalorder %s192, %s193
    %p205 = scmp.eq.s32.totalorder %s26, 1
    %p206 = por %p204, %p205
    %p208 = scmp.ne.s32.totalorder %s193, %s207
    %p209 = scmp.eq.s32.totalorder %s26, 0
    %p210 = por %p208, %p209
    %s212 = sadd.s32 %s211, 1
    %p215 = scmp.eq.s32.totalorder %s20, 1
    %p216 = scmp.ne.s32.totalorder %s211, %s213
    %p217 = scmp.eq.s32.totalorder %s20, 0
    %p218 = por %p216, %p217
    %p219 = scmp.ne.s32.totalorder %s211, %s213
    %p220 = scmp.eq.s32.totalorder %s25, 1
    %p221 = por %p219, %p220
    %p222 = scmp.ne.s32.totalorder %s213, %s214
    %p223 = scmp.eq.s32.totalorder %s25, 0
    %p224 = por %p222, %p223
    %p225 = scmp.ne.s32.totalorder %s213, %s214
    %p226 = scmp.eq.s32.totalorder %s26, 1
    %p227 = por %p225, %p226
    %p229 = scmp.ne.s32.totalorder %s214, %s228
    %p230 = scmp.eq.s32.totalorder %s26, 0
    %p231 = por %p229, %p230
    %s233 = sadd.s32 %s232, 1
    %p236 = scmp.eq.s32.totalorder %s20, 1
    %p237 = scmp.ne.s32.totalorder %s232, %s234
    %p238 = scmp.eq.s32.totalorder %s20, 0
    %p239 = por %p237, %p238
    %p240 = scmp.ne.s32.totalorder %s232, %s234
    %p241 = scmp.eq.s32.totalorder %s25, 1
    %p242 = por %p240, %p241
    %p243 = scmp.ne.s32.totalorder %s234, %s235
    %p244 = scmp.eq.s32.totalorder %s25, 0
    %p245 = por %p243, %p244
    %p246 = scmp.ne.s32.totalorder %s234, %s235
    %p247 = scmp.eq.s32.totalorder %s26, 1
    %p248 = por %p246, %p247
    %p250 = scmp.ne.s32.totalorder %s235, %s249
    %p251 = scmp.eq.s32.totalorder %s26, 0
    %p252 = por %p250, %p251
    %s254 = sadd.s32 %s253, 1
    %p257 = scmp.eq.s32.totalorder %s20, 1
    %p258 = scmp.ne.s32.totalorder %s253, %s255
    %p259 = scmp.eq.s32.totalorder %s20, 0
    %p260 = por %p258, %p259
    %p261 = scmp.ne.s32.totalorder %s253, %s255
    %p262 = scmp.eq.s32.totalorder %s25, 1
    %p263 = por %p261, %p262
    %p264 = scmp.ne.s32.totalorder %s255, %s256
    %p265 = scmp.eq.s32.totalorder %s25, 0
    %p266 = por %p264, %p265
    %p267 = scmp.ne.s32.totalorder %s255, %s256
    %p268 = scmp.eq.s32.totalorder %s26, 1
    %p269 = por %p267, %p268
    %p271 = scmp.ne.s32.totalorder %s256, %s270
    %p272 = scmp.eq.s32.totalorder %s26, 0
    %p273 = por %p271, %p272
    %s275 = sadd.s32 %s274, 1
    %p278 = scmp.eq.s32.totalorder %s20, 1
    %p279 = scmp.ne.s32.totalorder %s274, %s276
    %p280 = scmp.eq.s32.totalorder %s20, 0
    %p281 = por %p279, %p280
    %p282 = scmp.ne.s32.totalorder %s274, %s276
    %p283 = scmp.eq.s32.totalorder %s25, 1
    %p284 = por %p282, %p283
    %p285 = scmp.ne.s32.totalorder %s276, %s277
    %p286 = scmp.eq.s32.totalorder %s25, 0
    %p287 = por %p285, %p286
    %p288 = scmp.ne.s32.totalorder %s276, %s277
    %p289 = scmp.eq.s32.totalorder %s26, 1
    %p290 = por %p288, %p289
    %p292 = scmp.ne.s32.totalorder %s277, %s291
    %p293 = scmp.eq.s32.totalorder %s26, 0
    %p294 = por %p292, %p293
    %s295 = ssub.s32 %s20, %s27
    %p296 = scmp.eq.s32.totalorder %s295, 0
    %s298 = sadd.s32 %s297, 1
    %s299 = scalar_select %p296, %s297, %s298
    %p302 = pneg %p296
    %p303 = scmp.eq.s32.totalorder %s20, 1
    %p304 = por %p302, %p303
    %p305 = scmp.ne.s32.totalorder %s297, %s300
    %p306 = scmp.eq.s32.totalorder %s20, 0
    %p307 = por %p305, %p306
    %p308 = scmp.ne.s32.totalorder %s297, %s300
    %p309 = scmp.eq.s32.totalorder %s25, 1
    %p310 = por %p308, %p309
    %p311 = scmp.ne.s32.totalorder %s300, %s301
    %p312 = scmp.eq.s32.totalorder %s25, 0
    %p313 = por %p311, %p312
    %p314 = scmp.ne.s32.totalorder %s300, %s301
    %p315 = scmp.eq.s32.totalorder %s26, 1
    %p316 = por %p314, %p315
    %p318 = scmp.ne.s32.totalorder %s301, %s317
    %p319 = scmp.eq.s32.totalorder %s26, 0
    %p320 = por %p318, %p319
    %s321 = ssub.s32 %s20, %s27
    %p322 = scmp.eq.s32.totalorder %s321, 0
    %s324 = sadd.s32 %s323, 1
    %s325 = scalar_select %p322, %s323, %s324
    %p328 = pneg %p322
    %p329 = scmp.eq.s32.totalorder %s20, 1
    %p330 = por %p328, %p329
    %p331 = scmp.ne.s32.totalorder %s323, %s326
    %p332 = scmp.eq.s32.totalorder %s20, 0
    %p333 = por %p331, %p332
    %p334 = scmp.ne.s32.totalorder %s323, %s326
    %p335 = scmp.eq.s32.totalorder %s25, 1
    %p336 = por %p334, %p335
    %p337 = scmp.ne.s32.totalorder %s326, %s327
    %p338 = scmp.eq.s32.totalorder %s25, 0
    %p339 = por %p337, %p338
    %p340 = scmp.ne.s32.totalorder %s326, %s327
    %p341 = scmp.eq.s32.totalorder %s26, 1
    %p342 = por %p340, %p341
    %p344 = scmp.ne.s32.totalorder %s327, %s343
    %p345 = scmp.eq.s32.totalorder %s26, 0
    %p346 = por %p344, %p345
    %p347 = scmp.le.s32.totalorder 1, %s20
    %p348 = scmp.lt.s32.totalorder %s20, 3
    %p349 = pnand %p347, %p348
    %p350 = pneg %p349
    // Predicated region
    $region9: #{cvae_forward.1} parent=5 // pred_check
      _
    $region10: #{cvae_forward.1} parent=5 // pred_check_branch
      %352 = sbr.rel (%p349) target = $region12
    $region11: #{cvae_forward.1} parent=5 // pred_region
      %s353 = ssub.s32 %s20, 1
      // Predicated region
      $region13: #{cvae_forward.1} parent=11 // pred_check
        %p354 = pneg %p119
      $region14: #{cvae_forward.1} parent=11 // pred_check_branch
        %356 = sbr.rel (%p354) target = $region16
      $region15: #{cvae_forward.1} parent=11 // pred_region
        _
      $region16: #{cvae_forward.1} parent=11 // pred_fallthru
        _
      // Predicated region
      $region17: #{cvae_forward.1} parent=11 // pred_check
        %p357 = pneg %p140
      $region18: #{cvae_forward.1} parent=11 // pred_check_branch
        %359 = sbr.rel (%p357) target = $region20
      $region19: #{cvae_forward.1} parent=11 // pred_region
        _
      $region20: #{cvae_forward.1} parent=11 // pred_fallthru
        _
      // Predicated region
      $region21: #{cvae_forward.1} parent=11 // pred_check
        %p360 = pneg %p161
      $region22: #{cvae_forward.1} parent=11 // pred_check_branch
        %362 = sbr.rel (%p360) target = $region24
      $region23: #{cvae_forward.1} parent=11 // pred_region
        _
      $region24: #{cvae_forward.1} parent=11 // pred_fallthru
        _
      // Predicated region
      $region25: #{cvae_forward.1} parent=11 // pred_check
        %p363 = pneg %p182
      $region26: #{cvae_forward.1} parent=11 // pred_check_branch
        %365 = sbr.rel (%p363) target = $region28
      $region27: #{cvae_forward.1} parent=11 // pred_region
        _
      $region28: #{cvae_forward.1} parent=11 // pred_fallthru
        _
      // Predicated region
      $region29: #{cvae_forward.1} parent=11 // pred_check
        %p366 = pneg %p203
      $region30: #{cvae_forward.1} parent=11 // pred_check_branch
        %368 = sbr.rel (%p366) target = $region32
      $region31: #{cvae_forward.1} parent=11 // pred_region
        _
      $region32: #{cvae_forward.1} parent=11 // pred_fallthru
        _
      // Predicated region
      $region33: #{cvae_forward.1} parent=11 // pred_check
        %p369 = pneg %p224
      $region34: #{cvae_forward.1} parent=11 // pred_check_branch
        %371 = sbr.rel (%p369) target = $region36
      $region35: #{cvae_forward.1} parent=11 // pred_region
        _
      $region36: #{cvae_forward.1} parent=11 // pred_fallthru
        _
      // Predicated region
      $region37: #{cvae_forward.1} parent=11 // pred_check
        %p372 = pneg %p245
      $region38: #{cvae_forward.1} parent=11 // pred_check_branch
        %374 = sbr.rel (%p372) target = $region40
      $region39: #{cvae_forward.1} parent=11 // pred_region
        _
      $region40: #{cvae_forward.1} parent=11 // pred_fallthru
        _
      // Predicated region
      $region41: #{cvae_forward.1} parent=11 // pred_check
        %p375 = pneg %p266
      $region42: #{cvae_forward.1} parent=11 // pred_check_branch
        %377 = sbr.rel (%p375) target = $region44
      $region43: #{cvae_forward.1} parent=11 // pred_region
        _
      $region44: #{cvae_forward.1} parent=11 // pred_fallthru
        _
      // Predicated region
      $region45: #{cvae_forward.1} parent=11 // pred_check
        %p378 = pneg %p287
      $region46: #{cvae_forward.1} parent=11 // pred_check_branch
        %380 = sbr.rel (%p378) target = $region48
      $region47: #{cvae_forward.1} parent=11 // pred_region
        _
      $region48: #{cvae_forward.1} parent=11 // pred_fallthru
        _
    $region12: #{cvae_forward.1} parent=5 // pred_fallthru
      _
    %p381 = scmp.lt.s32.totalorder %s20, 2
    // Predicated region
    $region49: #{cvae_forward.1} parent=5 // pred_check
      %p382 = pneg %p381
    $region50: #{cvae_forward.1} parent=5 // pred_check_branch
      %384 = sbr.rel (%p382) target = $region52
    $region51: #{cvae_forward.1} parent=5 // pred_region
      // Predicated region
      $region53: #{cvae_forward.1} parent=51 // pred_check
        %p385 = pneg %p40
      $region54: #{cvae_forward.1} parent=51 // pred_check_branch
        %387 = sbr.rel (%p385) target = $region56
      $region55: #{cvae_forward.1} parent=51 // pred_region
        %s388 = smul.u32 16, %s20
        %p389 = scmp.lt.s32.totalorder %s388, 31
        %s390 = scalar_select %p389, %s388, 31
        %s391 = smul.addr %s390, 7
        %s392 = smul.addr %s391, 8
        %s393 = scalar_lea.vmem %s0, %s392
        %s394 = smul.u32 16, %s20
      $region56: #{cvae_forward.1} parent=51 // pred_fallthru
        _
      // Predicated region
      $region57: #{cvae_forward.1} parent=51 // pred_check
        %p395 = pneg %p66
      $region58: #{cvae_forward.1} parent=51 // pred_check_branch
        %397 = sbr.rel (%p395) target = $region60
      $region59: #{cvae_forward.1} parent=51 // pred_region
        %s398 = smul.u32 16, %s20
        %p399 = scmp.lt.s32.totalorder %s398, 31
        %s400 = scalar_select %p399, %s398, 31
        %s401 = smul.addr %s400, 4
        %s402 = scalar_lea.vmem %s1, %s401
        %s403 = smul.u32 16, %s20
      $region60: #{cvae_forward.1} parent=51 // pred_fallthru
        _
      // Predicated region
      $region61: #{cvae_forward.1} parent=51 // pred_check
        %p404 = pneg %p92
      $region62: #{cvae_forward.1} parent=51 // pred_check_branch
        %406 = sbr.rel (%p404) target = $region64
      $region63: #{cvae_forward.1} parent=51 // pred_region
        %s407 = smul.u32 16, %s20
        %p408 = scmp.lt.s32.totalorder %s407, 31
        %s409 = scalar_select %p408, %s407, 31
        %s410 = smul.addr %s409, 8
        %s411 = scalar_lea.vmem %s2, %s410
        %s412 = smul.u32 16, %s20
      $region64: #{cvae_forward.1} parent=51 // pred_fallthru
        _
    $region52: #{cvae_forward.1} parent=5 // pred_fallthru
      _
    %p413 = scmp.le.s32.totalorder 1, %s20
    %p414 = scmp.lt.s32.totalorder %s20, 3
    %p415 = pnand %p413, %p414
    %p416 = pneg %p415
    // Predicated region
    $region65: #{cvae_forward.1} parent=5 // pred_check
      _
    $region66: #{cvae_forward.1} parent=5 // pred_check_branch
      %418 = sbr.rel (%p415) target = $region68
    $region67: #{cvae_forward.1} parent=5 // pred_region
      %s419 = ssub.s32 %s20, 1
      %s420 = smul.u32 16, %s25
      %p421 = scmp.lt.s32.totalorder %s420, 31
      %s422 = scalar_select %p421, %s420, 31
      %s423 = smul.addr %s422, 7
      %s424 = smul.addr %s423, 8
      %s425 = scalar_lea.vmem %s0, %s424
      %p426 = pneg %p46
      %p427 = pneg %p43
      %s428 = smul.u32 16, %s25
      %p429 = scmp.lt.s32.totalorder %s428, 31
      %s430 = scalar_select %p429, %s428, 31
      %s431 = smul.addr %s430, 4
      %s432 = scalar_lea.vmem %s1, %s431
      %p433 = pneg %p72
      %p434 = pneg %p69
      %s435 = smul.u32 16, %s25
      %p436 = scmp.lt.s32.totalorder %s435, 31
      %s437 = scalar_select %p436, %s435, 31
      %s438 = smul.addr %s437, 8
      %s439 = scalar_lea.vmem %s2, %s438
      %p440 = pneg %p98
      %p441 = pneg %p95
      %p442 = pneg %p119
      %p443 = pneg %p116
      %p444 = pneg %p140
      %p445 = pneg %p137
      %p446 = pneg %p161
      %p447 = pneg %p158
      %p448 = pneg %p182
      %p449 = pneg %p179
      %p450 = pneg %p203
      %p451 = pneg %p200
      %p452 = pneg %p224
      %p453 = pneg %p221
      %p454 = pneg %p245
      %p455 = pneg %p242
      %p456 = pneg %p266
      %p457 = pneg %p263
      %p458 = pneg %p287
      %p459 = pneg %p284
      %p460 = pneg %p313
      %p461 = pneg %p310
      %s462 = smul.u32 16, %s25
      %p463 = scmp.lt.s32.totalorder %s462, 31
      %s464 = scalar_select %p463, %s462, 31
      %s465 = smul.addr %s464, 7
      %s466 = smul.addr %s465, 4
      %s467 = scalar_lea.vmem %s12, %s466
      %p468 = pneg %p339
      %p469 = pneg %p336
      %s470 = smul.u32 16, %s25
      %p471 = scmp.lt.s32.totalorder %s470, 31
      %s472 = scalar_select %p471, %s470, 31
      %s473 = smul.addr %s472, 8
      %s474 = scalar_lea.vmem %s13, %s473
      %s475 = smul.u32 16, %s25
      %p476 = scmp.lt.s32.totalorder %s475, 31
      %s477 = scalar_select %p476, %s475, 31
      %s478 = smul.addr %s477, 7
      %s479 = smul.addr %s478, 8
      %s480 = scalar_lea.vmem %s0, %s479
      %s481 = smul.u32 16, %s25
      %s482 = smul.u32 16, %s25
      %p483 = scmp.lt.s32.totalorder %s482, 31
      %s484 = scalar_select %p483, %s482, 31
      %s485 = smul.addr %s484, 4
      %s486 = scalar_lea.vmem %s1, %s485
      %s487 = smul.u32 16, %s25
      %s488 = smul.u32 16, %s25
      %p489 = scmp.lt.s32.totalorder %s488, 31
      %s490 = scalar_select %p489, %s488, 31
      %s491 = smul.addr %s490, 8
      %s492 = scalar_lea.vmem %s2, %s491
      %s493 = smul.u32 16, %s25
      %s494 = smul.u32 16, %s25
      %p495 = scmp.lt.s32.totalorder %s494, 31
      %s496 = scalar_select %p495, %s494, 31
      %s497 = smul.addr %s496, 7
      %s498 = smul.addr %s497, 4
      %s499 = scalar_lea.vmem %s12, %s498
      %s500 = smul.u32 16, %s25
      %s501 = smul.u32 16, %s25
      %p502 = scmp.lt.s32.totalorder %s501, 31
      %s503 = scalar_select %p502, %s501, 31
      %s504 = smul.addr %s503, 8
      %s505 = scalar_lea.vmem %s13, %s504
      %s506 = smul.u32 16, %s25
      %v508 = vld [vmem:[%s480] sm:$0xff]
      %v509 = vld [vmem:[%s480 + $0x8] sm:$0xff]
      %v510 = vld [vmem:[%s480 + $0x10] sm:$0xff]
      %v511 = vld [vmem:[%s480 + $0x18] sm:$0xff]
      %v512 = vld [vmem:[%s480 + $0x20] sm:$0xff]
      %v513 = vld [vmem:[%s480 + $0x28] sm:$0xff]
      %v514 = vld [vmem:[%s480 + $0x30] sm:$0xff]
      %v515 = vld [vmem:[%s480 + $0x38] sm:$0xff]
      %v516 = vld [vmem:[%s480 + $0x40] sm:$0xff]
      %v517 = vld [vmem:[%s480 + $0x48] sm:$0xff]
      %v518 = vld [vmem:[%s480 + $0x50] sm:$0xff]
      %v519 = vld [vmem:[%s480 + $0x58] sm:$0xff]
      %v520 = vld [vmem:[%s480 + $0x60] sm:$0xff]
      %v521 = vld [vmem:[%s480 + $0x68] sm:$0xff]
      %v522 = vld [vmem:[%s480 + $0x70] sm:$0xff]
      %v523 = vld [vmem:[%s480 + $0x78] sm:$0xff]
      %v524 = vld [vmem:[%s480 + $0x80] sm:$0xff]
      %v525 = vld [vmem:[%s480 + $0x88] sm:$0xff]
      %v526 = vld [vmem:[%s480 + $0x90] sm:$0xff]
      %v527 = vld [vmem:[%s480 + $0x98] sm:$0xff]
      %v528 = vld [vmem:[%s480 + $0xa0] sm:$0xff]
      %v529 = vld [vmem:[%s480 + $0xa8] sm:$0xff]
      %v530 = vld [vmem:[%s480 + $0xb0] sm:$0xff]
      %v531 = vld [vmem:[%s480 + $0xb8] sm:$0xff]
      %v532 = vld [vmem:[%s480 + $0xc0] sm:$0xff]
      %v533 = vld [vmem:[%s480 + $0xc8] sm:$0xff]
      %v534 = vld [vmem:[%s480 + $0xd0] sm:$0xff]
      %v535 = vld [vmem:[%s480 + $0xd8] sm:$0xff]
      %v536 = vld [vmem:[%s480 + $0xe0] sm:$0xff]
      %v537 = vld [vmem:[%s480 + $0xe8] sm:$0xff]
      %v538 = vld [vmem:[%s480 + $0xf0] sm:$0xff]
      %v539 = vld [vmem:[%s480 + $0xf8] sm:$0xff]
      %v540 = vld [vmem:[%s480 + $0x100] sm:$0xff]
      %v541 = vld [vmem:[%s480 + $0x108] sm:$0xff]
      %v542 = vld [vmem:[%s480 + $0x110] sm:$0xff]
      %v543 = vld [vmem:[%s480 + $0x118] sm:$0xff]
      %v544 = vld [vmem:[%s480 + $0x120] sm:$0xff]
      %v545 = vld [vmem:[%s480 + $0x128] sm:$0xff]
      %v546 = vld [vmem:[%s480 + $0x130] sm:$0xff]
      %v547 = vld [vmem:[%s480 + $0x138] sm:$0xff]
      %v548 = vld [vmem:[%s480 + $0x140] sm:$0xff]
      %v549 = vld [vmem:[%s480 + $0x148] sm:$0xff]
      %v550 = vld [vmem:[%s480 + $0x150] sm:$0xff]
      %v551 = vld [vmem:[%s480 + $0x158] sm:$0xff]
      %v552 = vld [vmem:[%s480 + $0x160] sm:$0xff]
      %v553 = vld [vmem:[%s480 + $0x168] sm:$0xff]
      %v554 = vld [vmem:[%s480 + $0x170] sm:$0xff]
      %v555 = vld [vmem:[%s480 + $0x178] sm:$0xff]
      %v556 = vld [vmem:[%s480 + $0x180] sm:$0xff]
      %v557 = vld [vmem:[%s480 + $0x188] sm:$0xff]
      %v558 = vld [vmem:[%s480 + $0x190] sm:$0xff]
      %v559 = vld [vmem:[%s480 + $0x198] sm:$0xff]
      %v560 = vld [vmem:[%s480 + $0x1a0] sm:$0xff]
      %v561 = vld [vmem:[%s480 + $0x1a8] sm:$0xff]
      %v562 = vld [vmem:[%s480 + $0x1b0] sm:$0xff]
      %v563 = vld [vmem:[%s480 + $0x1b8] sm:$0xff]
      %v564 = vld [vmem:[%s480 + $0x1c0] sm:$0xff]
      %v565 = vld [vmem:[%s480 + $0x1c8] sm:$0xff]
      %v566 = vld [vmem:[%s480 + $0x1d0] sm:$0xff]
      %v567 = vld [vmem:[%s480 + $0x1d8] sm:$0xff]
      %v568 = vld [vmem:[%s480 + $0x1e0] sm:$0xff]
      %v569 = vld [vmem:[%s480 + $0x1e8] sm:$0xff]
      %v570 = vld [vmem:[%s480 + $0x1f0] sm:$0xff]
      %v571 = vld [vmem:[%s480 + $0x1f8] sm:$0xff]
      %v572 = vld [vmem:[%s480 + $0x200] sm:$0xff]
      %v573 = vld [vmem:[%s480 + $0x208] sm:$0xff]
      %v574 = vld [vmem:[%s480 + $0x210] sm:$0xff]
      %v575 = vld [vmem:[%s480 + $0x218] sm:$0xff]
      %v576 = vld [vmem:[%s480 + $0x220] sm:$0xff]
      %v577 = vld [vmem:[%s480 + $0x228] sm:$0xff]
      %v578 = vld [vmem:[%s480 + $0x230] sm:$0xff]
      %v579 = vld [vmem:[%s480 + $0x238] sm:$0xff]
      %v580 = vld [vmem:[%s480 + $0x240] sm:$0xff]
      %v581 = vld [vmem:[%s480 + $0x248] sm:$0xff]
      %v582 = vld [vmem:[%s480 + $0x250] sm:$0xff]
      %v583 = vld [vmem:[%s480 + $0x258] sm:$0xff]
      %v584 = vld [vmem:[%s480 + $0x260] sm:$0xff]
      %v585 = vld [vmem:[%s480 + $0x268] sm:$0xff]
      %v586 = vld [vmem:[%s480 + $0x270] sm:$0xff]
      %v587 = vld [vmem:[%s480 + $0x278] sm:$0xff]
      %v588 = vld [vmem:[%s480 + $0x280] sm:$0xff]
      %v589 = vld [vmem:[%s480 + $0x288] sm:$0xff]
      %v590 = vld [vmem:[%s480 + $0x290] sm:$0xff]
      %v591 = vld [vmem:[%s480 + $0x298] sm:$0xff]
      %v592 = vld [vmem:[%s480 + $0x2a0] sm:$0xff]
      %v593 = vld [vmem:[%s480 + $0x2a8] sm:$0xff]
      %v594 = vld [vmem:[%s480 + $0x2b0] sm:$0xff]
      %v595 = vld [vmem:[%s480 + $0x2b8] sm:$0xff]
      %v596 = vld [vmem:[%s480 + $0x2c0] sm:$0xff]
      %v597 = vld [vmem:[%s480 + $0x2c8] sm:$0xff]
      %v598 = vld [vmem:[%s480 + $0x2d0] sm:$0xff]
      %v599 = vld [vmem:[%s480 + $0x2d8] sm:$0xff]
      %v600 = vld [vmem:[%s480 + $0x2e0] sm:$0xff]
      %v601 = vld [vmem:[%s480 + $0x2e8] sm:$0xff]
      %v602 = vld [vmem:[%s480 + $0x2f0] sm:$0xff]
      %v603 = vld [vmem:[%s480 + $0x2f8] sm:$0xff]
      %v604 = vld [vmem:[%s480 + $0x300] sm:$0xff]
      %v605 = vld [vmem:[%s480 + $0x308] sm:$0xff]
      %v606 = vld [vmem:[%s480 + $0x310] sm:$0xff]
      %v607 = vld [vmem:[%s480 + $0x318] sm:$0xff]
      %v608 = vld [vmem:[%s480 + $0x320] sm:$0xff]
      %v609 = vld [vmem:[%s480 + $0x328] sm:$0xff]
      %v610 = vld [vmem:[%s480 + $0x330] sm:$0xff]
      %v611 = vld [vmem:[%s480 + $0x338] sm:$0xff]
      %v612 = vld [vmem:[%s480 + $0x340] sm:$0xff]
      %v613 = vld [vmem:[%s480 + $0x348] sm:$0xff]
      %v614 = vld [vmem:[%s480 + $0x350] sm:$0xff]
      %v615 = vld [vmem:[%s480 + $0x358] sm:$0xff]
      %v616 = vld [vmem:[%s480 + $0x360] sm:$0xff]
      %v617 = vld [vmem:[%s480 + $0x368] sm:$0xff]
      %v618 = vld [vmem:[%s480 + $0x370] sm:$0xff]
      %v619 = vld [vmem:[%s480 + $0x378] sm:$0xff]
      %v620 = vpack.c.bf16 %v515, %v508
      %v621 = vpack.c.bf16 %v516, %v509
      %v622 = vpack.c.bf16 %v517, %v510
      %v623 = vpack.c.bf16 %v518, %v511
      %v624 = vpack.c.bf16 %v519, %v512
      %v625 = vpack.c.bf16 %v520, %v513
      %v626 = vpack.c.bf16 %v521, %v514
      %v627 = vpack.c.bf16 %v529, %v522
      %v628 = vpack.c.bf16 %v530, %v523
      %v629 = vpack.c.bf16 %v531, %v524
      %v630 = vpack.c.bf16 %v532, %v525
      %v631 = vpack.c.bf16 %v533, %v526
      %v632 = vpack.c.bf16 %v534, %v527
      %v633 = vpack.c.bf16 %v535, %v528
      %v634 = vpack.c.bf16 %v543, %v536
      %v635 = vpack.c.bf16 %v544, %v537
      %v636 = vpack.c.bf16 %v545, %v538
      %v637 = vpack.c.bf16 %v546, %v539
      %v638 = vpack.c.bf16 %v547, %v540
      %v639 = vpack.c.bf16 %v548, %v541
      %v640 = vpack.c.bf16 %v549, %v542
      %v641 = vpack.c.bf16 %v557, %v550
      %v642 = vpack.c.bf16 %v558, %v551
      %v643 = vpack.c.bf16 %v559, %v552
      %v644 = vpack.c.bf16 %v560, %v553
      %v645 = vpack.c.bf16 %v561, %v554
      %v646 = vpack.c.bf16 %v562, %v555
      %v647 = vpack.c.bf16 %v563, %v556
      %v648 = vpack.c.bf16 %v571, %v564
      %v649 = vpack.c.bf16 %v572, %v565
      %v650 = vpack.c.bf16 %v573, %v566
      %v651 = vpack.c.bf16 %v574, %v567
      %v652 = vpack.c.bf16 %v575, %v568
      %v653 = vpack.c.bf16 %v576, %v569
      %v654 = vpack.c.bf16 %v577, %v570
      %v655 = vpack.c.bf16 %v585, %v578
      %v656 = vpack.c.bf16 %v586, %v579
      %v657 = vpack.c.bf16 %v587, %v580
      %v658 = vpack.c.bf16 %v588, %v581
      %v659 = vpack.c.bf16 %v589, %v582
      %v660 = vpack.c.bf16 %v590, %v583
      %v661 = vpack.c.bf16 %v591, %v584
      %v662 = vpack.c.bf16 %v599, %v592
      %v663 = vpack.c.bf16 %v600, %v593
      %v664 = vpack.c.bf16 %v601, %v594
      %v665 = vpack.c.bf16 %v602, %v595
      %v666 = vpack.c.bf16 %v603, %v596
      %v667 = vpack.c.bf16 %v604, %v597
      %v668 = vpack.c.bf16 %v605, %v598
      %v669 = vpack.c.bf16 %v613, %v606
      %v670 = vpack.c.bf16 %v614, %v607
      %v671 = vpack.c.bf16 %v615, %v608
      %v672 = vpack.c.bf16 %v616, %v609
      %v673 = vpack.c.bf16 %v617, %v610
      %v674 = vpack.c.bf16 %v618, %v611
      %v675 = vpack.c.bf16 %v619, %v612
      %v676 = vld [vmem:[%s486] sm:$0xf]
      %v677 = vld [vmem:[%s486 + $0x4] sm:$0xf]
      %v678 = vld [vmem:[%s486 + $0x8] sm:$0xf]
      %v679 = vld [vmem:[%s486 + $0xc] sm:$0xf]
      %v680 = vld [vmem:[%s486 + $0x10] sm:$0xf]
      %v681 = vld [vmem:[%s486 + $0x14] sm:$0xf]
      %v682 = vld [vmem:[%s486 + $0x18] sm:$0xf]
      %v683 = vld [vmem:[%s486 + $0x1c] sm:$0xf]
      %v684 = vld [vmem:[%s486 + $0x20] sm:$0xf]
      %v685 = vld [vmem:[%s486 + $0x24] sm:$0xf]
      %v686 = vld [vmem:[%s486 + $0x28] sm:$0xf]
      %v687 = vld [vmem:[%s486 + $0x2c] sm:$0xf]
      %v688 = vld [vmem:[%s486 + $0x30] sm:$0xf]
      %v689 = vld [vmem:[%s486 + $0x34] sm:$0xf]
      %v690 = vld [vmem:[%s486 + $0x38] sm:$0xf]
      %v691 = vld [vmem:[%s486 + $0x3c] sm:$0xf]
      %v692 = vld [vmem:[%s492] sm:$0xff]
      %v693 = vld [vmem:[%s492 + $0x8] sm:$0xff]
      %v694 = vld [vmem:[%s492 + $0x10] sm:$0xff]
      %v695 = vld [vmem:[%s492 + $0x18] sm:$0xff]
      %v696 = vld [vmem:[%s492 + $0x20] sm:$0xff]
      %v697 = vld [vmem:[%s492 + $0x28] sm:$0xff]
      %v698 = vld [vmem:[%s492 + $0x30] sm:$0xff]
      %v699 = vld [vmem:[%s492 + $0x38] sm:$0xff]
      %v700 = vld [vmem:[%s492 + $0x40] sm:$0xff]
      %v701 = vld [vmem:[%s492 + $0x48] sm:$0xff]
      %v702 = vld [vmem:[%s492 + $0x50] sm:$0xff]
      %v703 = vld [vmem:[%s492 + $0x58] sm:$0xff]
      %v704 = vld [vmem:[%s492 + $0x60] sm:$0xff]
      %v705 = vld [vmem:[%s492 + $0x68] sm:$0xff]
      %v706 = vld [vmem:[%s492 + $0x70] sm:$0xff]
      %v707 = vld [vmem:[%s492 + $0x78] sm:$0xff]
      %v708 = vld [vmem:[%s4] sm:$0xff]
      %v709 = vld [vmem:[%s4 + $0x8] sm:$0xff]
      %v710 = vld [vmem:[%s4 + $0x10] sm:$0x11]
      %v711 = vld [vmem:[%s4 + $0x18] sm:$0x11]
      %v728 = vunpack.c.l.b16 %v676
      %v729 = vunpack.c.l.b16 %v677
      %v730 = vunpack.c.l.b16 %v678
      %v731 = vunpack.c.l.b16 %v679
      %v732 = vunpack.c.l.b16 %v680
      %v733 = vunpack.c.l.b16 %v681
      %v734 = vunpack.c.l.b16 %v682
      %v735 = vunpack.c.l.b16 %v683
      %v736 = vunpack.c.l.b16 %v684
      %v737 = vunpack.c.l.b16 %v685
      %v738 = vunpack.c.l.b16 %v686
      %v739 = vunpack.c.l.b16 %v687
      %v740 = vunpack.c.l.b16 %v688
      %v741 = vunpack.c.l.b16 %v689
      %v742 = vunpack.c.l.b16 %v690
      %v743 = vunpack.c.l.b16 %v691
      %v744 = vpack.c.b16 %v729, %v728
      %v745 = vpack.c.b16 %v731, %v730
      %v746 = vpack.c.b16 %v733, %v732
      %v747 = vpack.c.b16 %v735, %v734
      %v748 = vpack.c.b16 %v737, %v736
      %v749 = vpack.c.b16 %v739, %v738
      %v750 = vpack.c.b16 %v741, %v740
      %v751 = vpack.c.b16 %v743, %v742
      %v756 = vunpack.c.l.b16 %v708
      %v757 = vunpack.c.h.b16 %v708
      %v758 = vunpack.c.l.b16 %v709
      %v759 = vunpack.c.h.b16 %v709
      %v760 = vunpack.c.l.b16 %v710
      %v761 = vunpack.c.h.b16 %v710
      %v762 = vunpack.c.l.b16 %v711
      %v763 = vunpack.c.h.b16 %v711
      %v764 = vpack.c.b16 %v760, %v756
      %v765 = vpack.c.b16 %v761, %v757
      %v766 = vpack.c.b16 %v762, %v758
      %v767 = vpack.c.b16 %v763, %v759
      %vm768 = vcmask 80896
      %v770 = vsel %vm768, %v744, 0
      %v773 = vsel %vm768, %v745, 0
      %v776 = vsel %vm768, %v746, 0
      %v779 = vsel %vm768, %v747, 0
      %v782 = vsel %vm768, %v748, 0
      %v785 = vsel %vm768, %v749, 0
      %v788 = vsel %vm768, %v750, 0
      %v791 = vsel %vm768, %v751, 0
      %vm793 = vcmask 1044480
      %v795 = vsel %vm793, %v764, 0
      %v798 = vsel %vm793, %v765, 0
      %v801 = vsel %vm793, %v766, 0
      %v804 = vsel %vm793, %v767, 0
      %806 = vmatpush.bf16.msra.mxu0 0
      %807 = vmatpush.bf16.msra.mxu0 0
      %808 = vmatpush.bf16.msra.mxu0 0
      %809 = vmatpush.bf16.msra.mxu0 0
      %810 = vmatpush.bf16.msra.mxu0 0
      %811 = vmatpush.bf16.msra.mxu0 0
      %812 = vmatpush.bf16.msra.mxu0 0
      %813 = vmatpush.bf16.msra.mxu0 %v795
      %814 = vmatmul.bf16.gmra.mxu0 %v770
      %v815 = vpop.f32.mrf.mxu0
      %v816 = vadd.f32 0.0, %v815
      %v817 = vpop.f32.mrf.mxu0
      %v818 = vadd.f32 0.0, %v817
      %819 = vmatmul.bf16.gmra.mxu0 %v773
      %v820 = vpop.f32.mrf.mxu0
      %v821 = vadd.f32 0.0, %v820
      %v822 = vpop.f32.mrf.mxu0
      %v823 = vadd.f32 0.0, %v822
      %824 = vmatmul.bf16.gmra.mxu0 %v776
      %v825 = vpop.f32.mrf.mxu0
      %v826 = vadd.f32 0.0, %v825
      %v827 = vpop.f32.mrf.mxu0
      %v828 = vadd.f32 0.0, %v827
      %829 = vmatmul.bf16.gmra.mxu0 %v779
      %v830 = vpop.f32.mrf.mxu0
      %v831 = vadd.f32 0.0, %v830
      %v832 = vpop.f32.mrf.mxu0
      %v833 = vadd.f32 0.0, %v832
      %834 = vmatmul.bf16.gmra.mxu0 %v782
      %v835 = vpop.f32.mrf.mxu0
      %v836 = vadd.f32 0.0, %v835
      %v837 = vpop.f32.mrf.mxu0
      %v838 = vadd.f32 0.0, %v837
      %839 = vmatmul.bf16.gmra.mxu0 %v785
      %v840 = vpop.f32.mrf.mxu0
      %v841 = vadd.f32 0.0, %v840
      %v842 = vpop.f32.mrf.mxu0
      %v843 = vadd.f32 0.0, %v842
      %844 = vmatmul.bf16.gmra.mxu0 %v788
      %v845 = vpop.f32.mrf.mxu0
      %v846 = vadd.f32 0.0, %v845
      %v847 = vpop.f32.mrf.mxu0
      %v848 = vadd.f32 0.0, %v847
      %849 = vmatmul.bf16.gmra.mxu0 %v791
      %v850 = vpop.f32.mrf.mxu0
      %v851 = vadd.f32 0.0, %v850
      %v852 = vpop.f32.mrf.mxu0
      %v853 = vadd.f32 0.0, %v852
      %854 = vdwg.mxu0
      %855 = vmatpush.bf16.msra.mxu0 0
      %856 = vmatpush.bf16.msra.mxu0 0
      %857 = vmatpush.bf16.msra.mxu0 0
      %858 = vmatpush.bf16.msra.mxu0 0
      %859 = vmatpush.bf16.msra.mxu0 0
      %860 = vmatpush.bf16.msra.mxu0 0
      %861 = vmatpush.bf16.msra.mxu0 0
      %862 = vmatpush.bf16.msra.mxu0 %v798
      %863 = vmatmul.bf16.gmra.mxu0 %v770
      %v864 = vpop.f32.mrf.mxu0
      %v865 = vadd.f32 0.0, %v864
      %v866 = vpop.f32.mrf.mxu0
      %v867 = vadd.f32 0.0, %v866
      %868 = vmatmul.bf16.gmra.mxu0 %v773
      %v869 = vpop.f32.mrf.mxu0
      %v870 = vadd.f32 0.0, %v869
      %v871 = vpop.f32.mrf.mxu0
      %v872 = vadd.f32 0.0, %v871
      %873 = vmatmul.bf16.gmra.mxu0 %v776
      %v874 = vpop.f32.mrf.mxu0
      %v875 = vadd.f32 0.0, %v874
      %v876 = vpop.f32.mrf.mxu0
      %v877 = vadd.f32 0.0, %v876
      %878 = vmatmul.bf16.gmra.mxu0 %v779
      %v879 = vpop.f32.mrf.mxu0
      %v880 = vadd.f32 0.0, %v879
      %v881 = vpop.f32.mrf.mxu0
      %v882 = vadd.f32 0.0, %v881
      %883 = vmatmul.bf16.gmra.mxu0 %v782
      %v884 = vpop.f32.mrf.mxu0
      %v885 = vadd.f32 0.0, %v884
      %v886 = vpop.f32.mrf.mxu0
      %v887 = vadd.f32 0.0, %v886
      %888 = vmatmul.bf16.gmra.mxu0 %v785
      %v889 = vpop.f32.mrf.mxu0
      %v890 = vadd.f32 0.0, %v889
      %v891 = vpop.f32.mrf.mxu0
      %v892 = vadd.f32 0.0, %v891
      %893 = vmatmul.bf16.gmra.mxu0 %v788
      %v894 = vpop.f32.mrf.mxu0
      %v895 = vadd.f32 0.0, %v894
      %v896 = vpop.f32.mrf.mxu0
      %v897 = vadd.f32 0.0, %v896
      %898 = vmatmul.bf16.gmra.mxu0 %v791
      %v899 = vpop.f32.mrf.mxu0
      %v900 = vadd.f32 0.0, %v899
      %v901 = vpop.f32.mrf.mxu0
      %v902 = vadd.f32 0.0, %v901
      %903 = vdwg.mxu0
      %904 = vmatpush.bf16.msra.mxu0 0
      %905 = vmatpush.bf16.msra.mxu0 0
      %906 = vmatpush.bf16.msra.mxu0 0
      %907 = vmatpush.bf16.msra.mxu0 0
      %908 = vmatpush.bf16.msra.mxu0 0
      %909 = vmatpush.bf16.msra.mxu0 0
      %910 = vmatpush.bf16.msra.mxu0 0
      %911 = vmatpush.bf16.msra.mxu0 %v801
      %912 = vmatmul.bf16.gmra.mxu0 %v770
      %v913 = vpop.f32.mrf.mxu0
      %v914 = vadd.f32 0.0, %v913
      %v915 = vpop.f32.mrf.mxu0
      %v916 = vadd.f32 0.0, %v915
      %917 = vmatmul.bf16.gmra.mxu0 %v773
      %v918 = vpop.f32.mrf.mxu0
      %v919 = vadd.f32 0.0, %v918
      %v920 = vpop.f32.mrf.mxu0
      %v921 = vadd.f32 0.0, %v920
      %922 = vmatmul.bf16.gmra.mxu0 %v776
      %v923 = vpop.f32.mrf.mxu0
      %v924 = vadd.f32 0.0, %v923
      %v925 = vpop.f32.mrf.mxu0
      %v926 = vadd.f32 0.0, %v925
      %927 = vmatmul.bf16.gmra.mxu0 %v779
      %v928 = vpop.f32.mrf.mxu0
      %v929 = vadd.f32 0.0, %v928
      %v930 = vpop.f32.mrf.mxu0
      %v931 = vadd.f32 0.0, %v930
      %932 = vmatmul.bf16.gmra.mxu0 %v782
      %v933 = vpop.f32.mrf.mxu0
      %v934 = vadd.f32 0.0, %v933
      %v935 = vpop.f32.mrf.mxu0
      %v936 = vadd.f32 0.0, %v935
      %937 = vmatmul.bf16.gmra.mxu0 %v785
      %v938 = vpop.f32.mrf.mxu0
      %v939 = vadd.f32 0.0, %v938
      %v940 = vpop.f32.mrf.mxu0
      %v941 = vadd.f32 0.0, %v940
      %942 = vmatmul.bf16.gmra.mxu0 %v788
      %v943 = vpop.f32.mrf.mxu0
      %v944 = vadd.f32 0.0, %v943
      %v945 = vpop.f32.mrf.mxu0
      %v946 = vadd.f32 0.0, %v945
      %947 = vmatmul.bf16.gmra.mxu0 %v791
      %v948 = vpop.f32.mrf.mxu0
      %v949 = vadd.f32 0.0, %v948
      %v950 = vpop.f32.mrf.mxu0
      %v951 = vadd.f32 0.0, %v950
      %952 = vdwg.mxu0
      %953 = vmatpush.bf16.msra.mxu0 0
      %954 = vmatpush.bf16.msra.mxu0 0
      %955 = vmatpush.bf16.msra.mxu0 0
      %956 = vmatpush.bf16.msra.mxu0 0
      %957 = vmatpush.bf16.msra.mxu0 0
      %958 = vmatpush.bf16.msra.mxu0 0
      %959 = vmatpush.bf16.msra.mxu0 0
      %960 = vmatpush.bf16.msra.mxu0 %v804
      %961 = vmatmul.bf16.gmra.mxu0 %v770
      %v962 = vpop.f32.mrf.mxu0
      %v963 = vadd.f32 0.0, %v962
      %v964 = vpop.f32.mrf.mxu0
      %v965 = vadd.f32 0.0, %v964
      %966 = vmatmul.bf16.gmra.mxu0 %v773
      %v967 = vpop.f32.mrf.mxu0
      %v968 = vadd.f32 0.0, %v967
      %v969 = vpop.f32.mrf.mxu0
      %v970 = vadd.f32 0.0, %v969
      %971 = vmatmul.bf16.gmra.mxu0 %v776
      %v972 = vpop.f32.mrf.mxu0
      %v973 = vadd.f32 0.0, %v972
      %v974 = vpop.f32.mrf.mxu0
      %v975 = vadd.f32 0.0, %v974
      %976 = vmatmul.bf16.gmra.mxu0 %v779
      %v977 = vpop.f32.mrf.mxu0
      %v978 = vadd.f32 0.0, %v977
      %v979 = vpop.f32.mrf.mxu0
      %v980 = vadd.f32 0.0, %v979
      %981 = vmatmul.bf16.gmra.mxu0 %v782
      %v982 = vpop.f32.mrf.mxu0
      %v983 = vadd.f32 0.0, %v982
      %v984 = vpop.f32.mrf.mxu0
      %v985 = vadd.f32 0.0, %v984
      %986 = vmatmul.bf16.gmra.mxu0 %v785
      %v987 = vpop.f32.mrf.mxu0
      %v988 = vadd.f32 0.0, %v987
      %v989 = vpop.f32.mrf.mxu0
      %v990 = vadd.f32 0.0, %v989
      %991 = vmatmul.bf16.gmra.mxu0 %v788
      %v992 = vpop.f32.mrf.mxu0
      %v993 = vadd.f32 0.0, %v992
      %v994 = vpop.f32.mrf.mxu0
      %v995 = vadd.f32 0.0, %v994
      %996 = vmatmul.bf16.gmra.mxu0 %v791
      %v997 = vpop.f32.mrf.mxu0
      %v998 = vadd.f32 0.0, %v997
      %v999 = vpop.f32.mrf.mxu0
      %v1000 = vadd.f32 0.0, %v999
      %1001 = vdwg.mxu0
      %v1002 = vld [vmem:[%s3] sm:$0xff]
      %v1003 = vld [vmem:[%s3 + $0x8] sm:$0xff]
      %v1004 = vld [vmem:[%s3 + $0x10] sm:$0xff]
      %v1005 = vld [vmem:[%s3 + $0x18] sm:$0xff]
      %v1006 = vld [vmem:[%s3 + $0x20] sm:$0xff]
      %v1007 = vld [vmem:[%s3 + $0x28] sm:$0xff]
      %v1008 = vld [vmem:[%s3 + $0x30] sm:$0xff]
      %v1009 = vld [vmem:[%s3 + $0x38] sm:$0xff]
      %v1010 = vld [vmem:[%s3 + $0x40] sm:$0xff]
      %v1011 = vld [vmem:[%s3 + $0x48] sm:$0xff]
      %v1012 = vld [vmem:[%s3 + $0x50] sm:$0xff]
      %v1013 = vld [vmem:[%s3 + $0x58] sm:$0xff]
      %v1014 = vld [vmem:[%s3 + $0x60] sm:$0xff]
      %v1015 = vld [vmem:[%s3 + $0x68] sm:$0xff]
      %v1016 = vld [vmem:[%s3 + $0x70] sm:$0xff]
      %v1017 = vld [vmem:[%s3 + $0x78] sm:$0xff]
      %v1018 = vld [vmem:[%s3 + $0x80] sm:$0xff]
      %v1019 = vld [vmem:[%s3 + $0x88] sm:$0xff]
      %v1020 = vld [vmem:[%s3 + $0x90] sm:$0xff]
      %v1021 = vld [vmem:[%s3 + $0x98] sm:$0xff]
      %v1022 = vld [vmem:[%s3 + $0xa0] sm:$0xff]
      %v1023 = vld [vmem:[%s3 + $0xa8] sm:$0xff]
      %v1024 = vld [vmem:[%s3 + $0xb0] sm:$0xff]
      %v1025 = vld [vmem:[%s3 + $0xb8] sm:$0xff]
      %v1026 = vld [vmem:[%s3 + $0xc0] sm:$0xff]
      %v1027 = vld [vmem:[%s3 + $0xc8] sm:$0xff]
      %v1028 = vld [vmem:[%s3 + $0xd0] sm:$0xff]
      %v1029 = vld [vmem:[%s3 + $0xd8] sm:$0xff]
      %v1030 = vld [vmem:[%s3 + $0xe0] sm:$0xff]
      %v1031 = vld [vmem:[%s3 + $0xe8] sm:$0xff]
      %v1032 = vld [vmem:[%s3 + $0xf0] sm:$0xff]
      %v1033 = vld [vmem:[%s3 + $0xf8] sm:$0xff]
      %v1034 = vld [vmem:[%s3 + $0x100] sm:$0xff]
      %v1035 = vld [vmem:[%s3 + $0x108] sm:$0xff]
      %v1036 = vld [vmem:[%s3 + $0x110] sm:$0xff]
      %v1037 = vld [vmem:[%s3 + $0x118] sm:$0xff]
      %v1038 = vld [vmem:[%s3 + $0x120] sm:$0xff]
      %v1039 = vld [vmem:[%s3 + $0x128] sm:$0xff]
      %v1040 = vld [vmem:[%s3 + $0x130] sm:$0xff]
      %v1041 = vld [vmem:[%s3 + $0x138] sm:$0xff]
      %v1042 = vld [vmem:[%s3 + $0x140] sm:$0xff]
      %v1043 = vld [vmem:[%s3 + $0x148] sm:$0xff]
      %v1044 = vld [vmem:[%s3 + $0x150] sm:$0xff]
      %v1045 = vld [vmem:[%s3 + $0x158] sm:$0xff]
      %v1046 = vld [vmem:[%s3 + $0x160] sm:$0xff]
      %v1047 = vld [vmem:[%s3 + $0x168] sm:$0xff]
      %v1048 = vld [vmem:[%s3 + $0x170] sm:$0xff]
      %v1049 = vld [vmem:[%s3 + $0x178] sm:$0xff]
      %v1050 = vld [vmem:[%s3 + $0x180] sm:$0xff]
      %v1051 = vld [vmem:[%s3 + $0x188] sm:$0xff]
      %v1052 = vld [vmem:[%s3 + $0x190] sm:$0xff]
      %v1053 = vld [vmem:[%s3 + $0x198] sm:$0xff]
      %v1054 = vld [vmem:[%s3 + $0x1a0] sm:$0xff]
      %v1055 = vld [vmem:[%s3 + $0x1a8] sm:$0xff]
      %v1056 = vld [vmem:[%s3 + $0x1b0] sm:$0xff]
      %v1057 = vld [vmem:[%s3 + $0x1b8] sm:$0xff]
      %v1058 = vld [vmem:[%s3 + $0x1c0] sm:$0xff]
      %v1059 = vld [vmem:[%s3 + $0x1c8] sm:$0xff]
      %v1060 = vld [vmem:[%s3 + $0x1d0] sm:$0xff]
      %v1061 = vld [vmem:[%s3 + $0x1d8] sm:$0xff]
      %v1062 = vld [vmem:[%s3 + $0x1e0] sm:$0xff]
      %v1063 = vld [vmem:[%s3 + $0x1e8] sm:$0xff]
      %v1064 = vld [vmem:[%s3 + $0x1f0] sm:$0xff]
      %v1065 = vld [vmem:[%s3 + $0x1f8] sm:$0xff]
      %v1066 = vld [vmem:[%s3 + $0x200] sm:$0xff]
      %v1067 = vld [vmem:[%s3 + $0x208] sm:$0xff]
      %v1068 = vld [vmem:[%s3 + $0x210] sm:$0xff]
      %v1069 = vld [vmem:[%s3 + $0x218] sm:$0xff]
      %v1070 = vld [vmem:[%s3 + $0x220] sm:$0xff]
      %v1071 = vld [vmem:[%s3 + $0x228] sm:$0xff]
      %v1072 = vld [vmem:[%s3 + $0x230] sm:$0xff]
      %v1073 = vld [vmem:[%s3 + $0x238] sm:$0xff]
      %v1074 = vld [vmem:[%s3 + $0x240] sm:$0xff]
      %v1075 = vld [vmem:[%s3 + $0x248] sm:$0xff]
      %v1076 = vld [vmem:[%s3 + $0x250] sm:$0xff]
      %v1077 = vld [vmem:[%s3 + $0x258] sm:$0xff]
      %v1078 = vld [vmem:[%s3 + $0x260] sm:$0xff]
      %v1079 = vld [vmem:[%s3 + $0x268] sm:$0xff]
      %v1080 = vld [vmem:[%s3 + $0x270] sm:$0xff]
      %v1081 = vld [vmem:[%s3 + $0x278] sm:$0xff]
      %v1082 = vld [vmem:[%s3 + $0x280] sm:$0xff]
      %v1083 = vld [vmem:[%s3 + $0x288] sm:$0xff]
      %v1084 = vld [vmem:[%s3 + $0x290] sm:$0xff]
      %v1085 = vld [vmem:[%s3 + $0x298] sm:$0xff]
      %v1086 = vld [vmem:[%s3 + $0x2a0] sm:$0xff]
      %v1087 = vld [vmem:[%s3 + $0x2a8] sm:$0xff]
      %v1088 = vld [vmem:[%s3 + $0x2b0] sm:$0xff]
      %v1089 = vld [vmem:[%s3 + $0x2b8] sm:$0xff]
      %v1090 = vld [vmem:[%s3 + $0x2c0] sm:$0xff]
      %v1091 = vld [vmem:[%s3 + $0x2c8] sm:$0xff]
      %v1092 = vld [vmem:[%s3 + $0x2d0] sm:$0xff]
      %v1093 = vld [vmem:[%s3 + $0x2d8] sm:$0xff]
      %v1094 = vld [vmem:[%s3 + $0x2e0] sm:$0xff]
      %v1095 = vld [vmem:[%s3 + $0x2e8] sm:$0xff]
      %v1096 = vld [vmem:[%s3 + $0x2f0] sm:$0xff]
      %v1097 = vld [vmem:[%s3 + $0x2f8] sm:$0xff]
      %v1098 = vld [vmem:[%s3 + $0x300] sm:$0xff]
      %v1099 = vld [vmem:[%s3 + $0x308] sm:$0xff]
      %v1198 = vunpack.c.l.b16 %v1002
      %v1199 = vunpack.c.h.b16 %v1002
      %v1200 = vunpack.c.l.b16 %v1003
      %v1201 = vunpack.c.h.b16 %v1003
      %v1202 = vunpack.c.l.b16 %v1004
      %v1203 = vunpack.c.h.b16 %v1004
      %v1204 = vunpack.c.l.b16 %v1005
      %v1205 = vunpack.c.h.b16 %v1005
      %v1206 = vunpack.c.l.b16 %v1006
      %v1207 = vunpack.c.h.b16 %v1006
      %v1208 = vunpack.c.l.b16 %v1007
      %v1209 = vunpack.c.h.b16 %v1007
      %v1210 = vunpack.c.l.b16 %v1008
      %v1211 = vunpack.c.h.b16 %v1008
      %v1212 = vunpack.c.l.b16 %v1009
      %v1213 = vunpack.c.h.b16 %v1009
      %v1214 = vunpack.c.l.b16 %v1010
      %v1215 = vunpack.c.h.b16 %v1010
      %v1216 = vunpack.c.l.b16 %v1011
      %v1217 = vunpack.c.h.b16 %v1011
      %v1218 = vunpack.c.l.b16 %v1012
      %v1219 = vunpack.c.h.b16 %v1012
      %v1220 = vunpack.c.l.b16 %v1013
      %v1221 = vunpack.c.h.b16 %v1013
      %v1222 = vunpack.c.l.b16 %v1014
      %v1223 = vunpack.c.h.b16 %v1014
      %v1224 = vunpack.c.l.b16 %v1015
      %v1225 = vunpack.c.h.b16 %v1015
      %v1226 = vunpack.c.l.b16 %v1016
      %v1227 = vunpack.c.h.b16 %v1016
      %v1228 = vunpack.c.l.b16 %v1017
      %v1229 = vunpack.c.h.b16 %v1017
      %v1230 = vunpack.c.l.b16 %v1018
      %v1231 = vunpack.c.h.b16 %v1018
      %v1232 = vunpack.c.l.b16 %v1019
      %v1233 = vunpack.c.h.b16 %v1019
      %v1234 = vunpack.c.l.b16 %v1020
      %v1235 = vunpack.c.h.b16 %v1020
      %v1236 = vunpack.c.l.b16 %v1021
      %v1237 = vunpack.c.h.b16 %v1021
      %v1238 = vunpack.c.l.b16 %v1022
      %v1239 = vunpack.c.h.b16 %v1022
      %v1240 = vunpack.c.l.b16 %v1023
      %v1241 = vunpack.c.h.b16 %v1023
      %v1242 = vunpack.c.l.b16 %v1024
      %v1243 = vunpack.c.h.b16 %v1024
      %v1244 = vunpack.c.l.b16 %v1025
      %v1245 = vunpack.c.h.b16 %v1025
      %v1246 = vunpack.c.l.b16 %v1026
      %v1247 = vunpack.c.h.b16 %v1026
      %v1248 = vunpack.c.l.b16 %v1027
      %v1249 = vunpack.c.h.b16 %v1027
      %v1250 = vunpack.c.l.b16 %v1028
      %v1251 = vunpack.c.h.b16 %v1028
      %v1252 = vunpack.c.l.b16 %v1029
      %v1253 = vunpack.c.h.b16 %v1029
      %v1254 = vunpack.c.l.b16 %v1030
      %v1255 = vunpack.c.h.b16 %v1030
      %v1256 = vunpack.c.l.b16 %v1031
      %v1257 = vunpack.c.h.b16 %v1031
      %v1258 = vunpack.c.l.b16 %v1032
      %v1259 = vunpack.c.h.b16 %v1032
      %v1260 = vunpack.c.l.b16 %v1033
      %v1261 = vunpack.c.h.b16 %v1033
      %v1262 = vunpack.c.l.b16 %v1034
      %v1263 = vunpack.c.h.b16 %v1034
      %v1264 = vunpack.c.l.b16 %v1035
      %v1265 = vunpack.c.h.b16 %v1035
      %v1266 = vunpack.c.l.b16 %v1036
      %v1267 = vunpack.c.h.b16 %v1036
      %v1268 = vunpack.c.l.b16 %v1037
      %v1269 = vunpack.c.h.b16 %v1037
      %v1270 = vunpack.c.l.b16 %v1038
      %v1271 = vunpack.c.h.b16 %v1038
      %v1272 = vunpack.c.l.b16 %v1039
      %v1273 = vunpack.c.h.b16 %v1039
      %v1274 = vunpack.c.l.b16 %v1040
      %v1275 = vunpack.c.h.b16 %v1040
      %v1276 = vunpack.c.l.b16 %v1041
      %v1277 = vunpack.c.h.b16 %v1041
      %v1278 = vunpack.c.l.b16 %v1042
      %v1279 = vunpack.c.h.b16 %v1042
      %v1280 = vunpack.c.l.b16 %v1043
      %v1281 = vunpack.c.h.b16 %v1043
      %v1282 = vunpack.c.l.b16 %v1044
      %v1283 = vunpack.c.h.b16 %v1044
      %v1284 = vunpack.c.l.b16 %v1045
      %v1285 = vunpack.c.h.b16 %v1045
      %v1286 = vunpack.c.l.b16 %v1046
      %v1287 = vunpack.c.h.b16 %v1046
      %v1288 = vunpack.c.l.b16 %v1047
      %v1289 = vunpack.c.h.b16 %v1047
      %v1290 = vunpack.c.l.b16 %v1048
      %v1291 = vunpack.c.h.b16 %v1048
      %v1292 = vunpack.c.l.b16 %v1049
      %v1293 = vunpack.c.h.b16 %v1049
      %v1294 = vunpack.c.l.b16 %v1050
      %v1295 = vunpack.c.h.b16 %v1050
      %v1296 = vunpack.c.l.b16 %v1051
      %v1297 = vunpack.c.h.b16 %v1051
      %v1298 = vunpack.c.l.b16 %v1052
      %v1299 = vunpack.c.h.b16 %v1052
      %v1300 = vunpack.c.l.b16 %v1053
      %v1301 = vunpack.c.h.b16 %v1053
      %v1302 = vunpack.c.l.b16 %v1054
      %v1303 = vunpack.c.h.b16 %v1054
      %v1304 = vunpack.c.l.b16 %v1055
      %v1305 = vunpack.c.h.b16 %v1055
      %v1306 = vunpack.c.l.b16 %v1056
      %v1307 = vunpack.c.h.b16 %v1056
      %v1308 = vunpack.c.l.b16 %v1057
      %v1309 = vunpack.c.h.b16 %v1057
      %v1310 = vunpack.c.l.b16 %v1058
      %v1311 = vunpack.c.h.b16 %v1058
      %v1312 = vunpack.c.l.b16 %v1059
      %v1313 = vunpack.c.h.b16 %v1059
      %v1314 = vunpack.c.l.b16 %v1060
      %v1315 = vunpack.c.h.b16 %v1060
      %v1316 = vunpack.c.l.b16 %v1061
      %v1317 = vunpack.c.h.b16 %v1061
      %v1318 = vunpack.c.l.b16 %v1062
      %v1319 = vunpack.c.h.b16 %v1062
      %v1320 = vunpack.c.l.b16 %v1063
      %v1321 = vunpack.c.h.b16 %v1063
      %v1322 = vunpack.c.l.b16 %v1064
      %v1323 = vunpack.c.h.b16 %v1064
      %v1324 = vunpack.c.l.b16 %v1065
      %v1325 = vunpack.c.h.b16 %v1065
      %v1326 = vunpack.c.l.b16 %v1066
      %v1327 = vunpack.c.h.b16 %v1066
      %v1328 = vunpack.c.l.b16 %v1067
      %v1329 = vunpack.c.h.b16 %v1067
      %v1330 = vunpack.c.l.b16 %v1068
      %v1331 = vunpack.c.h.b16 %v1068
      %v1332 = vunpack.c.l.b16 %v1069
      %v1333 = vunpack.c.h.b16 %v1069
      %v1334 = vunpack.c.l.b16 %v1070
      %v1335 = vunpack.c.h.b16 %v1070
      %v1336 = vunpack.c.l.b16 %v1071
      %v1337 = vunpack.c.h.b16 %v1071
      %v1338 = vunpack.c.l.b16 %v1072
      %v1339 = vunpack.c.h.b16 %v1072
      %v1340 = vunpack.c.l.b16 %v1073
      %v1341 = vunpack.c.h.b16 %v1073
      %v1342 = vunpack.c.l.b16 %v1074
      %v1343 = vunpack.c.h.b16 %v1074
      %v1344 = vunpack.c.l.b16 %v1075
      %v1345 = vunpack.c.h.b16 %v1075
      %v1346 = vunpack.c.l.b16 %v1076
      %v1347 = vunpack.c.h.b16 %v1076
      %v1348 = vunpack.c.l.b16 %v1077
      %v1349 = vunpack.c.h.b16 %v1077
      %v1350 = vunpack.c.l.b16 %v1078
      %v1351 = vunpack.c.h.b16 %v1078
      %v1352 = vunpack.c.l.b16 %v1079
      %v1353 = vunpack.c.h.b16 %v1079
      %v1354 = vunpack.c.l.b16 %v1080
      %v1355 = vunpack.c.h.b16 %v1080
      %v1356 = vunpack.c.l.b16 %v1081
      %v1357 = vunpack.c.h.b16 %v1081
      %v1358 = vunpack.c.l.b16 %v1082
      %v1359 = vunpack.c.h.b16 %v1082
      %v1360 = vunpack.c.l.b16 %v1083
      %v1361 = vunpack.c.h.b16 %v1083
      %v1362 = vunpack.c.l.b16 %v1084
      %v1363 = vunpack.c.h.b16 %v1084
      %v1364 = vunpack.c.l.b16 %v1085
      %v1365 = vunpack.c.h.b16 %v1085
      %v1366 = vunpack.c.l.b16 %v1086
      %v1367 = vunpack.c.h.b16 %v1086
      %v1368 = vunpack.c.l.b16 %v1087
      %v1369 = vunpack.c.h.b16 %v1087
      %v1370 = vunpack.c.l.b16 %v1088
      %v1371 = vunpack.c.h.b16 %v1088
      %v1372 = vunpack.c.l.b16 %v1089
      %v1373 = vunpack.c.h.b16 %v1089
      %v1374 = vunpack.c.l.b16 %v1090
      %v1375 = vunpack.c.h.b16 %v1090
      %v1376 = vunpack.c.l.b16 %v1091
      %v1377 = vunpack.c.h.b16 %v1091
      %v1378 = vunpack.c.l.b16 %v1092
      %v1379 = vunpack.c.h.b16 %v1092
      %v1380 = vunpack.c.l.b16 %v1093
      %v1381 = vunpack.c.h.b16 %v1093
      %v1382 = vunpack.c.l.b16 %v1094
      %v1383 = vunpack.c.h.b16 %v1094
      %v1384 = vunpack.c.l.b16 %v1095
      %v1385 = vunpack.c.h.b16 %v1095
      %v1386 = vunpack.c.l.b16 %v1096
      %v1387 = vunpack.c.h.b16 %v1096
      %v1388 = vunpack.c.l.b16 %v1097
      %v1389 = vunpack.c.h.b16 %v1097
      %v1390 = vunpack.c.l.b16 %v1098
      %v1391 = vunpack.c.h.b16 %v1098
      %v1392 = vunpack.c.l.b16 %v1099
      %v1393 = vunpack.c.h.b16 %v1099
      %v1394 = vpack.c.b16 %v1200, %v1198
      %v1395 = vpack.c.b16 %v1201, %v1199
      %v1396 = vpack.c.b16 %v1204, %v1202
      %v1397 = vpack.c.b16 %v1205, %v1203
      %v1398 = vpack.c.b16 %v1208, %v1206
      %v1399 = vpack.c.b16 %v1209, %v1207
      %v1400 = vpack.c.b16 %v1212, %v1210
      %v1401 = vpack.c.b16 %v1213, %v1211
      %v1402 = vpack.c.b16 %v1216, %v1214
      %v1403 = vpack.c.b16 %v1217, %v1215
      %v1404 = vpack.c.b16 %v1220, %v1218
      %v1405 = vpack.c.b16 %v1221, %v1219
      %v1406 = vpack.c.b16 %v1224, %v1222
      %v1407 = vpack.c.b16 %v1225, %v1223
      %v1408 = vpack.c.b16 %v1228, %v1226
      %v1409 = vpack.c.b16 %v1229, %v1227
      %v1410 = vpack.c.b16 %v1232, %v1230
      %v1411 = vpack.c.b16 %v1233, %v1231
      %v1412 = vpack.c.b16 %v1236, %v1234
      %v1413 = vpack.c.b16 %v1237, %v1235
      %v1414 = vpack.c.b16 %v1240, %v1238
      %v1415 = vpack.c.b16 %v1241, %v1239
      %v1416 = vpack.c.b16 %v1244, %v1242
      %v1417 = vpack.c.b16 %v1245, %v1243
      %v1418 = vpack.c.b16 %v1248, %v1246
      %v1419 = vpack.c.b16 %v1249, %v1247
      %v1420 = vpack.c.b16 %v1252, %v1250
      %v1421 = vpack.c.b16 %v1253, %v1251
      %v1422 = vpack.c.b16 %v1256, %v1254
      %v1423 = vpack.c.b16 %v1257, %v1255
      %v1424 = vpack.c.b16 %v1260, %v1258
      %v1425 = vpack.c.b16 %v1261, %v1259
      %v1426 = vpack.c.b16 %v1264, %v1262
      %v1427 = vpack.c.b16 %v1265, %v1263
      %v1428 = vpack.c.b16 %v1268, %v1266
      %v1429 = vpack.c.b16 %v1269, %v1267
      %v1430 = vpack.c.b16 %v1272, %v1270
      %v1431 = vpack.c.b16 %v1273, %v1271
      %v1432 = vpack.c.b16 %v1276, %v1274
      %v1433 = vpack.c.b16 %v1277, %v1275
      %v1434 = vpack.c.b16 %v1280, %v1278
      %v1435 = vpack.c.b16 %v1281, %v1279
      %v1436 = vpack.c.b16 %v1284, %v1282
      %v1437 = vpack.c.b16 %v1285, %v1283
      %v1438 = vpack.c.b16 %v1288, %v1286
      %v1439 = vpack.c.b16 %v1289, %v1287
      %v1440 = vpack.c.b16 %v1292, %v1290
      %v1441 = vpack.c.b16 %v1293, %v1291
      %v1442 = vpack.c.b16 %v1296, %v1294
      %v1443 = vpack.c.b16 %v1297, %v1295
      %v1444 = vpack.c.b16 %v1300, %v1298
      %v1445 = vpack.c.b16 %v1301, %v1299
      %v1446 = vpack.c.b16 %v1304, %v1302
      %v1447 = vpack.c.b16 %v1305, %v1303
      %v1448 = vpack.c.b16 %v1308, %v1306
      %v1449 = vpack.c.b16 %v1309, %v1307
      %v1450 = vpack.c.b16 %v1312, %v1310
      %v1451 = vpack.c.b16 %v1313, %v1311
      %v1452 = vpack.c.b16 %v1316, %v1314
      %v1453 = vpack.c.b16 %v1317, %v1315
      %v1454 = vpack.c.b16 %v1320, %v1318
      %v1455 = vpack.c.b16 %v1321, %v1319
      %v1456 = vpack.c.b16 %v1324, %v1322
      %v1457 = vpack.c.b16 %v1325, %v1323
      %v1458 = vpack.c.b16 %v1328, %v1326
      %v1459 = vpack.c.b16 %v1329, %v1327
      %v1460 = vpack.c.b16 %v1332, %v1330
      %v1461 = vpack.c.b16 %v1333, %v1331
      %v1462 = vpack.c.b16 %v1336, %v1334
      %v1463 = vpack.c.b16 %v1337, %v1335
      %v1464 = vpack.c.b16 %v1340, %v1338
      %v1465 = vpack.c.b16 %v1341, %v1339
      %v1466 = vpack.c.b16 %v1344, %v1342
      %v1467 = vpack.c.b16 %v1345, %v1343
      %v1468 = vpack.c.b16 %v1348, %v1346
      %v1469 = vpack.c.b16 %v1349, %v1347
      %v1470 = vpack.c.b16 %v1352, %v1350
      %v1471 = vpack.c.b16 %v1353, %v1351
      %v1472 = vpack.c.b16 %v1356, %v1354
      %v1473 = vpack.c.b16 %v1357, %v1355
      %v1474 = vpack.c.b16 %v1360, %v1358
      %v1475 = vpack.c.b16 %v1361, %v1359
      %v1476 = vpack.c.b16 %v1364, %v1362
      %v1477 = vpack.c.b16 %v1365, %v1363
      %v1478 = vpack.c.b16 %v1368, %v1366
      %v1479 = vpack.c.b16 %v1369, %v1367
      %v1480 = vpack.c.b16 %v1372, %v1370
      %v1481 = vpack.c.b16 %v1373, %v1371
      %v1482 = vpack.c.b16 %v1376, %v1374
      %v1483 = vpack.c.b16 %v1377, %v1375
      %v1484 = vpack.c.b16 %v1380, %v1378
      %v1485 = vpack.c.b16 %v1381, %v1379
      %v1486 = vpack.c.b16 %v1384, %v1382
      %v1487 = vpack.c.b16 %v1385, %v1383
      %v1488 = vpack.c.b16 %v1388, %v1386
      %v1489 = vpack.c.b16 %v1389, %v1387
      %v1490 = vpack.c.b16 %v1392, %v1390
      %v1491 = vpack.c.b16 %v1393, %v1391
      %vm1590 = vcmask 130048
      %v1592 = vsel %vm1590, %v626, 0
      %v1595 = vsel %vm1590, %v633, 0
      %v1598 = vsel %vm1590, %v640, 0
      %v1601 = vsel %vm1590, %v647, 0
      %v1604 = vsel %vm1590, %v654, 0
      %v1607 = vsel %vm1590, %v661, 0
      %v1610 = vsel %vm1590, %v668, 0
      %v1613 = vsel %vm1590, %v675, 0
      %1615 = vmatpush.bf16.msra.mxu0 %v1408
      %1616 = vmatpush.bf16.msra.mxu0 %v1406
      %1617 = vmatpush.bf16.msra.mxu0 %v1404
      %1618 = vmatpush.bf16.msra.mxu0 %v1402
      %1619 = vmatpush.bf16.msra.mxu0 %v1400
      %1620 = vmatpush.bf16.msra.mxu0 %v1398
      %1621 = vmatpush.bf16.msra.mxu0 %v1396
      %1622 = vmatpush.bf16.msra.mxu0 %v1394
      %1623 = vmatmul.bf16.gmra.mxu0 %v620
      %v1624 = vpop.f32.mrf.mxu0
      %v1625 = vadd.f32 %v816, %v1624
      %v1626 = vpop.f32.mrf.mxu0
      %v1627 = vadd.f32 %v818, %v1626
      %1628 = vmatmul.bf16.gmra.mxu0 %v627
      %v1629 = vpop.f32.mrf.mxu0
      %v1630 = vadd.f32 %v821, %v1629
      %v1631 = vpop.f32.mrf.mxu0
      %v1632 = vadd.f32 %v823, %v1631
      %1633 = vmatmul.bf16.gmra.mxu0 %v634
      %v1634 = vpop.f32.mrf.mxu0
      %v1635 = vadd.f32 %v826, %v1634
      %v1636 = vpop.f32.mrf.mxu0
      %v1637 = vadd.f32 %v828, %v1636
      %1638 = vmatmul.bf16.gmra.mxu0 %v641
      %v1639 = vpop.f32.mrf.mxu0
      %v1640 = vadd.f32 %v831, %v1639
      %v1641 = vpop.f32.mrf.mxu0
      %v1642 = vadd.f32 %v833, %v1641
      %1643 = vmatmul.bf16.gmra.mxu0 %v648
      %v1644 = vpop.f32.mrf.mxu0
      %v1645 = vadd.f32 %v836, %v1644
      %v1646 = vpop.f32.mrf.mxu0
      %v1647 = vadd.f32 %v838, %v1646
      %1648 = vmatmul.bf16.gmra.mxu0 %v655
      %v1649 = vpop.f32.mrf.mxu0
      %v1650 = vadd.f32 %v841, %v1649
      %v1651 = vpop.f32.mrf.mxu0
      %v1652 = vadd.f32 %v843, %v1651
      %1653 = vmatmul.bf16.gmra.mxu0 %v662
      %v1654 = vpop.f32.mrf.mxu0
      %v1655 = vadd.f32 %v846, %v1654
      %v1656 = vpop.f32.mrf.mxu0
      %v1657 = vadd.f32 %v848, %v1656
      %1658 = vmatmul.bf16.gmra.mxu0 %v669
      %v1659 = vpop.f32.mrf.mxu0
      %v1660 = vadd.f32 %v851, %v1659
      %v1661 = vpop.f32.mrf.mxu0
      %v1662 = vadd.f32 %v853, %v1661
      %1663 = vdwg.mxu0
      %1664 = vmatpush.bf16.msra.mxu0 %v1424
      %1665 = vmatpush.bf16.msra.mxu0 %v1422
      %1666 = vmatpush.bf16.msra.mxu0 %v1420
      %1667 = vmatpush.bf16.msra.mxu0 %v1418
      %1668 = vmatpush.bf16.msra.mxu0 %v1416
      %1669 = vmatpush.bf16.msra.mxu0 %v1414
      %1670 = vmatpush.bf16.msra.mxu0 %v1412
      %1671 = vmatpush.bf16.msra.mxu0 %v1410
      %1672 = vmatmul.bf16.gmra.mxu0 %v621
      %v1673 = vpop.f32.mrf.mxu0
      %v1674 = vadd.f32 %v1625, %v1673
      %v1675 = vpop.f32.mrf.mxu0
      %v1676 = vadd.f32 %v1627, %v1675
      %1677 = vmatmul.bf16.gmra.mxu0 %v628
      %v1678 = vpop.f32.mrf.mxu0
      %v1679 = vadd.f32 %v1630, %v1678
      %v1680 = vpop.f32.mrf.mxu0
      %v1681 = vadd.f32 %v1632, %v1680
      %1682 = vmatmul.bf16.gmra.mxu0 %v635
      %v1683 = vpop.f32.mrf.mxu0
      %v1684 = vadd.f32 %v1635, %v1683
      %v1685 = vpop.f32.mrf.mxu0
      %v1686 = vadd.f32 %v1637, %v1685
      %1687 = vmatmul.bf16.gmra.mxu0 %v642
      %v1688 = vpop.f32.mrf.mxu0
      %v1689 = vadd.f32 %v1640, %v1688
      %v1690 = vpop.f32.mrf.mxu0
      %v1691 = vadd.f32 %v1642, %v1690
      %1692 = vmatmul.bf16.gmra.mxu0 %v649
      %v1693 = vpop.f32.mrf.mxu0
      %v1694 = vadd.f32 %v1645, %v1693
      %v1695 = vpop.f32.mrf.mxu0
      %v1696 = vadd.f32 %v1647, %v1695
      %1697 = vmatmul.bf16.gmra.mxu0 %v656
      %v1698 = vpop.f32.mrf.mxu0
      %v1699 = vadd.f32 %v1650, %v1698
      %v1700 = vpop.f32.mrf.mxu0
      %v1701 = vadd.f32 %v1652, %v1700
      %1702 = vmatmul.bf16.gmra.mxu0 %v663
      %v1703 = vpop.f32.mrf.mxu0
      %v1704 = vadd.f32 %v1655, %v1703
      %v1705 = vpop.f32.mrf.mxu0
      %v1706 = vadd.f32 %v1657, %v1705
      %1707 = vmatmul.bf16.gmra.mxu0 %v670
      %v1708 = vpop.f32.mrf.mxu0
      %v1709 = vadd.f32 %v1660, %v1708
      %v1710 = vpop.f32.mrf.mxu0
      %v1711 = vadd.f32 %v1662, %v1710
      %1712 = vdwg.mxu0
      %1713 = vmatpush.bf16.msra.mxu0 %v1440
      %1714 = vmatpush.bf16.msra.mxu0 %v1438
      %1715 = vmatpush.bf16.msra.mxu0 %v1436
      %1716 = vmatpush.bf16.msra.mxu0 %v1434
      %1717 = vmatpush.bf16.msra.mxu0 %v1432
      %1718 = vmatpush.bf16.msra.mxu0 %v1430
      %1719 = vmatpush.bf16.msra.mxu0 %v1428
      %1720 = vmatpush.bf16.msra.mxu0 %v1426
      %1721 = vmatmul.bf16.gmra.mxu0 %v622
      %v1722 = vpop.f32.mrf.mxu0
      %v1723 = vadd.f32 %v1674, %v1722
      %v1724 = vpop.f32.mrf.mxu0
      %v1725 = vadd.f32 %v1676, %v1724
      %1726 = vmatmul.bf16.gmra.mxu0 %v629
      %v1727 = vpop.f32.mrf.mxu0
      %v1728 = vadd.f32 %v1679, %v1727
      %v1729 = vpop.f32.mrf.mxu0
      %v1730 = vadd.f32 %v1681, %v1729
      %1731 = vmatmul.bf16.gmra.mxu0 %v636
      %v1732 = vpop.f32.mrf.mxu0
      %v1733 = vadd.f32 %v1684, %v1732
      %v1734 = vpop.f32.mrf.mxu0
      %v1735 = vadd.f32 %v1686, %v1734
      %1736 = vmatmul.bf16.gmra.mxu0 %v643
      %v1737 = vpop.f32.mrf.mxu0
      %v1738 = vadd.f32 %v1689, %v1737
      %v1739 = vpop.f32.mrf.mxu0
      %v1740 = vadd.f32 %v1691, %v1739
      %1741 = vmatmul.bf16.gmra.mxu0 %v650
      %v1742 = vpop.f32.mrf.mxu0
      %v1743 = vadd.f32 %v1694, %v1742
      %v1744 = vpop.f32.mrf.mxu0
      %v1745 = vadd.f32 %v1696, %v1744
      %1746 = vmatmul.bf16.gmra.mxu0 %v657
      %v1747 = vpop.f32.mrf.mxu0
      %v1748 = vadd.f32 %v1699, %v1747
      %v1749 = vpop.f32.mrf.mxu0
      %v1750 = vadd.f32 %v1701, %v1749
      %1751 = vmatmul.bf16.gmra.mxu0 %v664
      %v1752 = vpop.f32.mrf.mxu0
      %v1753 = vadd.f32 %v1704, %v1752
      %v1754 = vpop.f32.mrf.mxu0
      %v1755 = vadd.f32 %v1706, %v1754
      %1756 = vmatmul.bf16.gmra.mxu0 %v671
      %v1757 = vpop.f32.mrf.mxu0
      %v1758 = vadd.f32 %v1709, %v1757
      %v1759 = vpop.f32.mrf.mxu0
      %v1760 = vadd.f32 %v1711, %v1759
      %1761 = vdwg.mxu0
      %1762 = vmatpush.bf16.msra.mxu0 %v1456
      %1763 = vmatpush.bf16.msra.mxu0 %v1454
      %1764 = vmatpush.bf16.msra.mxu0 %v1452
      %1765 = vmatpush.bf16.msra.mxu0 %v1450
      %1766 = vmatpush.bf16.msra.mxu0 %v1448
      %1767 = vmatpush.bf16.msra.mxu0 %v1446
      %1768 = vmatpush.bf16.msra.mxu0 %v1444
      %1769 = vmatpush.bf16.msra.mxu0 %v1442
      %1770 = vmatmul.bf16.gmra.mxu0 %v623
      %v1771 = vpop.f32.mrf.mxu0
      %v1772 = vadd.f32 %v1723, %v1771
      %v1773 = vpop.f32.mrf.mxu0
      %v1774 = vadd.f32 %v1725, %v1773
      %1775 = vmatmul.bf16.gmra.mxu0 %v630
      %v1776 = vpop.f32.mrf.mxu0
      %v1777 = vadd.f32 %v1728, %v1776
      %v1778 = vpop.f32.mrf.mxu0
      %v1779 = vadd.f32 %v1730, %v1778
      %1780 = vmatmul.bf16.gmra.mxu0 %v637
      %v1781 = vpop.f32.mrf.mxu0
      %v1782 = vadd.f32 %v1733, %v1781
      %v1783 = vpop.f32.mrf.mxu0
      %v1784 = vadd.f32 %v1735, %v1783
      %1785 = vmatmul.bf16.gmra.mxu0 %v644
      %v1786 = vpop.f32.mrf.mxu0
      %v1787 = vadd.f32 %v1738, %v1786
      %v1788 = vpop.f32.mrf.mxu0
      %v1789 = vadd.f32 %v1740, %v1788
      %1790 = vmatmul.bf16.gmra.mxu0 %v651
      %v1791 = vpop.f32.mrf.mxu0
      %v1792 = vadd.f32 %v1743, %v1791
      %v1793 = vpop.f32.mrf.mxu0
      %v1794 = vadd.f32 %v1745, %v1793
      %1795 = vmatmul.bf16.gmra.mxu0 %v658
      %v1796 = vpop.f32.mrf.mxu0
      %v1797 = vadd.f32 %v1748, %v1796
      %v1798 = vpop.f32.mrf.mxu0
      %v1799 = vadd.f32 %v1750, %v1798
      %1800 = vmatmul.bf16.gmra.mxu0 %v665
      %v1801 = vpop.f32.mrf.mxu0
      %v1802 = vadd.f32 %v1753, %v1801
      %v1803 = vpop.f32.mrf.mxu0
      %v1804 = vadd.f32 %v1755, %v1803
      %1805 = vmatmul.bf16.gmra.mxu0 %v672
      %v1806 = vpop.f32.mrf.mxu0
      %v1807 = vadd.f32 %v1758, %v1806
      %v1808 = vpop.f32.mrf.mxu0
      %v1809 = vadd.f32 %v1760, %v1808
      %1810 = vdwg.mxu0
      %1811 = vmatpush.bf16.msra.mxu0 %v1472
      %1812 = vmatpush.bf16.msra.mxu0 %v1470
      %1813 = vmatpush.bf16.msra.mxu0 %v1468
      %1814 = vmatpush.bf16.msra.mxu0 %v1466
      %1815 = vmatpush.bf16.msra.mxu0 %v1464
      %1816 = vmatpush.bf16.msra.mxu0 %v1462
      %1817 = vmatpush.bf16.msra.mxu0 %v1460
      %1818 = vmatpush.bf16.msra.mxu0 %v1458
      %1819 = vmatmul.bf16.gmra.mxu0 %v624
      %v1820 = vpop.f32.mrf.mxu0
      %v1821 = vadd.f32 %v1772, %v1820
      %v1822 = vpop.f32.mrf.mxu0
      %v1823 = vadd.f32 %v1774, %v1822
      %1824 = vmatmul.bf16.gmra.mxu0 %v631
      %v1825 = vpop.f32.mrf.mxu0
      %v1826 = vadd.f32 %v1777, %v1825
      %v1827 = vpop.f32.mrf.mxu0
      %v1828 = vadd.f32 %v1779, %v1827
      %1829 = vmatmul.bf16.gmra.mxu0 %v638
      %v1830 = vpop.f32.mrf.mxu0
      %v1831 = vadd.f32 %v1782, %v1830
      %v1832 = vpop.f32.mrf.mxu0
      %v1833 = vadd.f32 %v1784, %v1832
      %1834 = vmatmul.bf16.gmra.mxu0 %v645
      %v1835 = vpop.f32.mrf.mxu0
      %v1836 = vadd.f32 %v1787, %v1835
      %v1837 = vpop.f32.mrf.mxu0
      %v1838 = vadd.f32 %v1789, %v1837
      %1839 = vmatmul.bf16.gmra.mxu0 %v652
      %v1840 = vpop.f32.mrf.mxu0
      %v1841 = vadd.f32 %v1792, %v1840
      %v1842 = vpop.f32.mrf.mxu0
      %v1843 = vadd.f32 %v1794, %v1842
      %1844 = vmatmul.bf16.gmra.mxu0 %v659
      %v1845 = vpop.f32.mrf.mxu0
      %v1846 = vadd.f32 %v1797, %v1845
      %v1847 = vpop.f32.mrf.mxu0
      %v1848 = vadd.f32 %v1799, %v1847
      %1849 = vmatmul.bf16.gmra.mxu0 %v666
      %v1850 = vpop.f32.mrf.mxu0
      %v1851 = vadd.f32 %v1802, %v1850
      %v1852 = vpop.f32.mrf.mxu0
      %v1853 = vadd.f32 %v1804, %v1852
      %1854 = vmatmul.bf16.gmra.mxu0 %v673
      %v1855 = vpop.f32.mrf.mxu0
      %v1856 = vadd.f32 %v1807, %v1855
      %v1857 = vpop.f32.mrf.mxu0
      %v1858 = vadd.f32 %v1809, %v1857
      %1859 = vdwg.mxu0
      %1860 = vmatpush.bf16.msra.mxu0 %v1488
      %1861 = vmatpush.bf16.msra.mxu0 %v1486
      %1862 = vmatpush.bf16.msra.mxu0 %v1484
      %1863 = vmatpush.bf16.msra.mxu0 %v1482
      %1864 = vmatpush.bf16.msra.mxu0 %v1480
      %1865 = vmatpush.bf16.msra.mxu0 %v1478
      %1866 = vmatpush.bf16.msra.mxu0 %v1476
      %1867 = vmatpush.bf16.msra.mxu0 %v1474
      %1868 = vmatmul.bf16.gmra.mxu0 %v625
      %v1869 = vpop.f32.mrf.mxu0
      %v1870 = vadd.f32 %v1821, %v1869
      %v1871 = vpop.f32.mrf.mxu0
      %v1872 = vadd.f32 %v1823, %v1871
      %1873 = vmatmul.bf16.gmra.mxu0 %v632
      %v1874 = vpop.f32.mrf.mxu0
      %v1875 = vadd.f32 %v1826, %v1874
      %v1876 = vpop.f32.mrf.mxu0
      %v1877 = vadd.f32 %v1828, %v1876
      %1878 = vmatmul.bf16.gmra.mxu0 %v639
      %v1879 = vpop.f32.mrf.mxu0
      %v1880 = vadd.f32 %v1831, %v1879
      %v1881 = vpop.f32.mrf.mxu0
      %v1882 = vadd.f32 %v1833, %v1881
      %1883 = vmatmul.bf16.gmra.mxu0 %v646
      %v1884 = vpop.f32.mrf.mxu0
      %v1885 = vadd.f32 %v1836, %v1884
      %v1886 = vpop.f32.mrf.mxu0
      %v1887 = vadd.f32 %v1838, %v1886
      %1888 = vmatmul.bf16.gmra.mxu0 %v653
      %v1889 = vpop.f32.mrf.mxu0
      %v1890 = vadd.f32 %v1841, %v1889
      %v1891 = vpop.f32.mrf.mxu0
      %v1892 = vadd.f32 %v1843, %v1891
      %1893 = vmatmul.bf16.gmra.mxu0 %v660
      %v1894 = vpop.f32.mrf.mxu0
      %v1895 = vadd.f32 %v1846, %v1894
      %v1896 = vpop.f32.mrf.mxu0
      %v1897 = vadd.f32 %v1848, %v1896
      %1898 = vmatmul.bf16.gmra.mxu0 %v667
      %v1899 = vpop.f32.mrf.mxu0
      %v1900 = vadd.f32 %v1851, %v1899
      %v1901 = vpop.f32.mrf.mxu0
      %v1902 = vadd.f32 %v1853, %v1901
      %1903 = vmatmul.bf16.gmra.mxu0 %v674
      %v1904 = vpop.f32.mrf.mxu0
      %v1905 = vadd.f32 %v1856, %v1904
      %v1906 = vpop.f32.mrf.mxu0
      %v1907 = vadd.f32 %v1858, %v1906
      %1908 = vdwg.mxu0
      %1909 = vmatpush.bf16.msra.mxu0 0
      %1910 = vmatpush.bf16.msra.mxu0 0
      %1911 = vmatpush.bf16.msra.mxu0 0
      %1912 = vmatpush.bf16.msra.mxu0 0
      %1913 = vmatpush.bf16.msra.mxu0 0
      %1914 = vmatpush.bf16.msra.mxu0 0
      %1915 = vmatpush.bf16.msra.mxu0 0
      %1916 = vmatpush.bf16.msra.mxu0 %v1490
      %1917 = vmatmul.bf16.gmra.mxu0 %v1592
      %v1918 = vpop.f32.mrf.mxu0
      %v1919 = vadd.f32 %v1870, %v1918
      %v1920 = vpop.f32.mrf.mxu0
      %v1921 = vadd.f32 %v1872, %v1920
      %1922 = vmatmul.bf16.gmra.mxu0 %v1595
      %v1923 = vpop.f32.mrf.mxu0
      %v1924 = vadd.f32 %v1875, %v1923
      %v1925 = vpop.f32.mrf.mxu0
      %v1926 = vadd.f32 %v1877, %v1925
      %1927 = vmatmul.bf16.gmra.mxu0 %v1598
      %v1928 = vpop.f32.mrf.mxu0
      %v1929 = vadd.f32 %v1880, %v1928
      %v1930 = vpop.f32.mrf.mxu0
      %v1931 = vadd.f32 %v1882, %v1930
      %1932 = vmatmul.bf16.gmra.mxu0 %v1601
      %v1933 = vpop.f32.mrf.mxu0
      %v1934 = vadd.f32 %v1885, %v1933
      %v1935 = vpop.f32.mrf.mxu0
      %v1936 = vadd.f32 %v1887, %v1935
      %1937 = vmatmul.bf16.gmra.mxu0 %v1604
      %v1938 = vpop.f32.mrf.mxu0
      %v1939 = vadd.f32 %v1890, %v1938
      %v1940 = vpop.f32.mrf.mxu0
      %v1941 = vadd.f32 %v1892, %v1940
      %1942 = vmatmul.bf16.gmra.mxu0 %v1607
      %v1943 = vpop.f32.mrf.mxu0
      %v1944 = vadd.f32 %v1895, %v1943
      %v1945 = vpop.f32.mrf.mxu0
      %v1946 = vadd.f32 %v1897, %v1945
      %1947 = vmatmul.bf16.gmra.mxu0 %v1610
      %v1948 = vpop.f32.mrf.mxu0
      %v1949 = vadd.f32 %v1900, %v1948
      %v1950 = vpop.f32.mrf.mxu0
      %v1951 = vadd.f32 %v1902, %v1950
      %1952 = vmatmul.bf16.gmra.mxu0 %v1613
      %v1953 = vpop.f32.mrf.mxu0
      %v1954 = vadd.f32 %v1905, %v1953
      %v1955 = vpop.f32.mrf.mxu0
      %v1956 = vadd.f32 %v1907, %v1955
      %1957 = vdwg.mxu0
      %1958 = vmatpush.bf16.msra.mxu0 %v1409
      %1959 = vmatpush.bf16.msra.mxu0 %v1407
      %1960 = vmatpush.bf16.msra.mxu0 %v1405
      %1961 = vmatpush.bf16.msra.mxu0 %v1403
      %1962 = vmatpush.bf16.msra.mxu0 %v1401
      %1963 = vmatpush.bf16.msra.mxu0 %v1399
      %1964 = vmatpush.bf16.msra.mxu0 %v1397
      %1965 = vmatpush.bf16.msra.mxu0 %v1395
      %1966 = vmatmul.bf16.gmra.mxu0 %v620
      %v1967 = vpop.f32.mrf.mxu0
      %v1968 = vadd.f32 %v865, %v1967
      %v1969 = vpop.f32.mrf.mxu0
      %v1970 = vadd.f32 %v867, %v1969
      %1971 = vmatmul.bf16.gmra.mxu0 %v627
      %v1972 = vpop.f32.mrf.mxu0
      %v1973 = vadd.f32 %v870, %v1972
      %v1974 = vpop.f32.mrf.mxu0
      %v1975 = vadd.f32 %v872, %v1974
      %1976 = vmatmul.bf16.gmra.mxu0 %v634
      %v1977 = vpop.f32.mrf.mxu0
      %v1978 = vadd.f32 %v875, %v1977
      %v1979 = vpop.f32.mrf.mxu0
      %v1980 = vadd.f32 %v877, %v1979
      %1981 = vmatmul.bf16.gmra.mxu0 %v641
      %v1982 = vpop.f32.mrf.mxu0
      %v1983 = vadd.f32 %v880, %v1982
      %v1984 = vpop.f32.mrf.mxu0
      %v1985 = vadd.f32 %v882, %v1984
      %1986 = vmatmul.bf16.gmra.mxu0 %v648
      %v1987 = vpop.f32.mrf.mxu0
      %v1988 = vadd.f32 %v885, %v1987
      %v1989 = vpop.f32.mrf.mxu0
      %v1990 = vadd.f32 %v887, %v1989
      %1991 = vmatmul.bf16.gmra.mxu0 %v655
      %v1992 = vpop.f32.mrf.mxu0
      %v1993 = vadd.f32 %v890, %v1992
      %v1994 = vpop.f32.mrf.mxu0
      %v1995 = vadd.f32 %v892, %v1994
      %1996 = vmatmul.bf16.gmra.mxu0 %v662
      %v1997 = vpop.f32.mrf.mxu0
      %v1998 = vadd.f32 %v895, %v1997
      %v1999 = vpop.f32.mrf.mxu0
      %v2000 = vadd.f32 %v897, %v1999
      %2001 = vmatmul.bf16.gmra.mxu0 %v669
      %v2002 = vpop.f32.mrf.mxu0
      %v2003 = vadd.f32 %v900, %v2002
      %v2004 = vpop.f32.mrf.mxu0
      %v2005 = vadd.f32 %v902, %v2004
      %2006 = vdwg.mxu0
      %2007 = vmatpush.bf16.msra.mxu0 %v1425
      %2008 = vmatpush.bf16.msra.mxu0 %v1423
      %2009 = vmatpush.bf16.msra.mxu0 %v1421
      %2010 = vmatpush.bf16.msra.mxu0 %v1419
      %2011 = vmatpush.bf16.msra.mxu0 %v1417
      %2012 = vmatpush.bf16.msra.mxu0 %v1415
      %2013 = vmatpush.bf16.msra.mxu0 %v1413
      %2014 = vmatpush.bf16.msra.mxu0 %v1411
      %2015 = vmatmul.bf16.gmra.mxu0 %v621
      %v2016 = vpop.f32.mrf.mxu0
      %v2017 = vadd.f32 %v1968, %v2016
      %v2018 = vpop.f32.mrf.mxu0
      %v2019 = vadd.f32 %v1970, %v2018
      %2020 = vmatmul.bf16.gmra.mxu0 %v628
      %v2021 = vpop.f32.mrf.mxu0
      %v2022 = vadd.f32 %v1973, %v2021
      %v2023 = vpop.f32.mrf.mxu0
      %v2024 = vadd.f32 %v1975, %v2023
      %2025 = vmatmul.bf16.gmra.mxu0 %v635
      %v2026 = vpop.f32.mrf.mxu0
      %v2027 = vadd.f32 %v1978, %v2026
      %v2028 = vpop.f32.mrf.mxu0
      %v2029 = vadd.f32 %v1980, %v2028
      %2030 = vmatmul.bf16.gmra.mxu0 %v642
      %v2031 = vpop.f32.mrf.mxu0
      %v2032 = vadd.f32 %v1983, %v2031
      %v2033 = vpop.f32.mrf.mxu0
      %v2034 = vadd.f32 %v1985, %v2033
      %2035 = vmatmul.bf16.gmra.mxu0 %v649
      %v2036 = vpop.f32.mrf.mxu0
      %v2037 = vadd.f32 %v1988, %v2036
      %v2038 = vpop.f32.mrf.mxu0
      %v2039 = vadd.f32 %v1990, %v2038
      %2040 = vmatmul.bf16.gmra.mxu0 %v656
      %v2041 = vpop.f32.mrf.mxu0
      %v2042 = vadd.f32 %v1993, %v2041
      %v2043 = vpop.f32.mrf.mxu0
      %v2044 = vadd.f32 %v1995, %v2043
      %2045 = vmatmul.bf16.gmra.mxu0 %v663
      %v2046 = vpop.f32.mrf.mxu0
      %v2047 = vadd.f32 %v1998, %v2046
      %v2048 = vpop.f32.mrf.mxu0
      %v2049 = vadd.f32 %v2000, %v2048
      %2050 = vmatmul.bf16.gmra.mxu0 %v670
      %v2051 = vpop.f32.mrf.mxu0
      %v2052 = vadd.f32 %v2003, %v2051
      %v2053 = vpop.f32.mrf.mxu0
      %v2054 = vadd.f32 %v2005, %v2053
      %2055 = vdwg.mxu0
      %2056 = vmatpush.bf16.msra.mxu0 %v1441
      %2057 = vmatpush.bf16.msra.mxu0 %v1439
      %2058 = vmatpush.bf16.msra.mxu0 %v1437
      %2059 = vmatpush.bf16.msra.mxu0 %v1435
      %2060 = vmatpush.bf16.msra.mxu0 %v1433
      %2061 = vmatpush.bf16.msra.mxu0 %v1431
      %2062 = vmatpush.bf16.msra.mxu0 %v1429
      %2063 = vmatpush.bf16.msra.mxu0 %v1427
      %2064 = vmatmul.bf16.gmra.mxu0 %v622
      %v2065 = vpop.f32.mrf.mxu0
      %v2066 = vadd.f32 %v2017, %v2065
      %v2067 = vpop.f32.mrf.mxu0
      %v2068 = vadd.f32 %v2019, %v2067
      %2069 = vmatmul.bf16.gmra.mxu0 %v629
      %v2070 = vpop.f32.mrf.mxu0
      %v2071 = vadd.f32 %v2022, %v2070
      %v2072 = vpop.f32.mrf.mxu0
      %v2073 = vadd.f32 %v2024, %v2072
      %2074 = vmatmul.bf16.gmra.mxu0 %v636
      %v2075 = vpop.f32.mrf.mxu0
      %v2076 = vadd.f32 %v2027, %v2075
      %v2077 = vpop.f32.mrf.mxu0
      %v2078 = vadd.f32 %v2029, %v2077
      %2079 = vmatmul.bf16.gmra.mxu0 %v643
      %v2080 = vpop.f32.mrf.mxu0
      %v2081 = vadd.f32 %v2032, %v2080
      %v2082 = vpop.f32.mrf.mxu0
      %v2083 = vadd.f32 %v2034, %v2082
      %2084 = vmatmul.bf16.gmra.mxu0 %v650
      %v2085 = vpop.f32.mrf.mxu0
      %v2086 = vadd.f32 %v2037, %v2085
      %v2087 = vpop.f32.mrf.mxu0
      %v2088 = vadd.f32 %v2039, %v2087
      %2089 = vmatmul.bf16.gmra.mxu0 %v657
      %v2090 = vpop.f32.mrf.mxu0
      %v2091 = vadd.f32 %v2042, %v2090
      %v2092 = vpop.f32.mrf.mxu0
      %v2093 = vadd.f32 %v2044, %v2092
      %2094 = vmatmul.bf16.gmra.mxu0 %v664
      %v2095 = vpop.f32.mrf.mxu0
      %v2096 = vadd.f32 %v2047, %v2095
      %v2097 = vpop.f32.mrf.mxu0
      %v2098 = vadd.f32 %v2049, %v2097
      %2099 = vmatmul.bf16.gmra.mxu0 %v671
      %v2100 = vpop.f32.mrf.mxu0
      %v2101 = vadd.f32 %v2052, %v2100
      %v2102 = vpop.f32.mrf.mxu0
      %v2103 = vadd.f32 %v2054, %v2102
      %2104 = vdwg.mxu0
      %2105 = vmatpush.bf16.msra.mxu0 %v1457
      %2106 = vmatpush.bf16.msra.mxu0 %v1455
      %2107 = vmatpush.bf16.msra.mxu0 %v1453
      %2108 = vmatpush.bf16.msra.mxu0 %v1451
      %2109 = vmatpush.bf16.msra.mxu0 %v1449
      %2110 = vmatpush.bf16.msra.mxu0 %v1447
      %2111 = vmatpush.bf16.msra.mxu0 %v1445
      %2112 = vmatpush.bf16.msra.mxu0 %v1443
      %2113 = vmatmul.bf16.gmra.mxu0 %v623
      %v2114 = vpop.f32.mrf.mxu0
      %v2115 = vadd.f32 %v2066, %v2114
      %v2116 = vpop.f32.mrf.mxu0
      %v2117 = vadd.f32 %v2068, %v2116
      %2118 = vmatmul.bf16.gmra.mxu0 %v630
      %v2119 = vpop.f32.mrf.mxu0
      %v2120 = vadd.f32 %v2071, %v2119
      %v2121 = vpop.f32.mrf.mxu0
      %v2122 = vadd.f32 %v2073, %v2121
      %2123 = vmatmul.bf16.gmra.mxu0 %v637
      %v2124 = vpop.f32.mrf.mxu0
      %v2125 = vadd.f32 %v2076, %v2124
      %v2126 = vpop.f32.mrf.mxu0
      %v2127 = vadd.f32 %v2078, %v2126
      %2128 = vmatmul.bf16.gmra.mxu0 %v644
      %v2129 = vpop.f32.mrf.mxu0
      %v2130 = vadd.f32 %v2081, %v2129
      %v2131 = vpop.f32.mrf.mxu0
      %v2132 = vadd.f32 %v2083, %v2131
      %2133 = vmatmul.bf16.gmra.mxu0 %v651
      %v2134 = vpop.f32.mrf.mxu0
      %v2135 = vadd.f32 %v2086, %v2134
      %v2136 = vpop.f32.mrf.mxu0
      %v2137 = vadd.f32 %v2088, %v2136
      %2138 = vmatmul.bf16.gmra.mxu0 %v658
      %v2139 = vpop.f32.mrf.mxu0
      %v2140 = vadd.f32 %v2091, %v2139
      %v2141 = vpop.f32.mrf.mxu0
      %v2142 = vadd.f32 %v2093, %v2141
      %2143 = vmatmul.bf16.gmra.mxu0 %v665
      %v2144 = vpop.f32.mrf.mxu0
      %v2145 = vadd.f32 %v2096, %v2144
      %v2146 = vpop.f32.mrf.mxu0
      %v2147 = vadd.f32 %v2098, %v2146
      %2148 = vmatmul.bf16.gmra.mxu0 %v672
      %v2149 = vpop.f32.mrf.mxu0
      %v2150 = vadd.f32 %v2101, %v2149
      %v2151 = vpop.f32.mrf.mxu0
      %v2152 = vadd.f32 %v2103, %v2151
      %2153 = vdwg.mxu0
      %2154 = vmatpush.bf16.msra.mxu0 %v1473
      %2155 = vmatpush.bf16.msra.mxu0 %v1471
      %2156 = vmatpush.bf16.msra.mxu0 %v1469
      %2157 = vmatpush.bf16.msra.mxu0 %v1467
      %2158 = vmatpush.bf16.msra.mxu0 %v1465
      %2159 = vmatpush.bf16.msra.mxu0 %v1463
      %2160 = vmatpush.bf16.msra.mxu0 %v1461
      %2161 = vmatpush.bf16.msra.mxu0 %v1459
      %2162 = vmatmul.bf16.gmra.mxu0 %v624
      %v2163 = vpop.f32.mrf.mxu0
      %v2164 = vadd.f32 %v2115, %v2163
      %v2165 = vpop.f32.mrf.mxu0
      %v2166 = vadd.f32 %v2117, %v2165
      %2167 = vmatmul.bf16.gmra.mxu0 %v631
      %v2168 = vpop.f32.mrf.mxu0
      %v2169 = vadd.f32 %v2120, %v2168
      %v2170 = vpop.f32.mrf.mxu0
      %v2171 = vadd.f32 %v2122, %v2170
      %2172 = vmatmul.bf16.gmra.mxu0 %v638
      %v2173 = vpop.f32.mrf.mxu0
      %v2174 = vadd.f32 %v2125, %v2173
      %v2175 = vpop.f32.mrf.mxu0
      %v2176 = vadd.f32 %v2127, %v2175
      %2177 = vmatmul.bf16.gmra.mxu0 %v645
      %v2178 = vpop.f32.mrf.mxu0
      %v2179 = vadd.f32 %v2130, %v2178
      %v2180 = vpop.f32.mrf.mxu0
      %v2181 = vadd.f32 %v2132, %v2180
      %2182 = vmatmul.bf16.gmra.mxu0 %v652
      %v2183 = vpop.f32.mrf.mxu0
      %v2184 = vadd.f32 %v2135, %v2183
      %v2185 = vpop.f32.mrf.mxu0
      %v2186 = vadd.f32 %v2137, %v2185
      %2187 = vmatmul.bf16.gmra.mxu0 %v659
      %v2188 = vpop.f32.mrf.mxu0
      %v2189 = vadd.f32 %v2140, %v2188
      %v2190 = vpop.f32.mrf.mxu0
      %v2191 = vadd.f32 %v2142, %v2190
      %2192 = vmatmul.bf16.gmra.mxu0 %v666
      %v2193 = vpop.f32.mrf.mxu0
      %v2194 = vadd.f32 %v2145, %v2193
      %v2195 = vpop.f32.mrf.mxu0
      %v2196 = vadd.f32 %v2147, %v2195
      %2197 = vmatmul.bf16.gmra.mxu0 %v673
      %v2198 = vpop.f32.mrf.mxu0
      %v2199 = vadd.f32 %v2150, %v2198
      %v2200 = vpop.f32.mrf.mxu0
      %v2201 = vadd.f32 %v2152, %v2200
      %2202 = vdwg.mxu0
      %2203 = vmatpush.bf16.msra.mxu0 %v1489
      %2204 = vmatpush.bf16.msra.mxu0 %v1487
      %2205 = vmatpush.bf16.msra.mxu0 %v1485
      %2206 = vmatpush.bf16.msra.mxu0 %v1483
      %2207 = vmatpush.bf16.msra.mxu0 %v1481
      %2208 = vmatpush.bf16.msra.mxu0 %v1479
      %2209 = vmatpush.bf16.msra.mxu0 %v1477
      %2210 = vmatpush.bf16.msra.mxu0 %v1475
      %2211 = vmatmul.bf16.gmra.mxu0 %v625
      %v2212 = vpop.f32.mrf.mxu0
      %v2213 = vadd.f32 %v2164, %v2212
      %v2214 = vpop.f32.mrf.mxu0
      %v2215 = vadd.f32 %v2166, %v2214
      %2216 = vmatmul.bf16.gmra.mxu0 %v632
      %v2217 = vpop.f32.mrf.mxu0
      %v2218 = vadd.f32 %v2169, %v2217
      %v2219 = vpop.f32.mrf.mxu0
      %v2220 = vadd.f32 %v2171, %v2219
      %2221 = vmatmul.bf16.gmra.mxu0 %v639
      %v2222 = vpop.f32.mrf.mxu0
      %v2223 = vadd.f32 %v2174, %v2222
      %v2224 = vpop.f32.mrf.mxu0
      %v2225 = vadd.f32 %v2176, %v2224
      %2226 = vmatmul.bf16.gmra.mxu0 %v646
      %v2227 = vpop.f32.mrf.mxu0
      %v2228 = vadd.f32 %v2179, %v2227
      %v2229 = vpop.f32.mrf.mxu0
      %v2230 = vadd.f32 %v2181, %v2229
      %2231 = vmatmul.bf16.gmra.mxu0 %v653
      %v2232 = vpop.f32.mrf.mxu0
      %v2233 = vadd.f32 %v2184, %v2232
      %v2234 = vpop.f32.mrf.mxu0
      %v2235 = vadd.f32 %v2186, %v2234
      %2236 = vmatmul.bf16.gmra.mxu0 %v660
      %v2237 = vpop.f32.mrf.mxu0
      %v2238 = vadd.f32 %v2189, %v2237
      %v2239 = vpop.f32.mrf.mxu0
      %v2240 = vadd.f32 %v2191, %v2239
      %2241 = vmatmul.bf16.gmra.mxu0 %v667
      %v2242 = vpop.f32.mrf.mxu0
      %v2243 = vadd.f32 %v2194, %v2242
      %v2244 = vpop.f32.mrf.mxu0
      %v2245 = vadd.f32 %v2196, %v2244
      %2246 = vmatmul.bf16.gmra.mxu0 %v674
      %v2247 = vpop.f32.mrf.mxu0
      %v2248 = vadd.f32 %v2199, %v2247
      %v2249 = vpop.f32.mrf.mxu0
      %v2250 = vadd.f32 %v2201, %v2249
      %2251 = vdwg.mxu0
      %2252 = vmatpush.bf16.msra.mxu0 0
      %2253 = vmatpush.bf16.msra.mxu0 0
      %2254 = vmatpush.bf16.msra.mxu0 0
      %2255 = vmatpush.bf16.msra.mxu0 0
      %2256 = vmatpush.bf16.msra.mxu0 0
      %2257 = vmatpush.bf16.msra.mxu0 0
      %2258 = vmatpush.bf16.msra.mxu0 0
      %2259 = vmatpush.bf16.msra.mxu0 %v1491
      %2260 = vmatmul.bf16.gmra.mxu0 %v1592
      %v2261 = vpop.f32.mrf.mxu0
      %v2262 = vadd.f32 %v2213, %v2261
      %v2263 = vpop.f32.mrf.mxu0
      %v2264 = vadd.f32 %v2215, %v2263
      %2265 = vmatmul.bf16.gmra.mxu0 %v1595
      %v2266 = vpop.f32.mrf.mxu0
      %v2267 = vadd.f32 %v2218, %v2266
      %v2268 = vpop.f32.mrf.mxu0
      %v2269 = vadd.f32 %v2220, %v2268
      %2270 = vmatmul.bf16.gmra.mxu0 %v1598
      %v2271 = vpop.f32.mrf.mxu0
      %v2272 = vadd.f32 %v2223, %v2271
      %v2273 = vpop.f32.mrf.mxu0
      %v2274 = vadd.f32 %v2225, %v2273
      %2275 = vmatmul.bf16.gmra.mxu0 %v1601
      %v2276 = vpop.f32.mrf.mxu0
      %v2277 = vadd.f32 %v2228, %v2276
      %v2278 = vpop.f32.mrf.mxu0
      %v2279 = vadd.f32 %v2230, %v2278
      %2280 = vmatmul.bf16.gmra.mxu0 %v1604
      %v2281 = vpop.f32.mrf.mxu0
      %v2282 = vadd.f32 %v2233, %v2281
      %v2283 = vpop.f32.mrf.mxu0
      %v2284 = vadd.f32 %v2235, %v2283
      %2285 = vmatmul.bf16.gmra.mxu0 %v1607
      %v2286 = vpop.f32.mrf.mxu0
      %v2287 = vadd.f32 %v2238, %v2286
      %v2288 = vpop.f32.mrf.mxu0
      %v2289 = vadd.f32 %v2240, %v2288
      %2290 = vmatmul.bf16.gmra.mxu0 %v1610
      %v2291 = vpop.f32.mrf.mxu0
      %v2292 = vadd.f32 %v2243, %v2291
      %v2293 = vpop.f32.mrf.mxu0
      %v2294 = vadd.f32 %v2245, %v2293
      %2295 = vmatmul.bf16.gmra.mxu0 %v1613
      %v2296 = vpop.f32.mrf.mxu0
      %v2297 = vadd.f32 %v2248, %v2296
      %v2298 = vpop.f32.mrf.mxu0
      %v2299 = vadd.f32 %v2250, %v2298
      %2300 = vdwg.mxu0
      %v2301 = vld [vmem:[%s5] sm:$0x3]
      %v2303 = vperm.slane %v2301, 0
      %v2304 = vperm.slane %v2301, 1
      %v2307 = vadd.f32 %v1919, %v2303
      %v2308 = vadd.f32 %v2262, %v2304
      %v2309 = vadd.f32 %v1921, %v2303
      %v2310 = vadd.f32 %v2264, %v2304
      %v2311 = vadd.f32 %v1924, %v2303
      %v2312 = vadd.f32 %v2267, %v2304
      %v2313 = vadd.f32 %v1926, %v2303
      %v2314 = vadd.f32 %v2269, %v2304
      %v2315 = vadd.f32 %v1929, %v2303
      %v2316 = vadd.f32 %v2272, %v2304
      %v2317 = vadd.f32 %v1931, %v2303
      %v2318 = vadd.f32 %v2274, %v2304
      %v2319 = vadd.f32 %v1934, %v2303
      %v2320 = vadd.f32 %v2277, %v2304
      %v2321 = vadd.f32 %v1936, %v2303
      %v2322 = vadd.f32 %v2279, %v2304
      %v2323 = vadd.f32 %v1939, %v2303
      %v2324 = vadd.f32 %v2282, %v2304
      %v2325 = vadd.f32 %v1941, %v2303
      %v2326 = vadd.f32 %v2284, %v2304
      %v2327 = vadd.f32 %v1944, %v2303
      %v2328 = vadd.f32 %v2287, %v2304
      %v2329 = vadd.f32 %v1946, %v2303
      %v2330 = vadd.f32 %v2289, %v2304
      %v2331 = vadd.f32 %v1949, %v2303
      %v2332 = vadd.f32 %v2292, %v2304
      %v2333 = vadd.f32 %v1951, %v2303
      %v2334 = vadd.f32 %v2294, %v2304
      %v2335 = vadd.f32 %v1954, %v2303
      %v2336 = vadd.f32 %v2297, %v2304
      %v2337 = vadd.f32 %v1956, %v2303
      %v2338 = vadd.f32 %v2299, %v2304
      %v2339 = vmax.f32 %v2307, 0.0
      %v2340 = vmax.f32 %v2308, 0.0
      %v2341 = vmax.f32 %v2309, 0.0
      %v2342 = vmax.f32 %v2310, 0.0
      %v2343 = vmax.f32 %v2311, 0.0
      %v2344 = vmax.f32 %v2312, 0.0
      %v2345 = vmax.f32 %v2313, 0.0
      %v2346 = vmax.f32 %v2314, 0.0
      %v2347 = vmax.f32 %v2315, 0.0
      %v2348 = vmax.f32 %v2316, 0.0
      %v2349 = vmax.f32 %v2317, 0.0
      %v2350 = vmax.f32 %v2318, 0.0
      %v2351 = vmax.f32 %v2319, 0.0
      %v2352 = vmax.f32 %v2320, 0.0
      %v2353 = vmax.f32 %v2321, 0.0
      %v2354 = vmax.f32 %v2322, 0.0
      %v2355 = vmax.f32 %v2323, 0.0
      %v2356 = vmax.f32 %v2324, 0.0
      %v2357 = vmax.f32 %v2325, 0.0
      %v2358 = vmax.f32 %v2326, 0.0
      %v2359 = vmax.f32 %v2327, 0.0
      %v2360 = vmax.f32 %v2328, 0.0
      %v2361 = vmax.f32 %v2329, 0.0
      %v2362 = vmax.f32 %v2330, 0.0
      %v2363 = vmax.f32 %v2331, 0.0
      %v2364 = vmax.f32 %v2332, 0.0
      %v2365 = vmax.f32 %v2333, 0.0
      %v2366 = vmax.f32 %v2334, 0.0
      %v2367 = vmax.f32 %v2335, 0.0
      %v2368 = vmax.f32 %v2336, 0.0
      %v2369 = vmax.f32 %v2337, 0.0
      %v2370 = vmax.f32 %v2338, 0.0
      %v2371 = vpack.c.bf16 %v2341, %v2339
      %v2372 = vpack.c.bf16 %v2342, %v2340
      %v2373 = vpack.c.bf16 %v2345, %v2343
      %v2374 = vpack.c.bf16 %v2346, %v2344
      %v2375 = vpack.c.bf16 %v2349, %v2347
      %v2376 = vpack.c.bf16 %v2350, %v2348
      %v2377 = vpack.c.bf16 %v2353, %v2351
      %v2378 = vpack.c.bf16 %v2354, %v2352
      %v2379 = vpack.c.bf16 %v2357, %v2355
      %v2380 = vpack.c.bf16 %v2358, %v2356
      %v2381 = vpack.c.bf16 %v2361, %v2359
      %v2382 = vpack.c.bf16 %v2362, %v2360
      %v2383 = vpack.c.bf16 %v2365, %v2363
      %v2384 = vpack.c.bf16 %v2366, %v2364
      %v2385 = vpack.c.bf16 %v2369, %v2367
      %v2386 = vpack.c.bf16 %v2370, %v2368
      %v2387 = vld [vmem:[%s6] sm:$0xf]
      %v2388 = vld [vmem:[%s6 + $0x4] sm:$0xf]
      %v2389 = vld [vmem:[%s6 + $0x8] sm:$0xf]
      %v2390 = vld [vmem:[%s6 + $0xc] sm:$0xf]
      %v2391 = vld [vmem:[%s6 + $0x10] sm:$0xf]
      %v2392 = vld [vmem:[%s6 + $0x14] sm:$0xf]
      %v2393 = vld [vmem:[%s6 + $0x18] sm:$0xf]
      %v2394 = vld [vmem:[%s6 + $0x1c] sm:$0xf]
      %v2395 = vld [vmem:[%s6 + $0x20] sm:$0xf]
      %v2396 = vld [vmem:[%s6 + $0x24] sm:$0xf]
      %v2397 = vld [vmem:[%s6 + $0x28] sm:$0xf]
      %v2398 = vld [vmem:[%s6 + $0x2c] sm:$0xf]
      %v2399 = vld [vmem:[%s6 + $0x30] sm:$0xf]
      %v2400 = vld [vmem:[%s6 + $0x34] sm:$0xf]
      %v2401 = vld [vmem:[%s6 + $0x38] sm:$0xf]
      %v2402 = vld [vmem:[%s6 + $0x3c] sm:$0xf]
      %v2403 = vld [vmem:[%s6 + $0x40] sm:$0xf]
      %v2404 = vld [vmem:[%s6 + $0x44] sm:$0xf]
      %v2405 = vld [vmem:[%s6 + $0x48] sm:$0xf]
      %v2406 = vld [vmem:[%s6 + $0x4c] sm:$0xf]
      %v2407 = vld [vmem:[%s6 + $0x50] sm:$0xf]
      %v2408 = vld [vmem:[%s6 + $0x54] sm:$0xf]
      %v2409 = vld [vmem:[%s6 + $0x58] sm:$0xf]
      %v2410 = vld [vmem:[%s6 + $0x5c] sm:$0xf]
      %v2411 = vld [vmem:[%s6 + $0x60] sm:$0xf]
      %v2412 = vld [vmem:[%s6 + $0x64] sm:$0xf]
      %v2413 = vld [vmem:[%s6 + $0x68] sm:$0xf]
      %v2414 = vld [vmem:[%s6 + $0x6c] sm:$0xf]
      %v2415 = vld [vmem:[%s6 + $0x70] sm:$0xf]
      %v2416 = vld [vmem:[%s6 + $0x74] sm:$0xf]
      %v2417 = vld [vmem:[%s6 + $0x78] sm:$0xf]
      %v2418 = vld [vmem:[%s6 + $0x7c] sm:$0xf]
      %v2419 = vld [vmem:[%s7] sm:$0x1]
      %v2421 = vperm.slane %v2419, 0
      %v2455 = vunpack.c.l.b16 %v2387
      %v2456 = vunpack.c.l.b16 %v2388
      %v2457 = vunpack.c.l.b16 %v2389
      %v2458 = vunpack.c.l.b16 %v2390
      %v2459 = vunpack.c.l.b16 %v2391
      %v2460 = vunpack.c.l.b16 %v2392
      %v2461 = vunpack.c.l.b16 %v2393
      %v2462 = vunpack.c.l.b16 %v2394
      %v2463 = vunpack.c.l.b16 %v2395
      %v2464 = vunpack.c.l.b16 %v2396
      %v2465 = vunpack.c.l.b16 %v2397
      %v2466 = vunpack.c.l.b16 %v2398
      %v2467 = vunpack.c.l.b16 %v2399
      %v2468 = vunpack.c.l.b16 %v2400
      %v2469 = vunpack.c.l.b16 %v2401
      %v2470 = vunpack.c.l.b16 %v2402
      %v2471 = vunpack.c.l.b16 %v2403
      %v2472 = vunpack.c.l.b16 %v2404
      %v2473 = vunpack.c.l.b16 %v2405
      %v2474 = vunpack.c.l.b16 %v2406
      %v2475 = vunpack.c.l.b16 %v2407
      %v2476 = vunpack.c.l.b16 %v2408
      %v2477 = vunpack.c.l.b16 %v2409
      %v2478 = vunpack.c.l.b16 %v2410
      %v2479 = vunpack.c.l.b16 %v2411
      %v2480 = vunpack.c.l.b16 %v2412
      %v2481 = vunpack.c.l.b16 %v2413
      %v2482 = vunpack.c.l.b16 %v2414
      %v2483 = vunpack.c.l.b16 %v2415
      %v2484 = vunpack.c.l.b16 %v2416
      %v2485 = vunpack.c.l.b16 %v2417
      %v2486 = vunpack.c.l.b16 %v2418
      %v2487 = vpack.c.b16 %v2456, %v2455
      %v2488 = vpack.c.b16 %v2458, %v2457
      %v2489 = vpack.c.b16 %v2460, %v2459
      %v2490 = vpack.c.b16 %v2462, %v2461
      %v2491 = vpack.c.b16 %v2464, %v2463
      %v2492 = vpack.c.b16 %v2466, %v2465
      %v2493 = vpack.c.b16 %v2468, %v2467
      %v2494 = vpack.c.b16 %v2470, %v2469
      %v2495 = vpack.c.b16 %v2472, %v2471
      %v2496 = vpack.c.b16 %v2474, %v2473
      %v2497 = vpack.c.b16 %v2476, %v2475
      %v2498 = vpack.c.b16 %v2478, %v2477
      %v2499 = vpack.c.b16 %v2480, %v2479
      %v2500 = vpack.c.b16 %v2482, %v2481
      %v2501 = vpack.c.b16 %v2484, %v2483
      %v2502 = vpack.c.b16 %v2486, %v2485
      %2519 = vmatpush.bf16.msra.mxu0 %v2494
      %2520 = vmatpush.bf16.msra.mxu0 %v2493
      %2521 = vmatpush.bf16.msra.mxu0 %v2492
      %2522 = vmatpush.bf16.msra.mxu0 %v2491
      %2523 = vmatpush.bf16.msra.mxu0 %v2490
      %2524 = vmatpush.bf16.msra.mxu0 %v2489
      %2525 = vmatpush.bf16.msra.mxu0 %v2488
      %2526 = vmatpush.bf16.msra.mxu0 %v2487
      %2527 = vmatmul.bf16.gmra.mxu0 %v2371
      %v2528 = vpop.f32.mrf.mxu0
      %v2529 = vadd.f32 %v2421, %v2528
      %v2530 = vpop.f32.mrf.mxu0
      %v2531 = vadd.f32 %v2421, %v2530
      %2532 = vmatmul.bf16.gmra.mxu0 %v2373
      %v2533 = vpop.f32.mrf.mxu0
      %v2534 = vadd.f32 %v2421, %v2533
      %v2535 = vpop.f32.mrf.mxu0
      %v2536 = vadd.f32 %v2421, %v2535
      %2537 = vmatmul.bf16.gmra.mxu0 %v2375
      %v2538 = vpop.f32.mrf.mxu0
      %v2539 = vadd.f32 %v2421, %v2538
      %v2540 = vpop.f32.mrf.mxu0
      %v2541 = vadd.f32 %v2421, %v2540
      %2542 = vmatmul.bf16.gmra.mxu0 %v2377
      %v2543 = vpop.f32.mrf.mxu0
      %v2544 = vadd.f32 %v2421, %v2543
      %v2545 = vpop.f32.mrf.mxu0
      %v2546 = vadd.f32 %v2421, %v2545
      %2547 = vmatmul.bf16.gmra.mxu0 %v2379
      %v2548 = vpop.f32.mrf.mxu0
      %v2549 = vadd.f32 %v2421, %v2548
      %v2550 = vpop.f32.mrf.mxu0
      %v2551 = vadd.f32 %v2421, %v2550
      %2552 = vmatmul.bf16.gmra.mxu0 %v2381
      %v2553 = vpop.f32.mrf.mxu0
      %v2554 = vadd.f32 %v2421, %v2553
      %v2555 = vpop.f32.mrf.mxu0
      %v2556 = vadd.f32 %v2421, %v2555
      %2557 = vmatmul.bf16.gmra.mxu0 %v2383
      %v2558 = vpop.f32.mrf.mxu0
      %v2559 = vadd.f32 %v2421, %v2558
      %v2560 = vpop.f32.mrf.mxu0
      %v2561 = vadd.f32 %v2421, %v2560
      %2562 = vmatmul.bf16.gmra.mxu0 %v2385
      %v2563 = vpop.f32.mrf.mxu0
      %v2564 = vadd.f32 %v2421, %v2563
      %v2565 = vpop.f32.mrf.mxu0
      %v2566 = vadd.f32 %v2421, %v2565
      %2567 = vdwg.mxu0
      %2568 = vmatpush.bf16.msra.mxu0 %v2502
      %2569 = vmatpush.bf16.msra.mxu0 %v2501
      %2570 = vmatpush.bf16.msra.mxu0 %v2500
      %2571 = vmatpush.bf16.msra.mxu0 %v2499
      %2572 = vmatpush.bf16.msra.mxu0 %v2498
      %2573 = vmatpush.bf16.msra.mxu0 %v2497
      %2574 = vmatpush.bf16.msra.mxu0 %v2496
      %2575 = vmatpush.bf16.msra.mxu0 %v2495
      %2576 = vmatmul.bf16.gmra.mxu0 %v2372
      %v2577 = vpop.f32.mrf.mxu0
      %v2578 = vadd.f32 %v2529, %v2577
      %v2579 = vpop.f32.mrf.mxu0
      %v2580 = vadd.f32 %v2531, %v2579
      %2581 = vmatmul.bf16.gmra.mxu0 %v2374
      %v2582 = vpop.f32.mrf.mxu0
      %v2583 = vadd.f32 %v2534, %v2582
      %v2584 = vpop.f32.mrf.mxu0
      %v2585 = vadd.f32 %v2536, %v2584
      %2586 = vmatmul.bf16.gmra.mxu0 %v2376
      %v2587 = vpop.f32.mrf.mxu0
      %v2588 = vadd.f32 %v2539, %v2587
      %v2589 = vpop.f32.mrf.mxu0
      %v2590 = vadd.f32 %v2541, %v2589
      %2591 = vmatmul.bf16.gmra.mxu0 %v2378
      %v2592 = vpop.f32.mrf.mxu0
      %v2593 = vadd.f32 %v2544, %v2592
      %v2594 = vpop.f32.mrf.mxu0
      %v2595 = vadd.f32 %v2546, %v2594
      %2596 = vmatmul.bf16.gmra.mxu0 %v2380
      %v2597 = vpop.f32.mrf.mxu0
      %v2598 = vadd.f32 %v2549, %v2597
      %v2599 = vpop.f32.mrf.mxu0
      %v2600 = vadd.f32 %v2551, %v2599
      %2601 = vmatmul.bf16.gmra.mxu0 %v2382
      %v2602 = vpop.f32.mrf.mxu0
      %v2603 = vadd.f32 %v2554, %v2602
      %v2604 = vpop.f32.mrf.mxu0
      %v2605 = vadd.f32 %v2556, %v2604
      %2606 = vmatmul.bf16.gmra.mxu0 %v2384
      %v2607 = vpop.f32.mrf.mxu0
      %v2608 = vadd.f32 %v2559, %v2607
      %v2609 = vpop.f32.mrf.mxu0
      %v2610 = vadd.f32 %v2561, %v2609
      %2611 = vmatmul.bf16.gmra.mxu0 %v2386
      %v2612 = vpop.f32.mrf.mxu0
      %v2613 = vadd.f32 %v2564, %v2612
      %v2614 = vpop.f32.mrf.mxu0
      %v2615 = vadd.f32 %v2566, %v2614
      %2616 = vdwg.mxu0
      %v2617 = vmul.f32 %v2578, 0.5
      %v2618 = vmul.f32 %v2580, 0.5
      %v2619 = vmul.f32 %v2583, 0.5
      %v2620 = vmul.f32 %v2585, 0.5
      %v2621 = vmul.f32 %v2588, 0.5
      %v2622 = vmul.f32 %v2590, 0.5
      %v2623 = vmul.f32 %v2593, 0.5
      %v2624 = vmul.f32 %v2595, 0.5
      %v2625 = vmul.f32 %v2598, 0.5
      %v2626 = vmul.f32 %v2600, 0.5
      %v2627 = vmul.f32 %v2603, 0.5
      %v2628 = vmul.f32 %v2605, 0.5
      %v2629 = vmul.f32 %v2608, 0.5
      %v2630 = vmul.f32 %v2610, 0.5
      %v2631 = vmul.f32 %v2613, 0.5
      %v2632 = vmul.f32 %v2615, 0.5
      %v2633 = vmul.f32 %v2617, 1.442695
      %v2634 = vpow.pop %v2633
      %v2635 = vmul.f32 %v2618, 1.442695
      %v2636 = vpow.pop %v2635
      %v2637 = vmul.f32 %v2619, 1.442695
      %v2638 = vpow.pop %v2637
      %v2639 = vmul.f32 %v2620, 1.442695
      %v2640 = vpow.pop %v2639
      %v2641 = vmul.f32 %v2621, 1.442695
      %v2642 = vpow.pop %v2641
      %v2643 = vmul.f32 %v2622, 1.442695
      %v2644 = vpow.pop %v2643
      %v2645 = vmul.f32 %v2623, 1.442695
      %v2646 = vpow.pop %v2645
      %v2647 = vmul.f32 %v2624, 1.442695
      %v2648 = vpow.pop %v2647
      %v2649 = vmul.f32 %v2625, 1.442695
      %v2650 = vpow.pop %v2649
      %v2651 = vmul.f32 %v2626, 1.442695
      %v2652 = vpow.pop %v2651
      %v2653 = vmul.f32 %v2627, 1.442695
      %v2654 = vpow.pop %v2653
      %v2655 = vmul.f32 %v2628, 1.442695
      %v2656 = vpow.pop %v2655
      %v2657 = vmul.f32 %v2629, 1.442695
      %v2658 = vpow.pop %v2657
      %v2659 = vmul.f32 %v2630, 1.442695
      %v2660 = vpow.pop %v2659
      %v2661 = vmul.f32 %v2631, 1.442695
      %v2662 = vpow.pop %v2661
      %v2663 = vmul.f32 %v2632, 1.442695
      %v2664 = vpow.pop %v2663
      %2681 = vrot.lane.b32.xlu0 %v2634, 108
      %v2682 = vpop.permute.xlu0 %2681
      %2683 = vrot.lane.b32.xlu0 %v2636, 108
      %v2684 = vpop.permute.xlu0 %2683
      %2685 = vrot.lane.b32.xlu0 %v2638, 108
      %v2686 = vpop.permute.xlu0 %2685
      %2687 = vrot.lane.b32.xlu0 %v2640, 108
      %v2688 = vpop.permute.xlu0 %2687
      %2689 = vrot.lane.b32.xlu0 %v2642, 108
      %v2690 = vpop.permute.xlu0 %2689
      %2691 = vrot.lane.b32.xlu0 %v2644, 108
      %v2692 = vpop.permute.xlu0 %2691
      %2693 = vrot.lane.b32.xlu0 %v2646, 108
      %v2694 = vpop.permute.xlu0 %2693
      %2695 = vrot.lane.b32.xlu0 %v2648, 108
      %v2696 = vpop.permute.xlu0 %2695
      %2697 = vrot.lane.b32.xlu0 %v2650, 108
      %v2698 = vpop.permute.xlu0 %2697
      %2699 = vrot.lane.b32.xlu0 %v2652, 108
      %v2700 = vpop.permute.xlu0 %2699
      %2701 = vrot.lane.b32.xlu0 %v2654, 108
      %v2702 = vpop.permute.xlu0 %2701
      %2703 = vrot.lane.b32.xlu0 %v2656, 108
      %v2704 = vpop.permute.xlu0 %2703
      %2705 = vrot.lane.b32.xlu0 %v2658, 108
      %v2706 = vpop.permute.xlu0 %2705
      %2707 = vrot.lane.b32.xlu0 %v2660, 108
      %v2708 = vpop.permute.xlu0 %2707
      %2709 = vrot.lane.b32.xlu0 %v2662, 108
      %v2710 = vpop.permute.xlu0 %2709
      %2711 = vrot.lane.b32.xlu0 %v2664, 108
      %v2712 = vpop.permute.xlu0 %2711
      %v2729 = vmul.f32 %v692, %v2682
      %v2730 = vmul.f32 %v693, %v2684
      %v2731 = vmul.f32 %v694, %v2686
      %v2732 = vmul.f32 %v695, %v2688
      %v2733 = vmul.f32 %v696, %v2690
      %v2734 = vmul.f32 %v697, %v2692
      %v2735 = vmul.f32 %v698, %v2694
      %v2736 = vmul.f32 %v699, %v2696
      %v2737 = vmul.f32 %v700, %v2698
      %v2738 = vmul.f32 %v701, %v2700
      %v2739 = vmul.f32 %v702, %v2702
      %v2740 = vmul.f32 %v703, %v2704
      %v2741 = vmul.f32 %v704, %v2706
      %v2742 = vmul.f32 %v705, %v2708
      %v2743 = vmul.f32 %v706, %v2710
      %v2744 = vmul.f32 %v707, %v2712
      %v2745 = vadd.f32 %v2578, %v2729
      %v2746 = vadd.f32 %v2580, %v2730
      %v2747 = vadd.f32 %v2583, %v2731
      %v2748 = vadd.f32 %v2585, %v2732
      %v2749 = vadd.f32 %v2588, %v2733
      %v2750 = vadd.f32 %v2590, %v2734
      %v2751 = vadd.f32 %v2593, %v2735
      %v2752 = vadd.f32 %v2595, %v2736
      %v2753 = vadd.f32 %v2598, %v2737
      %v2754 = vadd.f32 %v2600, %v2738
      %v2755 = vadd.f32 %v2603, %v2739
      %v2756 = vadd.f32 %v2605, %v2740
      %v2757 = vadd.f32 %v2608, %v2741
      %v2758 = vadd.f32 %v2610, %v2742
      %v2759 = vadd.f32 %v2613, %v2743
      %v2760 = vadd.f32 %v2615, %v2744
      %v2761 = vpack.c.bf16 %v2746, %v2745
      %v2762 = vpack.c.bf16 %v2748, %v2747
      %v2763 = vpack.c.bf16 %v2750, %v2749
      %v2764 = vpack.c.bf16 %v2752, %v2751
      %v2765 = vpack.c.bf16 %v2754, %v2753
      %v2766 = vpack.c.bf16 %v2756, %v2755
      %v2767 = vpack.c.bf16 %v2758, %v2757
      %v2768 = vpack.c.bf16 %v2760, %v2759
      %v2769 = vld [vmem:[%s8] sm:$0xff]
      %v2770 = vld [vmem:[%s8 + $0x8] sm:$0xff]
      %v2771 = vld [vmem:[%s8 + $0x10] sm:$0x33]
      %v2775 = vunpack.c.l.b16 %v2769
      %v2776 = vunpack.c.h.b16 %v2769
      %v2777 = vunpack.c.l.b16 %v2770
      %v2778 = vunpack.c.h.b16 %v2770
      %v2779 = vunpack.c.l.b16 %v2771
      %v2780 = vunpack.c.h.b16 %v2771
      %v2781 = vpack.c.b16 %v2777, %v2775
      %v2782 = vpack.c.b16 %v2778, %v2776
      %v2783 = vpack.c.b16 %v2779, %v2779
      %v2784 = vpack.c.b16 %v2780, %v2780
      %vm2787 = vcmask 162816
      %v2789 = vsel %vm2787, %v2761, 0
      %v2792 = vsel %vm2787, %v2762, 0
      %v2795 = vsel %vm2787, %v2763, 0
      %v2798 = vsel %vm2787, %v2764, 0
      %v2801 = vsel %vm2787, %v2765, 0
      %v2804 = vsel %vm2787, %v2766, 0
      %v2807 = vsel %vm2787, %v2767, 0
      %v2810 = vsel %vm2787, %v2768, 0
      %vm2812 = vcmask 1041408
      %v2814 = vsel %vm2812, %v2783, 0
      %v2817 = vsel %vm2812, %v2784, 0
      %2819 = vmatpush.bf16.msra.mxu0 0
      %2820 = vmatpush.bf16.msra.mxu0 0
      %2821 = vmatpush.bf16.msra.mxu0 0
      %2822 = vmatpush.bf16.msra.mxu0 0
      %2823 = vmatpush.bf16.msra.mxu0 0
      %2824 = vmatpush.bf16.msra.mxu0 0
      %2825 = vmatpush.bf16.msra.mxu0 %v2814
      %2826 = vmatpush.bf16.msra.mxu0 %v2781
      %2827 = vmatmul.bf16.gmra.mxu0 %v2789
      %v2828 = vpop.f32.mrf.mxu0
      %v2829 = vadd.f32 %v914, %v2828
      %v2830 = vpop.f32.mrf.mxu0
      %v2831 = vadd.f32 %v916, %v2830
      %2832 = vmatmul.bf16.gmra.mxu0 %v2792
      %v2833 = vpop.f32.mrf.mxu0
      %v2834 = vadd.f32 %v919, %v2833
      %v2835 = vpop.f32.mrf.mxu0
      %v2836 = vadd.f32 %v921, %v2835
      %2837 = vmatmul.bf16.gmra.mxu0 %v2795
      %v2838 = vpop.f32.mrf.mxu0
      %v2839 = vadd.f32 %v924, %v2838
      %v2840 = vpop.f32.mrf.mxu0
      %v2841 = vadd.f32 %v926, %v2840
      %2842 = vmatmul.bf16.gmra.mxu0 %v2798
      %v2843 = vpop.f32.mrf.mxu0
      %v2844 = vadd.f32 %v929, %v2843
      %v2845 = vpop.f32.mrf.mxu0
      %v2846 = vadd.f32 %v931, %v2845
      %2847 = vmatmul.bf16.gmra.mxu0 %v2801
      %v2848 = vpop.f32.mrf.mxu0
      %v2849 = vadd.f32 %v934, %v2848
      %v2850 = vpop.f32.mrf.mxu0
      %v2851 = vadd.f32 %v936, %v2850
      %2852 = vmatmul.bf16.gmra.mxu0 %v2804
      %v2853 = vpop.f32.mrf.mxu0
      %v2854 = vadd.f32 %v939, %v2853
      %v2855 = vpop.f32.mrf.mxu0
      %v2856 = vadd.f32 %v941, %v2855
      %2857 = vmatmul.bf16.gmra.mxu0 %v2807
      %v2858 = vpop.f32.mrf.mxu0
      %v2859 = vadd.f32 %v944, %v2858
      %v2860 = vpop.f32.mrf.mxu0
      %v2861 = vadd.f32 %v946, %v2860
      %2862 = vmatmul.bf16.gmra.mxu0 %v2810
      %v2863 = vpop.f32.mrf.mxu0
      %v2864 = vadd.f32 %v949, %v2863
      %v2865 = vpop.f32.mrf.mxu0
      %v2866 = vadd.f32 %v951, %v2865
      %2867 = vdwg.mxu0
      %2868 = vmatpush.bf16.msra.mxu0 0
      %2869 = vmatpush.bf16.msra.mxu0 0
      %2870 = vmatpush.bf16.msra.mxu0 0
      %2871 = vmatpush.bf16.msra.mxu0 0
      %2872 = vmatpush.bf16.msra.mxu0 0
      %2873 = vmatpush.bf16.msra.mxu0 0
      %2874 = vmatpush.bf16.msra.mxu0 %v2817
      %2875 = vmatpush.bf16.msra.mxu0 %v2782
      %2876 = vmatmul.bf16.gmra.mxu0 %v2789
      %v2877 = vpop.f32.mrf.mxu0
      %v2878 = vadd.f32 %v963, %v2877
      %v2879 = vpop.f32.mrf.mxu0
      %v2880 = vadd.f32 %v965, %v2879
      %2881 = vmatmul.bf16.gmra.mxu0 %v2792
      %v2882 = vpop.f32.mrf.mxu0
      %v2883 = vadd.f32 %v968, %v2882
      %v2884 = vpop.f32.mrf.mxu0
      %v2885 = vadd.f32 %v970, %v2884
      %2886 = vmatmul.bf16.gmra.mxu0 %v2795
      %v2887 = vpop.f32.mrf.mxu0
      %v2888 = vadd.f32 %v973, %v2887
      %v2889 = vpop.f32.mrf.mxu0
      %v2890 = vadd.f32 %v975, %v2889
      %2891 = vmatmul.bf16.gmra.mxu0 %v2798
      %v2892 = vpop.f32.mrf.mxu0
      %v2893 = vadd.f32 %v978, %v2892
      %v2894 = vpop.f32.mrf.mxu0
      %v2895 = vadd.f32 %v980, %v2894
      %2896 = vmatmul.bf16.gmra.mxu0 %v2801
      %v2897 = vpop.f32.mrf.mxu0
      %v2898 = vadd.f32 %v983, %v2897
      %v2899 = vpop.f32.mrf.mxu0
      %v2900 = vadd.f32 %v985, %v2899
      %2901 = vmatmul.bf16.gmra.mxu0 %v2804
      %v2902 = vpop.f32.mrf.mxu0
      %v2903 = vadd.f32 %v988, %v2902
      %v2904 = vpop.f32.mrf.mxu0
      %v2905 = vadd.f32 %v990, %v2904
      %2906 = vmatmul.bf16.gmra.mxu0 %v2807
      %v2907 = vpop.f32.mrf.mxu0
      %v2908 = vadd.f32 %v993, %v2907
      %v2909 = vpop.f32.mrf.mxu0
      %v2910 = vadd.f32 %v995, %v2909
      %2911 = vmatmul.bf16.gmra.mxu0 %v2810
      %v2912 = vpop.f32.mrf.mxu0
      %v2913 = vadd.f32 %v998, %v2912
      %v2914 = vpop.f32.mrf.mxu0
      %v2915 = vadd.f32 %v1000, %v2914
      %2916 = vdwg.mxu0
      %v2917 = vld [vmem:[%s9] sm:$0x3]
      %v2919 = vperm.slane %v2917, 0
      %v2920 = vperm.slane %v2917, 1
      %v2923 = vadd.f32 %v2829, %v2919
      %v2924 = vadd.f32 %v2878, %v2920
      %v2925 = vadd.f32 %v2831, %v2919
      %v2926 = vadd.f32 %v2880, %v2920
      %v2927 = vadd.f32 %v2834, %v2919
      %v2928 = vadd.f32 %v2883, %v2920
      %v2929 = vadd.f32 %v2836, %v2919
      %v2930 = vadd.f32 %v2885, %v2920
      %v2931 = vadd.f32 %v2839, %v2919
      %v2932 = vadd.f32 %v2888, %v2920
      %v2933 = vadd.f32 %v2841, %v2919
      %v2934 = vadd.f32 %v2890, %v2920
      %v2935 = vadd.f32 %v2844, %v2919
      %v2936 = vadd.f32 %v2893, %v2920
      %v2937 = vadd.f32 %v2846, %v2919
      %v2938 = vadd.f32 %v2895, %v2920
      %v2939 = vadd.f32 %v2849, %v2919
      %v2940 = vadd.f32 %v2898, %v2920
      %v2941 = vadd.f32 %v2851, %v2919
      %v2942 = vadd.f32 %v2900, %v2920
      %v2943 = vadd.f32 %v2854, %v2919
      %v2944 = vadd.f32 %v2903, %v2920
      %v2945 = vadd.f32 %v2856, %v2919
      %v2946 = vadd.f32 %v2905, %v2920
      %v2947 = vadd.f32 %v2859, %v2919
      %v2948 = vadd.f32 %v2908, %v2920
      %v2949 = vadd.f32 %v2861, %v2919
      %v2950 = vadd.f32 %v2910, %v2920
      %v2951 = vadd.f32 %v2864, %v2919
      %v2952 = vadd.f32 %v2913, %v2920
      %v2953 = vadd.f32 %v2866, %v2919
      %v2954 = vadd.f32 %v2915, %v2920
      %v2955 = vmax.f32 %v2923, 0.0
      %v2956 = vmax.f32 %v2924, 0.0
      %v2957 = vmax.f32 %v2925, 0.0
      %v2958 = vmax.f32 %v2926, 0.0
      %v2959 = vmax.f32 %v2927, 0.0
      %v2960 = vmax.f32 %v2928, 0.0
      %v2961 = vmax.f32 %v2929, 0.0
      %v2962 = vmax.f32 %v2930, 0.0
      %v2963 = vmax.f32 %v2931, 0.0
      %v2964 = vmax.f32 %v2932, 0.0
      %v2965 = vmax.f32 %v2933, 0.0
      %v2966 = vmax.f32 %v2934, 0.0
      %v2967 = vmax.f32 %v2935, 0.0
      %v2968 = vmax.f32 %v2936, 0.0
      %v2969 = vmax.f32 %v2937, 0.0
      %v2970 = vmax.f32 %v2938, 0.0
      %v2971 = vmax.f32 %v2939, 0.0
      %v2972 = vmax.f32 %v2940, 0.0
      %v2973 = vmax.f32 %v2941, 0.0
      %v2974 = vmax.f32 %v2942, 0.0
      %v2975 = vmax.f32 %v2943, 0.0
      %v2976 = vmax.f32 %v2944, 0.0
      %v2977 = vmax.f32 %v2945, 0.0
      %v2978 = vmax.f32 %v2946, 0.0
      %v2979 = vmax.f32 %v2947, 0.0
      %v2980 = vmax.f32 %v2948, 0.0
      %v2981 = vmax.f32 %v2949, 0.0
      %v2982 = vmax.f32 %v2950, 0.0
      %v2983 = vmax.f32 %v2951, 0.0
      %v2984 = vmax.f32 %v2952, 0.0
      %v2985 = vmax.f32 %v2953, 0.0
      %v2986 = vmax.f32 %v2954, 0.0
      %v2987 = vpack.c.bf16 %v2957, %v2955
      %v2988 = vpack.c.bf16 %v2958, %v2956
      %v2989 = vpack.c.bf16 %v2961, %v2959
      %v2990 = vpack.c.bf16 %v2962, %v2960
      %v2991 = vpack.c.bf16 %v2965, %v2963
      %v2992 = vpack.c.bf16 %v2966, %v2964
      %v2993 = vpack.c.bf16 %v2969, %v2967
      %v2994 = vpack.c.bf16 %v2970, %v2968
      %v2995 = vpack.c.bf16 %v2973, %v2971
      %v2996 = vpack.c.bf16 %v2974, %v2972
      %v2997 = vpack.c.bf16 %v2977, %v2975
      %v2998 = vpack.c.bf16 %v2978, %v2976
      %v2999 = vpack.c.bf16 %v2981, %v2979
      %v3000 = vpack.c.bf16 %v2982, %v2980
      %v3001 = vpack.c.bf16 %v2985, %v2983
      %v3002 = vpack.c.bf16 %v2986, %v2984
      %v3003 = vld [vmem:[%s10] sm:$0xff]
      %v3004 = vld [vmem:[%s10 + $0x8] sm:$0xff]
      %v3005 = vld [vmem:[%s10 + $0x10] sm:$0xff]
      %v3006 = vld [vmem:[%s10 + $0x18] sm:$0xf]
      %v3007 = vld [vmem:[%s10 + $0x1c] sm:$0xff]
      %v3008 = vld [vmem:[%s10 + $0x24] sm:$0xff]
      %v3009 = vld [vmem:[%s10 + $0x2c] sm:$0xff]
      %v3010 = vld [vmem:[%s10 + $0x34] sm:$0xf]
      %v3011 = vld [vmem:[%s10 + $0x38] sm:$0xff]
      %v3012 = vld [vmem:[%s10 + $0x40] sm:$0xff]
      %v3013 = vld [vmem:[%s10 + $0x48] sm:$0xff]
      %v3014 = vld [vmem:[%s10 + $0x50] sm:$0xf]
      %v3015 = vld [vmem:[%s10 + $0x54] sm:$0xff]
      %v3016 = vld [vmem:[%s10 + $0x5c] sm:$0xff]
      %v3017 = vld [vmem:[%s10 + $0x64] sm:$0xff]
      %v3018 = vld [vmem:[%s10 + $0x6c] sm:$0xf]
      %v3019 = vld [vmem:[%s10 + $0x70] sm:$0xff]
      %v3020 = vld [vmem:[%s10 + $0x78] sm:$0xff]
      %v3021 = vld [vmem:[%s10 + $0x80] sm:$0xff]
      %v3022 = vld [vmem:[%s10 + $0x88] sm:$0xf]
      %v3023 = vld [vmem:[%s10 + $0x8c] sm:$0xff]
      %v3024 = vld [vmem:[%s10 + $0x94] sm:$0xff]
      %v3025 = vld [vmem:[%s10 + $0x9c] sm:$0xff]
      %v3026 = vld [vmem:[%s10 + $0xa4] sm:$0xf]
      %v3027 = vld [vmem:[%s10 + $0xa8] sm:$0xff]
      %v3028 = vld [vmem:[%s10 + $0xb0] sm:$0xff]
      %v3029 = vld [vmem:[%s10 + $0xb8] sm:$0xff]
      %v3030 = vld [vmem:[%s10 + $0xc0] sm:$0xf]
      %v3031 = vld [vmem:[%s10 + $0xc4] sm:$0xff]
      %v3032 = vld [vmem:[%s10 + $0xcc] sm:$0xff]
      %v3033 = vld [vmem:[%s10 + $0xd4] sm:$0xff]
      %v3034 = vld [vmem:[%s10 + $0xdc] sm:$0xf]
      %v3035 = vld [vmem:[%s10 + $0xe0] sm:$0xff]
      %v3036 = vld [vmem:[%s10 + $0xe8] sm:$0xff]
      %v3037 = vld [vmem:[%s10 + $0xf0] sm:$0xff]
      %v3038 = vld [vmem:[%s10 + $0xf8] sm:$0xf]
      %v3039 = vld [vmem:[%s10 + $0xfc] sm:$0xff]
      %v3040 = vld [vmem:[%s10 + $0x104] sm:$0xff]
      %v3041 = vld [vmem:[%s10 + $0x10c] sm:$0xff]
      %v3042 = vld [vmem:[%s10 + $0x114] sm:$0xf]
      %v3043 = vld [vmem:[%s10 + $0x118] sm:$0xff]
      %v3044 = vld [vmem:[%s10 + $0x120] sm:$0xff]
      %v3045 = vld [vmem:[%s10 + $0x128] sm:$0xff]
      %v3046 = vld [vmem:[%s10 + $0x130] sm:$0xf]
      %v3047 = vld [vmem:[%s10 + $0x134] sm:$0xff]
      %v3048 = vld [vmem:[%s10 + $0x13c] sm:$0xff]
      %v3049 = vld [vmem:[%s10 + $0x144] sm:$0xff]
      %v3050 = vld [vmem:[%s10 + $0x14c] sm:$0xf]
      %v3051 = vld [vmem:[%s10 + $0x150] sm:$0xff]
      %v3052 = vld [vmem:[%s10 + $0x158] sm:$0xff]
      %v3053 = vld [vmem:[%s10 + $0x160] sm:$0xff]
      %v3054 = vld [vmem:[%s10 + $0x168] sm:$0xf]
      %v3055 = vld [vmem:[%s10 + $0x16c] sm:$0xff]
      %v3056 = vld [vmem:[%s10 + $0x174] sm:$0xff]
      %v3057 = vld [vmem:[%s10 + $0x17c] sm:$0xff]
      %v3058 = vld [vmem:[%s10 + $0x184] sm:$0xf]
      %v3059 = vld [vmem:[%s10 + $0x188] sm:$0xff]
      %v3060 = vld [vmem:[%s10 + $0x190] sm:$0xff]
      %v3061 = vld [vmem:[%s10 + $0x198] sm:$0xff]
      %v3062 = vld [vmem:[%s10 + $0x1a0] sm:$0xf]
      %v3063 = vld [vmem:[%s10 + $0x1a4] sm:$0xff]
      %v3064 = vld [vmem:[%s10 + $0x1ac] sm:$0xff]
      %v3065 = vld [vmem:[%s10 + $0x1b4] sm:$0xff]
      %v3066 = vld [vmem:[%s10 + $0x1bc] sm:$0xf]
      %v3067 = vld [vmem:[%s10 + $0x1c0] sm:$0xff]
      %v3068 = vld [vmem:[%s10 + $0x1c8] sm:$0xff]
      %v3069 = vld [vmem:[%s10 + $0x1d0] sm:$0xff]
      %v3070 = vld [vmem:[%s10 + $0x1d8] sm:$0xf]
      %v3071 = vld [vmem:[%s10 + $0x1dc] sm:$0xff]
      %v3072 = vld [vmem:[%s10 + $0x1e4] sm:$0xff]
      %v3073 = vld [vmem:[%s10 + $0x1ec] sm:$0xff]
      %v3074 = vld [vmem:[%s10 + $0x1f4] sm:$0xf]
      %v3075 = vld [vmem:[%s10 + $0x1f8] sm:$0xff]
      %v3076 = vld [vmem:[%s10 + $0x200] sm:$0xff]
      %v3077 = vld [vmem:[%s10 + $0x208] sm:$0xff]
      %v3078 = vld [vmem:[%s10 + $0x210] sm:$0xf]
      %v3079 = vld [vmem:[%s10 + $0x214] sm:$0xff]
      %v3080 = vld [vmem:[%s10 + $0x21c] sm:$0xff]
      %v3081 = vld [vmem:[%s10 + $0x224] sm:$0xff]
      %v3082 = vld [vmem:[%s10 + $0x22c] sm:$0xf]
      %v3083 = vld [vmem:[%s10 + $0x230] sm:$0xff]
      %v3084 = vld [vmem:[%s10 + $0x238] sm:$0xff]
      %v3085 = vld [vmem:[%s10 + $0x240] sm:$0xff]
      %v3086 = vld [vmem:[%s10 + $0x248] sm:$0xf]
      %v3087 = vld [vmem:[%s10 + $0x24c] sm:$0xff]
      %v3088 = vld [vmem:[%s10 + $0x254] sm:$0xff]
      %v3089 = vld [vmem:[%s10 + $0x25c] sm:$0xff]
      %v3090 = vld [vmem:[%s10 + $0x264] sm:$0xf]
      %v3091 = vld [vmem:[%s10 + $0x268] sm:$0xff]
      %v3092 = vld [vmem:[%s10 + $0x270] sm:$0xff]
      %v3093 = vld [vmem:[%s10 + $0x278] sm:$0xff]
      %v3094 = vld [vmem:[%s10 + $0x280] sm:$0xf]
      %v3095 = vld [vmem:[%s10 + $0x284] sm:$0xff]
      %v3096 = vld [vmem:[%s10 + $0x28c] sm:$0xff]
      %v3097 = vld [vmem:[%s10 + $0x294] sm:$0xff]
      %v3098 = vld [vmem:[%s10 + $0x29c] sm:$0xf]
      %v3099 = vld [vmem:[%s10 + $0x2a0] sm:$0xff]
      %v3100 = vld [vmem:[%s10 + $0x2a8] sm:$0xff]
      %v3101 = vld [vmem:[%s10 + $0x2b0] sm:$0xff]
      %v3102 = vld [vmem:[%s10 + $0x2b8] sm:$0xf]
      %v3103 = vld [vmem:[%s10 + $0x2bc] sm:$0xff]
      %v3104 = vld [vmem:[%s10 + $0x2c4] sm:$0xff]
      %v3105 = vld [vmem:[%s10 + $0x2cc] sm:$0xff]
      %v3106 = vld [vmem:[%s10 + $0x2d4] sm:$0xf]
      %v3107 = vld [vmem:[%s10 + $0x2d8] sm:$0xff]
      %v3108 = vld [vmem:[%s10 + $0x2e0] sm:$0xff]
      %v3109 = vld [vmem:[%s10 + $0x2e8] sm:$0xff]
      %v3110 = vld [vmem:[%s10 + $0x2f0] sm:$0xf]
      %v3111 = vld [vmem:[%s10 + $0x2f4] sm:$0xff]
      %v3112 = vld [vmem:[%s10 + $0x2fc] sm:$0xff]
      %v3113 = vld [vmem:[%s10 + $0x304] sm:$0xff]
      %v3114 = vld [vmem:[%s10 + $0x30c] sm:$0xf]
      %v3115 = vld [vmem:[%s10 + $0x310] sm:$0xff]
      %v3116 = vld [vmem:[%s10 + $0x318] sm:$0xff]
      %v3117 = vld [vmem:[%s10 + $0x320] sm:$0xff]
      %v3118 = vld [vmem:[%s10 + $0x328] sm:$0xf]
      %v3119 = vld [vmem:[%s10 + $0x32c] sm:$0xff]
      %v3120 = vld [vmem:[%s10 + $0x334] sm:$0xff]
      %v3121 = vld [vmem:[%s10 + $0x33c] sm:$0xff]
      %v3122 = vld [vmem:[%s10 + $0x344] sm:$0xf]
      %v3123 = vld [vmem:[%s10 + $0x348] sm:$0xff]
      %v3124 = vld [vmem:[%s10 + $0x350] sm:$0xff]
      %v3125 = vld [vmem:[%s10 + $0x358] sm:$0xff]
      %v3126 = vld [vmem:[%s10 + $0x360] sm:$0xf]
      %v3127 = vld [vmem:[%s10 + $0x364] sm:$0xff]
      %v3128 = vld [vmem:[%s10 + $0x36c] sm:$0xff]
      %v3129 = vld [vmem:[%s10 + $0x374] sm:$0xff]
      %v3130 = vld [vmem:[%s10 + $0x37c] sm:$0xf]
      %v3131 = vld [vmem:[%s11] sm:$0x7f]
      %v3133 = vperm.slane %v3131, 0
      %v3134 = vperm.slane %v3131, 1
      %v3135 = vperm.slane %v3131, 2
      %v3136 = vperm.slane %v3131, 3
      %v3137 = vperm.slane %v3131, 4
      %v3138 = vperm.slane %v3131, 5
      %v3139 = vperm.slane %v3131, 6
      %v3275 = vunpack.c.l.b16 %v3003
      %v3276 = vunpack.c.h.b16 %v3003
      %v3277 = vunpack.c.l.b16 %v3004
      %v3278 = vunpack.c.h.b16 %v3004
      %v3279 = vunpack.c.l.b16 %v3005
      %v3280 = vunpack.c.h.b16 %v3005
      %v3281 = vunpack.c.l.b16 %v3006
      %v3282 = vunpack.c.l.b16 %v3007
      %v3283 = vunpack.c.h.b16 %v3007
      %v3284 = vunpack.c.l.b16 %v3008
      %v3285 = vunpack.c.h.b16 %v3008
      %v3286 = vunpack.c.l.b16 %v3009
      %v3287 = vunpack.c.h.b16 %v3009
      %v3288 = vunpack.c.l.b16 %v3010
      %v3289 = vunpack.c.l.b16 %v3011
      %v3290 = vunpack.c.h.b16 %v3011
      %v3291 = vunpack.c.l.b16 %v3012
      %v3292 = vunpack.c.h.b16 %v3012
      %v3293 = vunpack.c.l.b16 %v3013
      %v3294 = vunpack.c.h.b16 %v3013
      %v3295 = vunpack.c.l.b16 %v3014
      %v3296 = vunpack.c.l.b16 %v3015
      %v3297 = vunpack.c.h.b16 %v3015
      %v3298 = vunpack.c.l.b16 %v3016
      %v3299 = vunpack.c.h.b16 %v3016
      %v3300 = vunpack.c.l.b16 %v3017
      %v3301 = vunpack.c.h.b16 %v3017
      %v3302 = vunpack.c.l.b16 %v3018
      %v3303 = vunpack.c.l.b16 %v3019
      %v3304 = vunpack.c.h.b16 %v3019
      %v3305 = vunpack.c.l.b16 %v3020
      %v3306 = vunpack.c.h.b16 %v3020
      %v3307 = vunpack.c.l.b16 %v3021
      %v3308 = vunpack.c.h.b16 %v3021
      %v3309 = vunpack.c.l.b16 %v3022
      %v3310 = vunpack.c.l.b16 %v3023
      %v3311 = vunpack.c.h.b16 %v3023
      %v3312 = vunpack.c.l.b16 %v3024
      %v3313 = vunpack.c.h.b16 %v3024
      %v3314 = vunpack.c.l.b16 %v3025
      %v3315 = vunpack.c.h.b16 %v3025
      %v3316 = vunpack.c.l.b16 %v3026
      %v3317 = vunpack.c.l.b16 %v3027
      %v3318 = vunpack.c.h.b16 %v3027
      %v3319 = vunpack.c.l.b16 %v3028
      %v3320 = vunpack.c.h.b16 %v3028
      %v3321 = vunpack.c.l.b16 %v3029
      %v3322 = vunpack.c.h.b16 %v3029
      %v3323 = vunpack.c.l.b16 %v3030
      %v3324 = vunpack.c.l.b16 %v3031
      %v3325 = vunpack.c.h.b16 %v3031
      %v3326 = vunpack.c.l.b16 %v3032
      %v3327 = vunpack.c.h.b16 %v3032
      %v3328 = vunpack.c.l.b16 %v3033
      %v3329 = vunpack.c.h.b16 %v3033
      %v3330 = vunpack.c.l.b16 %v3034
      %v3331 = vunpack.c.l.b16 %v3035
      %v3332 = vunpack.c.h.b16 %v3035
      %v3333 = vunpack.c.l.b16 %v3036
      %v3334 = vunpack.c.h.b16 %v3036
      %v3335 = vunpack.c.l.b16 %v3037
      %v3336 = vunpack.c.h.b16 %v3037
      %v3337 = vunpack.c.l.b16 %v3038
      %v3338 = vunpack.c.l.b16 %v3039
      %v3339 = vunpack.c.h.b16 %v3039
      %v3340 = vunpack.c.l.b16 %v3040
      %v3341 = vunpack.c.h.b16 %v3040
      %v3342 = vunpack.c.l.b16 %v3041
      %v3343 = vunpack.c.h.b16 %v3041
      %v3344 = vunpack.c.l.b16 %v3042
      %v3345 = vunpack.c.l.b16 %v3043
      %v3346 = vunpack.c.h.b16 %v3043
      %v3347 = vunpack.c.l.b16 %v3044
      %v3348 = vunpack.c.h.b16 %v3044
      %v3349 = vunpack.c.l.b16 %v3045
      %v3350 = vunpack.c.h.b16 %v3045
      %v3351 = vunpack.c.l.b16 %v3046
      %v3352 = vunpack.c.l.b16 %v3047
      %v3353 = vunpack.c.h.b16 %v3047
      %v3354 = vunpack.c.l.b16 %v3048
      %v3355 = vunpack.c.h.b16 %v3048
      %v3356 = vunpack.c.l.b16 %v3049
      %v3357 = vunpack.c.h.b16 %v3049
      %v3358 = vunpack.c.l.b16 %v3050
      %v3359 = vunpack.c.l.b16 %v3051
      %v3360 = vunpack.c.h.b16 %v3051
      %v3361 = vunpack.c.l.b16 %v3052
      %v3362 = vunpack.c.h.b16 %v3052
      %v3363 = vunpack.c.l.b16 %v3053
      %v3364 = vunpack.c.h.b16 %v3053
      %v3365 = vunpack.c.l.b16 %v3054
      %v3366 = vunpack.c.l.b16 %v3055
      %v3367 = vunpack.c.h.b16 %v3055
      %v3368 = vunpack.c.l.b16 %v3056
      %v3369 = vunpack.c.h.b16 %v3056
      %v3370 = vunpack.c.l.b16 %v3057
      %v3371 = vunpack.c.h.b16 %v3057
      %v3372 = vunpack.c.l.b16 %v3058
      %v3373 = vunpack.c.l.b16 %v3059
      %v3374 = vunpack.c.h.b16 %v3059
      %v3375 = vunpack.c.l.b16 %v3060
      %v3376 = vunpack.c.h.b16 %v3060
      %v3377 = vunpack.c.l.b16 %v3061
      %v3378 = vunpack.c.h.b16 %v3061
      %v3379 = vunpack.c.l.b16 %v3062
      %v3380 = vunpack.c.l.b16 %v3063
      %v3381 = vunpack.c.h.b16 %v3063
      %v3382 = vunpack.c.l.b16 %v3064
      %v3383 = vunpack.c.h.b16 %v3064
      %v3384 = vunpack.c.l.b16 %v3065
      %v3385 = vunpack.c.h.b16 %v3065
      %v3386 = vunpack.c.l.b16 %v3066
      %v3387 = vunpack.c.l.b16 %v3067
      %v3388 = vunpack.c.h.b16 %v3067
      %v3389 = vunpack.c.l.b16 %v3068
      %v3390 = vunpack.c.h.b16 %v3068
      %v3391 = vunpack.c.l.b16 %v3069
      %v3392 = vunpack.c.h.b16 %v3069
      %v3393 = vunpack.c.l.b16 %v3070
      %v3394 = vunpack.c.l.b16 %v3071
      %v3395 = vunpack.c.h.b16 %v3071
      %v3396 = vunpack.c.l.b16 %v3072
      %v3397 = vunpack.c.h.b16 %v3072
      %v3398 = vunpack.c.l.b16 %v3073
      %v3399 = vunpack.c.h.b16 %v3073
      %v3400 = vunpack.c.l.b16 %v3074
      %v3401 = vunpack.c.l.b16 %v3075
      %v3402 = vunpack.c.h.b16 %v3075
      %v3403 = vunpack.c.l.b16 %v3076
      %v3404 = vunpack.c.h.b16 %v3076
      %v3405 = vunpack.c.l.b16 %v3077
      %v3406 = vunpack.c.h.b16 %v3077
      %v3407 = vunpack.c.l.b16 %v3078
      %v3408 = vunpack.c.l.b16 %v3079
      %v3409 = vunpack.c.h.b16 %v3079
      %v3410 = vunpack.c.l.b16 %v3080
      %v3411 = vunpack.c.h.b16 %v3080
      %v3412 = vunpack.c.l.b16 %v3081
      %v3413 = vunpack.c.h.b16 %v3081
      %v3414 = vunpack.c.l.b16 %v3082
      %v3415 = vunpack.c.l.b16 %v3083
      %v3416 = vunpack.c.h.b16 %v3083
      %v3417 = vunpack.c.l.b16 %v3084
      %v3418 = vunpack.c.h.b16 %v3084
      %v3419 = vunpack.c.l.b16 %v3085
      %v3420 = vunpack.c.h.b16 %v3085
      %v3421 = vunpack.c.l.b16 %v3086
      %v3422 = vunpack.c.l.b16 %v3087
      %v3423 = vunpack.c.h.b16 %v3087
      %v3424 = vunpack.c.l.b16 %v3088
      %v3425 = vunpack.c.h.b16 %v3088
      %v3426 = vunpack.c.l.b16 %v3089
      %v3427 = vunpack.c.h.b16 %v3089
      %v3428 = vunpack.c.l.b16 %v3090
      %v3429 = vunpack.c.l.b16 %v3091
      %v3430 = vunpack.c.h.b16 %v3091
      %v3431 = vunpack.c.l.b16 %v3092
      %v3432 = vunpack.c.h.b16 %v3092
      %v3433 = vunpack.c.l.b16 %v3093
      %v3434 = vunpack.c.h.b16 %v3093
      %v3435 = vunpack.c.l.b16 %v3094
      %v3436 = vunpack.c.l.b16 %v3095
      %v3437 = vunpack.c.h.b16 %v3095
      %v3438 = vunpack.c.l.b16 %v3096
      %v3439 = vunpack.c.h.b16 %v3096
      %v3440 = vunpack.c.l.b16 %v3097
      %v3441 = vunpack.c.h.b16 %v3097
      %v3442 = vunpack.c.l.b16 %v3098
      %v3443 = vunpack.c.l.b16 %v3099
      %v3444 = vunpack.c.h.b16 %v3099
      %v3445 = vunpack.c.l.b16 %v3100
      %v3446 = vunpack.c.h.b16 %v3100
      %v3447 = vunpack.c.l.b16 %v3101
      %v3448 = vunpack.c.h.b16 %v3101
      %v3449 = vunpack.c.l.b16 %v3102
      %v3450 = vunpack.c.l.b16 %v3103
      %v3451 = vunpack.c.h.b16 %v3103
      %v3452 = vunpack.c.l.b16 %v3104
      %v3453 = vunpack.c.h.b16 %v3104
      %v3454 = vunpack.c.l.b16 %v3105
      %v3455 = vunpack.c.h.b16 %v3105
      %v3456 = vunpack.c.l.b16 %v3106
      %v3457 = vunpack.c.l.b16 %v3107
      %v3458 = vunpack.c.h.b16 %v3107
      %v3459 = vunpack.c.l.b16 %v3108
      %v3460 = vunpack.c.h.b16 %v3108
      %v3461 = vunpack.c.l.b16 %v3109
      %v3462 = vunpack.c.h.b16 %v3109
      %v3463 = vunpack.c.l.b16 %v3110
      %v3464 = vunpack.c.l.b16 %v3111
      %v3465 = vunpack.c.h.b16 %v3111
      %v3466 = vunpack.c.l.b16 %v3112
      %v3467 = vunpack.c.h.b16 %v3112
      %v3468 = vunpack.c.l.b16 %v3113
      %v3469 = vunpack.c.h.b16 %v3113
      %v3470 = vunpack.c.l.b16 %v3114
      %v3471 = vunpack.c.l.b16 %v3115
      %v3472 = vunpack.c.h.b16 %v3115
      %v3473 = vunpack.c.l.b16 %v3116
      %v3474 = vunpack.c.h.b16 %v3116
      %v3475 = vunpack.c.l.b16 %v3117
      %v3476 = vunpack.c.h.b16 %v3117
      %v3477 = vunpack.c.l.b16 %v3118
      %v3478 = vunpack.c.l.b16 %v3119
      %v3479 = vunpack.c.h.b16 %v3119
      %v3480 = vunpack.c.l.b16 %v3120
      %v3481 = vunpack.c.h.b16 %v3120
      %v3482 = vunpack.c.l.b16 %v3121
      %v3483 = vunpack.c.h.b16 %v3121
      %v3484 = vunpack.c.l.b16 %v3122
      %v3485 = vunpack.c.l.b16 %v3123
      %v3486 = vunpack.c.h.b16 %v3123
      %v3487 = vunpack.c.l.b16 %v3124
      %v3488 = vunpack.c.h.b16 %v3124
      %v3489 = vunpack.c.l.b16 %v3125
      %v3490 = vunpack.c.h.b16 %v3125
      %v3491 = vunpack.c.l.b16 %v3126
      %v3492 = vunpack.c.l.b16 %v3127
      %v3493 = vunpack.c.h.b16 %v3127
      %v3494 = vunpack.c.l.b16 %v3128
      %v3495 = vunpack.c.h.b16 %v3128
      %v3496 = vunpack.c.l.b16 %v3129
      %v3497 = vunpack.c.h.b16 %v3129
      %v3498 = vunpack.c.l.b16 %v3130
      %v3499 = vpack.c.b16 %v3282, %v3275
      %v3500 = vpack.c.b16 %v3283, %v3276
      %v3501 = vpack.c.b16 %v3284, %v3277
      %v3502 = vpack.c.b16 %v3285, %v3278
      %v3503 = vpack.c.b16 %v3286, %v3279
      %v3504 = vpack.c.b16 %v3287, %v3280
      %v3505 = vpack.c.b16 %v3288, %v3281
      %v3506 = vpack.c.b16 %v3296, %v3289
      %v3507 = vpack.c.b16 %v3297, %v3290
      %v3508 = vpack.c.b16 %v3298, %v3291
      %v3509 = vpack.c.b16 %v3299, %v3292
      %v3510 = vpack.c.b16 %v3300, %v3293
      %v3511 = vpack.c.b16 %v3301, %v3294
      %v3512 = vpack.c.b16 %v3302, %v3295
      %v3513 = vpack.c.b16 %v3310, %v3303
      %v3514 = vpack.c.b16 %v3311, %v3304
      %v3515 = vpack.c.b16 %v3312, %v3305
      %v3516 = vpack.c.b16 %v3313, %v3306
      %v3517 = vpack.c.b16 %v3314, %v3307
      %v3518 = vpack.c.b16 %v3315, %v3308
      %v3519 = vpack.c.b16 %v3316, %v3309
      %v3520 = vpack.c.b16 %v3324, %v3317
      %v3521 = vpack.c.b16 %v3325, %v3318
      %v3522 = vpack.c.b16 %v3326, %v3319
      %v3523 = vpack.c.b16 %v3327, %v3320
      %v3524 = vpack.c.b16 %v3328, %v3321
      %v3525 = vpack.c.b16 %v3329, %v3322
      %v3526 = vpack.c.b16 %v3330, %v3323
      %v3527 = vpack.c.b16 %v3338, %v3331
      %v3528 = vpack.c.b16 %v3339, %v3332
      %v3529 = vpack.c.b16 %v3340, %v3333
      %v3530 = vpack.c.b16 %v3341, %v3334
      %v3531 = vpack.c.b16 %v3342, %v3335
      %v3532 = vpack.c.b16 %v3343, %v3336
      %v3533 = vpack.c.b16 %v3344, %v3337
      %v3534 = vpack.c.b16 %v3352, %v3345
      %v3535 = vpack.c.b16 %v3353, %v3346
      %v3536 = vpack.c.b16 %v3354, %v3347
      %v3537 = vpack.c.b16 %v3355, %v3348
      %v3538 = vpack.c.b16 %v3356, %v3349
      %v3539 = vpack.c.b16 %v3357, %v3350
      %v3540 = vpack.c.b16 %v3358, %v3351
      %v3541 = vpack.c.b16 %v3366, %v3359
      %v3542 = vpack.c.b16 %v3367, %v3360
      %v3543 = vpack.c.b16 %v3368, %v3361
      %v3544 = vpack.c.b16 %v3369, %v3362
      %v3545 = vpack.c.b16 %v3370, %v3363
      %v3546 = vpack.c.b16 %v3371, %v3364
      %v3547 = vpack.c.b16 %v3372, %v3365
      %v3548 = vpack.c.b16 %v3380, %v3373
      %v3549 = vpack.c.b16 %v3381, %v3374
      %v3550 = vpack.c.b16 %v3382, %v3375
      %v3551 = vpack.c.b16 %v3383, %v3376
      %v3552 = vpack.c.b16 %v3384, %v3377
      %v3553 = vpack.c.b16 %v3385, %v3378
      %v3554 = vpack.c.b16 %v3386, %v3379
      %v3555 = vpack.c.b16 %v3394, %v3387
      %v3556 = vpack.c.b16 %v3395, %v3388
      %v3557 = vpack.c.b16 %v3396, %v3389
      %v3558 = vpack.c.b16 %v3397, %v3390
      %v3559 = vpack.c.b16 %v3398, %v3391
      %v3560 = vpack.c.b16 %v3399, %v3392
      %v3561 = vpack.c.b16 %v3400, %v3393
      %v3562 = vpack.c.b16 %v3408, %v3401
      %v3563 = vpack.c.b16 %v3409, %v3402
      %v3564 = vpack.c.b16 %v3410, %v3403
      %v3565 = vpack.c.b16 %v3411, %v3404
      %v3566 = vpack.c.b16 %v3412, %v3405
      %v3567 = vpack.c.b16 %v3413, %v3406
      %v3568 = vpack.c.b16 %v3414, %v3407
      %v3569 = vpack.c.b16 %v3422, %v3415
      %v3570 = vpack.c.b16 %v3423, %v3416
      %v3571 = vpack.c.b16 %v3424, %v3417
      %v3572 = vpack.c.b16 %v3425, %v3418
      %v3573 = vpack.c.b16 %v3426, %v3419
      %v3574 = vpack.c.b16 %v3427, %v3420
      %v3575 = vpack.c.b16 %v3428, %v3421
      %v3576 = vpack.c.b16 %v3436, %v3429
      %v3577 = vpack.c.b16 %v3437, %v3430
      %v3578 = vpack.c.b16 %v3438, %v3431
      %v3579 = vpack.c.b16 %v3439, %v3432
      %v3580 = vpack.c.b16 %v3440, %v3433
      %v3581 = vpack.c.b16 %v3441, %v3434
      %v3582 = vpack.c.b16 %v3442, %v3435
      %v3583 = vpack.c.b16 %v3450, %v3443
      %v3584 = vpack.c.b16 %v3451, %v3444
      %v3585 = vpack.c.b16 %v3452, %v3445
      %v3586 = vpack.c.b16 %v3453, %v3446
      %v3587 = vpack.c.b16 %v3454, %v3447
      %v3588 = vpack.c.b16 %v3455, %v3448
      %v3589 = vpack.c.b16 %v3456, %v3449
      %v3590 = vpack.c.b16 %v3464, %v3457
      %v3591 = vpack.c.b16 %v3465, %v3458
      %v3592 = vpack.c.b16 %v3466, %v3459
      %v3593 = vpack.c.b16 %v3467, %v3460
      %v3594 = vpack.c.b16 %v3468, %v3461
      %v3595 = vpack.c.b16 %v3469, %v3462
      %v3596 = vpack.c.b16 %v3470, %v3463
      %v3597 = vpack.c.b16 %v3478, %v3471
      %v3598 = vpack.c.b16 %v3479, %v3472
      %v3599 = vpack.c.b16 %v3480, %v3473
      %v3600 = vpack.c.b16 %v3481, %v3474
      %v3601 = vpack.c.b16 %v3482, %v3475
      %v3602 = vpack.c.b16 %v3483, %v3476
      %v3603 = vpack.c.b16 %v3484, %v3477
      %v3604 = vpack.c.b16 %v3492, %v3485
      %v3605 = vpack.c.b16 %v3493, %v3486
      %v3606 = vpack.c.b16 %v3494, %v3487
      %v3607 = vpack.c.b16 %v3495, %v3488
      %v3608 = vpack.c.b16 %v3496, %v3489
      %v3609 = vpack.c.b16 %v3497, %v3490
      %v3610 = vpack.c.b16 %v3498, %v3491
      %3723 = vmatpush.bf16.msra.mxu0 %v3548
      %3724 = vmatpush.bf16.msra.mxu0 %v3541
      %3725 = vmatpush.bf16.msra.mxu0 %v3534
      %3726 = vmatpush.bf16.msra.mxu0 %v3527
      %3727 = vmatpush.bf16.msra.mxu0 %v3520
      %3728 = vmatpush.bf16.msra.mxu0 %v3513
      %3729 = vmatpush.bf16.msra.mxu0 %v3506
      %3730 = vmatpush.bf16.msra.mxu0 %v3499
      %3731 = vmatmul.bf16.gmra.mxu0 %v2987
      %v3732 = vpop.f32.mrf.mxu0
      %v3733 = vadd.f32 %v3133, %v3732
      %v3734 = vpop.f32.mrf.mxu0
      %v3735 = vadd.f32 %v3133, %v3734
      %3736 = vmatmul.bf16.gmra.mxu0 %v2989
      %v3737 = vpop.f32.mrf.mxu0
      %v3738 = vadd.f32 %v3133, %v3737
      %v3739 = vpop.f32.mrf.mxu0
      %v3740 = vadd.f32 %v3133, %v3739
      %3741 = vmatmul.bf16.gmra.mxu0 %v2991
      %v3742 = vpop.f32.mrf.mxu0
      %v3743 = vadd.f32 %v3133, %v3742
      %v3744 = vpop.f32.mrf.mxu0
      %v3745 = vadd.f32 %v3133, %v3744
      %3746 = vmatmul.bf16.gmra.mxu0 %v2993
      %v3747 = vpop.f32.mrf.mxu0
      %v3748 = vadd.f32 %v3133, %v3747
      %v3749 = vpop.f32.mrf.mxu0
      %v3750 = vadd.f32 %v3133, %v3749
      %3751 = vmatmul.bf16.gmra.mxu0 %v2995
      %v3752 = vpop.f32.mrf.mxu0
      %v3753 = vadd.f32 %v3133, %v3752
      %v3754 = vpop.f32.mrf.mxu0
      %v3755 = vadd.f32 %v3133, %v3754
      %3756 = vmatmul.bf16.gmra.mxu0 %v2997
      %v3757 = vpop.f32.mrf.mxu0
      %v3758 = vadd.f32 %v3133, %v3757
      %v3759 = vpop.f32.mrf.mxu0
      %v3760 = vadd.f32 %v3133, %v3759
      %3761 = vmatmul.bf16.gmra.mxu0 %v2999
      %v3762 = vpop.f32.mrf.mxu0
      %v3763 = vadd.f32 %v3133, %v3762
      %v3764 = vpop.f32.mrf.mxu0
      %v3765 = vadd.f32 %v3133, %v3764
      %3766 = vmatmul.bf16.gmra.mxu0 %v3001
      %v3767 = vpop.f32.mrf.mxu0
      %v3768 = vadd.f32 %v3133, %v3767
      %v3769 = vpop.f32.mrf.mxu0
      %v3770 = vadd.f32 %v3133, %v3769
      %3771 = vdwg.mxu0
      %3772 = vmatpush.bf16.msra.mxu0 %v3604
      %3773 = vmatpush.bf16.msra.mxu0 %v3597
      %3774 = vmatpush.bf16.msra.mxu0 %v3590
      %3775 = vmatpush.bf16.msra.mxu0 %v3583
      %3776 = vmatpush.bf16.msra.mxu0 %v3576
      %3777 = vmatpush.bf16.msra.mxu0 %v3569
      %3778 = vmatpush.bf16.msra.mxu0 %v3562
      %3779 = vmatpush.bf16.msra.mxu0 %v3555
      %3780 = vmatmul.bf16.gmra.mxu0 %v2988
      %v3781 = vpop.f32.mrf.mxu0
      %v3782 = vadd.f32 %v3733, %v3781
      %v3783 = vpop.f32.mrf.mxu0
      %v3784 = vadd.f32 %v3735, %v3783
      %3785 = vmatmul.bf16.gmra.mxu0 %v2990
      %v3786 = vpop.f32.mrf.mxu0
      %v3787 = vadd.f32 %v3738, %v3786
      %v3788 = vpop.f32.mrf.mxu0
      %v3789 = vadd.f32 %v3740, %v3788
      %3790 = vmatmul.bf16.gmra.mxu0 %v2992
      %v3791 = vpop.f32.mrf.mxu0
      %v3792 = vadd.f32 %v3743, %v3791
      %v3793 = vpop.f32.mrf.mxu0
      %v3794 = vadd.f32 %v3745, %v3793
      %3795 = vmatmul.bf16.gmra.mxu0 %v2994
      %v3796 = vpop.f32.mrf.mxu0
      %v3797 = vadd.f32 %v3748, %v3796
      %v3798 = vpop.f32.mrf.mxu0
      %v3799 = vadd.f32 %v3750, %v3798
      %3800 = vmatmul.bf16.gmra.mxu0 %v2996
      %v3801 = vpop.f32.mrf.mxu0
      %v3802 = vadd.f32 %v3753, %v3801
      %v3803 = vpop.f32.mrf.mxu0
      %v3804 = vadd.f32 %v3755, %v3803
      %3805 = vmatmul.bf16.gmra.mxu0 %v2998
      %v3806 = vpop.f32.mrf.mxu0
      %v3807 = vadd.f32 %v3758, %v3806
      %v3808 = vpop.f32.mrf.mxu0
      %v3809 = vadd.f32 %v3760, %v3808
      %3810 = vmatmul.bf16.gmra.mxu0 %v3000
      %v3811 = vpop.f32.mrf.mxu0
      %v3812 = vadd.f32 %v3763, %v3811
      %v3813 = vpop.f32.mrf.mxu0
      %v3814 = vadd.f32 %v3765, %v3813
      %3815 = vmatmul.bf16.gmra.mxu0 %v3002
      %v3816 = vpop.f32.mrf.mxu0
      %v3817 = vadd.f32 %v3768, %v3816
      %v3818 = vpop.f32.mrf.mxu0
      %v3819 = vadd.f32 %v3770, %v3818
      %3820 = vdwg.mxu0
      %3821 = vmatpush.bf16.msra.mxu0 %v3549
      %3822 = vmatpush.bf16.msra.mxu0 %v3542
      %3823 = vmatpush.bf16.msra.mxu0 %v3535
      %3824 = vmatpush.bf16.msra.mxu0 %v3528
      %3825 = vmatpush.bf16.msra.mxu0 %v3521
      %3826 = vmatpush.bf16.msra.mxu0 %v3514
      %3827 = vmatpush.bf16.msra.mxu0 %v3507
      %3828 = vmatpush.bf16.msra.mxu0 %v3500
      %3829 = vmatmul.bf16.gmra.mxu0 %v2987
      %v3830 = vpop.f32.mrf.mxu0
      %v3831 = vadd.f32 %v3134, %v3830
      %v3832 = vpop.f32.mrf.mxu0
      %v3833 = vadd.f32 %v3134, %v3832
      %3834 = vmatmul.bf16.gmra.mxu0 %v2989
      %v3835 = vpop.f32.mrf.mxu0
      %v3836 = vadd.f32 %v3134, %v3835
      %v3837 = vpop.f32.mrf.mxu0
      %v3838 = vadd.f32 %v3134, %v3837
      %3839 = vmatmul.bf16.gmra.mxu0 %v2991
      %v3840 = vpop.f32.mrf.mxu0
      %v3841 = vadd.f32 %v3134, %v3840
      %v3842 = vpop.f32.mrf.mxu0
      %v3843 = vadd.f32 %v3134, %v3842
      %3844 = vmatmul.bf16.gmra.mxu0 %v2993
      %v3845 = vpop.f32.mrf.mxu0
      %v3846 = vadd.f32 %v3134, %v3845
      %v3847 = vpop.f32.mrf.mxu0
      %v3848 = vadd.f32 %v3134, %v3847
      %3849 = vmatmul.bf16.gmra.mxu0 %v2995
      %v3850 = vpop.f32.mrf.mxu0
      %v3851 = vadd.f32 %v3134, %v3850
      %v3852 = vpop.f32.mrf.mxu0
      %v3853 = vadd.f32 %v3134, %v3852
      %3854 = vmatmul.bf16.gmra.mxu0 %v2997
      %v3855 = vpop.f32.mrf.mxu0
      %v3856 = vadd.f32 %v3134, %v3855
      %v3857 = vpop.f32.mrf.mxu0
      %v3858 = vadd.f32 %v3134, %v3857
      %3859 = vmatmul.bf16.gmra.mxu0 %v2999
      %v3860 = vpop.f32.mrf.mxu0
      %v3861 = vadd.f32 %v3134, %v3860
      %v3862 = vpop.f32.mrf.mxu0
      %v3863 = vadd.f32 %v3134, %v3862
      %3864 = vmatmul.bf16.gmra.mxu0 %v3001
      %v3865 = vpop.f32.mrf.mxu0
      %v3866 = vadd.f32 %v3134, %v3865
      %v3867 = vpop.f32.mrf.mxu0
      %v3868 = vadd.f32 %v3134, %v3867
      %3869 = vdwg.mxu0
      %3870 = vmatpush.bf16.msra.mxu0 %v3605
      %3871 = vmatpush.bf16.msra.mxu0 %v3598
      %3872 = vmatpush.bf16.msra.mxu0 %v3591
      %3873 = vmatpush.bf16.msra.mxu0 %v3584
      %3874 = vmatpush.bf16.msra.mxu0 %v3577
      %3875 = vmatpush.bf16.msra.mxu0 %v3570
      %3876 = vmatpush.bf16.msra.mxu0 %v3563
      %3877 = vmatpush.bf16.msra.mxu0 %v3556
      %3878 = vmatmul.bf16.gmra.mxu0 %v2988
      %v3879 = vpop.f32.mrf.mxu0
      %v3880 = vadd.f32 %v3831, %v3879
      %v3881 = vpop.f32.mrf.mxu0
      %v3882 = vadd.f32 %v3833, %v3881
      %3883 = vmatmul.bf16.gmra.mxu0 %v2990
      %v3884 = vpop.f32.mrf.mxu0
      %v3885 = vadd.f32 %v3836, %v3884
      %v3886 = vpop.f32.mrf.mxu0
      %v3887 = vadd.f32 %v3838, %v3886
      %3888 = vmatmul.bf16.gmra.mxu0 %v2992
      %v3889 = vpop.f32.mrf.mxu0
      %v3890 = vadd.f32 %v3841, %v3889
      %v3891 = vpop.f32.mrf.mxu0
      %v3892 = vadd.f32 %v3843, %v3891
      %3893 = vmatmul.bf16.gmra.mxu0 %v2994
      %v3894 = vpop.f32.mrf.mxu0
      %v3895 = vadd.f32 %v3846, %v3894
      %v3896 = vpop.f32.mrf.mxu0
      %v3897 = vadd.f32 %v3848, %v3896
      %3898 = vmatmul.bf16.gmra.mxu0 %v2996
      %v3899 = vpop.f32.mrf.mxu0
      %v3900 = vadd.f32 %v3851, %v3899
      %v3901 = vpop.f32.mrf.mxu0
      %v3902 = vadd.f32 %v3853, %v3901
      %3903 = vmatmul.bf16.gmra.mxu0 %v2998
      %v3904 = vpop.f32.mrf.mxu0
      %v3905 = vadd.f32 %v3856, %v3904
      %v3906 = vpop.f32.mrf.mxu0
      %v3907 = vadd.f32 %v3858, %v3906
      %3908 = vmatmul.bf16.gmra.mxu0 %v3000
      %v3909 = vpop.f32.mrf.mxu0
      %v3910 = vadd.f32 %v3861, %v3909
      %v3911 = vpop.f32.mrf.mxu0
      %v3912 = vadd.f32 %v3863, %v3911
      %3913 = vmatmul.bf16.gmra.mxu0 %v3002
      %v3914 = vpop.f32.mrf.mxu0
      %v3915 = vadd.f32 %v3866, %v3914
      %v3916 = vpop.f32.mrf.mxu0
      %v3917 = vadd.f32 %v3868, %v3916
      %3918 = vdwg.mxu0
      %3919 = vmatpush.bf16.msra.mxu0 %v3550
      %3920 = vmatpush.bf16.msra.mxu0 %v3543
      %3921 = vmatpush.bf16.msra.mxu0 %v3536
      %3922 = vmatpush.bf16.msra.mxu0 %v3529
      %3923 = vmatpush.bf16.msra.mxu0 %v3522
      %3924 = vmatpush.bf16.msra.mxu0 %v3515
      %3925 = vmatpush.bf16.msra.mxu0 %v3508
      %3926 = vmatpush.bf16.msra.mxu0 %v3501
      %3927 = vmatmul.bf16.gmra.mxu0 %v2987
      %v3928 = vpop.f32.mrf.mxu0
      %v3929 = vadd.f32 %v3135, %v3928
      %v3930 = vpop.f32.mrf.mxu0
      %v3931 = vadd.f32 %v3135, %v3930
      %3932 = vmatmul.bf16.gmra.mxu0 %v2989
      %v3933 = vpop.f32.mrf.mxu0
      %v3934 = vadd.f32 %v3135, %v3933
      %v3935 = vpop.f32.mrf.mxu0
      %v3936 = vadd.f32 %v3135, %v3935
      %3937 = vmatmul.bf16.gmra.mxu0 %v2991
      %v3938 = vpop.f32.mrf.mxu0
      %v3939 = vadd.f32 %v3135, %v3938
      %v3940 = vpop.f32.mrf.mxu0
      %v3941 = vadd.f32 %v3135, %v3940
      %3942 = vmatmul.bf16.gmra.mxu0 %v2993
      %v3943 = vpop.f32.mrf.mxu0
      %v3944 = vadd.f32 %v3135, %v3943
      %v3945 = vpop.f32.mrf.mxu0
      %v3946 = vadd.f32 %v3135, %v3945
      %3947 = vmatmul.bf16.gmra.mxu0 %v2995
      %v3948 = vpop.f32.mrf.mxu0
      %v3949 = vadd.f32 %v3135, %v3948
      %v3950 = vpop.f32.mrf.mxu0
      %v3951 = vadd.f32 %v3135, %v3950
      %3952 = vmatmul.bf16.gmra.mxu0 %v2997
      %v3953 = vpop.f32.mrf.mxu0
      %v3954 = vadd.f32 %v3135, %v3953
      %v3955 = vpop.f32.mrf.mxu0
      %v3956 = vadd.f32 %v3135, %v3955
      %3957 = vmatmul.bf16.gmra.mxu0 %v2999
      %v3958 = vpop.f32.mrf.mxu0
      %v3959 = vadd.f32 %v3135, %v3958
      %v3960 = vpop.f32.mrf.mxu0
      %v3961 = vadd.f32 %v3135, %v3960
      %3962 = vmatmul.bf16.gmra.mxu0 %v3001
      %v3963 = vpop.f32.mrf.mxu0
      %v3964 = vadd.f32 %v3135, %v3963
      %v3965 = vpop.f32.mrf.mxu0
      %v3966 = vadd.f32 %v3135, %v3965
      %3967 = vdwg.mxu0
      %3968 = vmatpush.bf16.msra.mxu0 %v3606
      %3969 = vmatpush.bf16.msra.mxu0 %v3599
      %3970 = vmatpush.bf16.msra.mxu0 %v3592
      %3971 = vmatpush.bf16.msra.mxu0 %v3585
      %3972 = vmatpush.bf16.msra.mxu0 %v3578
      %3973 = vmatpush.bf16.msra.mxu0 %v3571
      %3974 = vmatpush.bf16.msra.mxu0 %v3564
      %3975 = vmatpush.bf16.msra.mxu0 %v3557
      %3976 = vmatmul.bf16.gmra.mxu0 %v2988
      %v3977 = vpop.f32.mrf.mxu0
      %v3978 = vadd.f32 %v3929, %v3977
      %v3979 = vpop.f32.mrf.mxu0
      %v3980 = vadd.f32 %v3931, %v3979
      %3981 = vmatmul.bf16.gmra.mxu0 %v2990
      %v3982 = vpop.f32.mrf.mxu0
      %v3983 = vadd.f32 %v3934, %v3982
      %v3984 = vpop.f32.mrf.mxu0
      %v3985 = vadd.f32 %v3936, %v3984
      %3986 = vmatmul.bf16.gmra.mxu0 %v2992
      %v3987 = vpop.f32.mrf.mxu0
      %v3988 = vadd.f32 %v3939, %v3987
      %v3989 = vpop.f32.mrf.mxu0
      %v3990 = vadd.f32 %v3941, %v3989
      %3991 = vmatmul.bf16.gmra.mxu0 %v2994
      %v3992 = vpop.f32.mrf.mxu0
      %v3993 = vadd.f32 %v3944, %v3992
      %v3994 = vpop.f32.mrf.mxu0
      %v3995 = vadd.f32 %v3946, %v3994
      %3996 = vmatmul.bf16.gmra.mxu0 %v2996
      %v3997 = vpop.f32.mrf.mxu0
      %v3998 = vadd.f32 %v3949, %v3997
      %v3999 = vpop.f32.mrf.mxu0
      %v4000 = vadd.f32 %v3951, %v3999
      %4001 = vmatmul.bf16.gmra.mxu0 %v2998
      %v4002 = vpop.f32.mrf.mxu0
      %v4003 = vadd.f32 %v3954, %v4002
      %v4004 = vpop.f32.mrf.mxu0
      %v4005 = vadd.f32 %v3956, %v4004
      %4006 = vmatmul.bf16.gmra.mxu0 %v3000
      %v4007 = vpop.f32.mrf.mxu0
      %v4008 = vadd.f32 %v3959, %v4007
      %v4009 = vpop.f32.mrf.mxu0
      %v4010 = vadd.f32 %v3961, %v4009
      %4011 = vmatmul.bf16.gmra.mxu0 %v3002
      %v4012 = vpop.f32.mrf.mxu0
      %v4013 = vadd.f32 %v3964, %v4012
      %v4014 = vpop.f32.mrf.mxu0
      %v4015 = vadd.f32 %v3966, %v4014
      %4016 = vdwg.mxu0
      %4017 = vmatpush.bf16.msra.mxu0 %v3551
      %4018 = vmatpush.bf16.msra.mxu0 %v3544
      %4019 = vmatpush.bf16.msra.mxu0 %v3537
      %4020 = vmatpush.bf16.msra.mxu0 %v3530
      %4021 = vmatpush.bf16.msra.mxu0 %v3523
      %4022 = vmatpush.bf16.msra.mxu0 %v3516
      %4023 = vmatpush.bf16.msra.mxu0 %v3509
      %4024 = vmatpush.bf16.msra.mxu0 %v3502
      %4025 = vmatmul.bf16.gmra.mxu0 %v2987
      %v4026 = vpop.f32.mrf.mxu0
      %v4027 = vadd.f32 %v3136, %v4026
      %v4028 = vpop.f32.mrf.mxu0
      %v4029 = vadd.f32 %v3136, %v4028
      %4030 = vmatmul.bf16.gmra.mxu0 %v2989
      %v4031 = vpop.f32.mrf.mxu0
      %v4032 = vadd.f32 %v3136, %v4031
      %v4033 = vpop.f32.mrf.mxu0
      %v4034 = vadd.f32 %v3136, %v4033
      %4035 = vmatmul.bf16.gmra.mxu0 %v2991
      %v4036 = vpop.f32.mrf.mxu0
      %v4037 = vadd.f32 %v3136, %v4036
      %v4038 = vpop.f32.mrf.mxu0
      %v4039 = vadd.f32 %v3136, %v4038
      %4040 = vmatmul.bf16.gmra.mxu0 %v2993
      %v4041 = vpop.f32.mrf.mxu0
      %v4042 = vadd.f32 %v3136, %v4041
      %v4043 = vpop.f32.mrf.mxu0
      %v4044 = vadd.f32 %v3136, %v4043
      %4045 = vmatmul.bf16.gmra.mxu0 %v2995
      %v4046 = vpop.f32.mrf.mxu0
      %v4047 = vadd.f32 %v3136, %v4046
      %v4048 = vpop.f32.mrf.mxu0
      %v4049 = vadd.f32 %v3136, %v4048
      %4050 = vmatmul.bf16.gmra.mxu0 %v2997
      %v4051 = vpop.f32.mrf.mxu0
      %v4052 = vadd.f32 %v3136, %v4051
      %v4053 = vpop.f32.mrf.mxu0
      %v4054 = vadd.f32 %v3136, %v4053
      %4055 = vmatmul.bf16.gmra.mxu0 %v2999
      %v4056 = vpop.f32.mrf.mxu0
      %v4057 = vadd.f32 %v3136, %v4056
      %v4058 = vpop.f32.mrf.mxu0
      %v4059 = vadd.f32 %v3136, %v4058
      %4060 = vmatmul.bf16.gmra.mxu0 %v3001
      %v4061 = vpop.f32.mrf.mxu0
      %v4062 = vadd.f32 %v3136, %v4061
      %v4063 = vpop.f32.mrf.mxu0
      %v4064 = vadd.f32 %v3136, %v4063
      %4065 = vdwg.mxu0
      %4066 = vmatpush.bf16.msra.mxu0 %v3607
      %4067 = vmatpush.bf16.msra.mxu0 %v3600
      %4068 = vmatpush.bf16.msra.mxu0 %v3593
      %4069 = vmatpush.bf16.msra.mxu0 %v3586
      %4070 = vmatpush.bf16.msra.mxu0 %v3579
      %4071 = vmatpush.bf16.msra.mxu0 %v3572
      %4072 = vmatpush.bf16.msra.mxu0 %v3565
      %4073 = vmatpush.bf16.msra.mxu0 %v3558
      %4074 = vmatmul.bf16.gmra.mxu0 %v2988
      %v4075 = vpop.f32.mrf.mxu0
      %v4076 = vadd.f32 %v4027, %v4075
      %v4077 = vpop.f32.mrf.mxu0
      %v4078 = vadd.f32 %v4029, %v4077
      %4079 = vmatmul.bf16.gmra.mxu0 %v2990
      %v4080 = vpop.f32.mrf.mxu0
      %v4081 = vadd.f32 %v4032, %v4080
      %v4082 = vpop.f32.mrf.mxu0
      %v4083 = vadd.f32 %v4034, %v4082
      %4084 = vmatmul.bf16.gmra.mxu0 %v2992
      %v4085 = vpop.f32.mrf.mxu0
      %v4086 = vadd.f32 %v4037, %v4085
      %v4087 = vpop.f32.mrf.mxu0
      %v4088 = vadd.f32 %v4039, %v4087
      %4089 = vmatmul.bf16.gmra.mxu0 %v2994
      %v4090 = vpop.f32.mrf.mxu0
      %v4091 = vadd.f32 %v4042, %v4090
      %v4092 = vpop.f32.mrf.mxu0
      %v4093 = vadd.f32 %v4044, %v4092
      %4094 = vmatmul.bf16.gmra.mxu0 %v2996
      %v4095 = vpop.f32.mrf.mxu0
      %v4096 = vadd.f32 %v4047, %v4095
      %v4097 = vpop.f32.mrf.mxu0
      %v4098 = vadd.f32 %v4049, %v4097
      %4099 = vmatmul.bf16.gmra.mxu0 %v2998
      %v4100 = vpop.f32.mrf.mxu0
      %v4101 = vadd.f32 %v4052, %v4100
      %v4102 = vpop.f32.mrf.mxu0
      %v4103 = vadd.f32 %v4054, %v4102
      %4104 = vmatmul.bf16.gmra.mxu0 %v3000
      %v4105 = vpop.f32.mrf.mxu0
      %v4106 = vadd.f32 %v4057, %v4105
      %v4107 = vpop.f32.mrf.mxu0
      %v4108 = vadd.f32 %v4059, %v4107
      %4109 = vmatmul.bf16.gmra.mxu0 %v3002
      %v4110 = vpop.f32.mrf.mxu0
      %v4111 = vadd.f32 %v4062, %v4110
      %v4112 = vpop.f32.mrf.mxu0
      %v4113 = vadd.f32 %v4064, %v4112
      %4114 = vdwg.mxu0
      %4115 = vmatpush.bf16.msra.mxu0 %v3552
      %4116 = vmatpush.bf16.msra.mxu0 %v3545
      %4117 = vmatpush.bf16.msra.mxu0 %v3538
      %4118 = vmatpush.bf16.msra.mxu0 %v3531
      %4119 = vmatpush.bf16.msra.mxu0 %v3524
      %4120 = vmatpush.bf16.msra.mxu0 %v3517
      %4121 = vmatpush.bf16.msra.mxu0 %v3510
      %4122 = vmatpush.bf16.msra.mxu0 %v3503
      %4123 = vmatmul.bf16.gmra.mxu0 %v2987
      %v4124 = vpop.f32.mrf.mxu0
      %v4125 = vadd.f32 %v3137, %v4124
      %v4126 = vpop.f32.mrf.mxu0
      %v4127 = vadd.f32 %v3137, %v4126
      %4128 = vmatmul.bf16.gmra.mxu0 %v2989
      %v4129 = vpop.f32.mrf.mxu0
      %v4130 = vadd.f32 %v3137, %v4129
      %v4131 = vpop.f32.mrf.mxu0
      %v4132 = vadd.f32 %v3137, %v4131
      %4133 = vmatmul.bf16.gmra.mxu0 %v2991
      %v4134 = vpop.f32.mrf.mxu0
      %v4135 = vadd.f32 %v3137, %v4134
      %v4136 = vpop.f32.mrf.mxu0
      %v4137 = vadd.f32 %v3137, %v4136
      %4138 = vmatmul.bf16.gmra.mxu0 %v2993
      %v4139 = vpop.f32.mrf.mxu0
      %v4140 = vadd.f32 %v3137, %v4139
      %v4141 = vpop.f32.mrf.mxu0
      %v4142 = vadd.f32 %v3137, %v4141
      %4143 = vmatmul.bf16.gmra.mxu0 %v2995
      %v4144 = vpop.f32.mrf.mxu0
      %v4145 = vadd.f32 %v3137, %v4144
      %v4146 = vpop.f32.mrf.mxu0
      %v4147 = vadd.f32 %v3137, %v4146
      %4148 = vmatmul.bf16.gmra.mxu0 %v2997
      %v4149 = vpop.f32.mrf.mxu0
      %v4150 = vadd.f32 %v3137, %v4149
      %v4151 = vpop.f32.mrf.mxu0
      %v4152 = vadd.f32 %v3137, %v4151
      %4153 = vmatmul.bf16.gmra.mxu0 %v2999
      %v4154 = vpop.f32.mrf.mxu0
      %v4155 = vadd.f32 %v3137, %v4154
      %v4156 = vpop.f32.mrf.mxu0
      %v4157 = vadd.f32 %v3137, %v4156
      %4158 = vmatmul.bf16.gmra.mxu0 %v3001
      %v4159 = vpop.f32.mrf.mxu0
      %v4160 = vadd.f32 %v3137, %v4159
      %v4161 = vpop.f32.mrf.mxu0
      %v4162 = vadd.f32 %v3137, %v4161
      %4163 = vdwg.mxu0
      %4164 = vmatpush.bf16.msra.mxu0 %v3608
      %4165 = vmatpush.bf16.msra.mxu0 %v3601
      %4166 = vmatpush.bf16.msra.mxu0 %v3594
      %4167 = vmatpush.bf16.msra.mxu0 %v3587
      %4168 = vmatpush.bf16.msra.mxu0 %v3580
      %4169 = vmatpush.bf16.msra.mxu0 %v3573
      %4170 = vmatpush.bf16.msra.mxu0 %v3566
      %4171 = vmatpush.bf16.msra.mxu0 %v3559
      %4172 = vmatmul.bf16.gmra.mxu0 %v2988
      %v4173 = vpop.f32.mrf.mxu0
      %v4174 = vadd.f32 %v4125, %v4173
      %v4175 = vpop.f32.mrf.mxu0
      %v4176 = vadd.f32 %v4127, %v4175
      %4177 = vmatmul.bf16.gmra.mxu0 %v2990
      %v4178 = vpop.f32.mrf.mxu0
      %v4179 = vadd.f32 %v4130, %v4178
      %v4180 = vpop.f32.mrf.mxu0
      %v4181 = vadd.f32 %v4132, %v4180
      %4182 = vmatmul.bf16.gmra.mxu0 %v2992
      %v4183 = vpop.f32.mrf.mxu0
      %v4184 = vadd.f32 %v4135, %v4183
      %v4185 = vpop.f32.mrf.mxu0
      %v4186 = vadd.f32 %v4137, %v4185
      %4187 = vmatmul.bf16.gmra.mxu0 %v2994
      %v4188 = vpop.f32.mrf.mxu0
      %v4189 = vadd.f32 %v4140, %v4188
      %v4190 = vpop.f32.mrf.mxu0
      %v4191 = vadd.f32 %v4142, %v4190
      %4192 = vmatmul.bf16.gmra.mxu0 %v2996
      %v4193 = vpop.f32.mrf.mxu0
      %v4194 = vadd.f32 %v4145, %v4193
      %v4195 = vpop.f32.mrf.mxu0
      %v4196 = vadd.f32 %v4147, %v4195
      %4197 = vmatmul.bf16.gmra.mxu0 %v2998
      %v4198 = vpop.f32.mrf.mxu0
      %v4199 = vadd.f32 %v4150, %v4198
      %v4200 = vpop.f32.mrf.mxu0
      %v4201 = vadd.f32 %v4152, %v4200
      %4202 = vmatmul.bf16.gmra.mxu0 %v3000
      %v4203 = vpop.f32.mrf.mxu0
      %v4204 = vadd.f32 %v4155, %v4203
      %v4205 = vpop.f32.mrf.mxu0
      %v4206 = vadd.f32 %v4157, %v4205
      %4207 = vmatmul.bf16.gmra.mxu0 %v3002
      %v4208 = vpop.f32.mrf.mxu0
      %v4209 = vadd.f32 %v4160, %v4208
      %v4210 = vpop.f32.mrf.mxu0
      %v4211 = vadd.f32 %v4162, %v4210
      %4212 = vdwg.mxu0
      %4213 = vmatpush.bf16.msra.mxu0 %v3553
      %4214 = vmatpush.bf16.msra.mxu0 %v3546
      %4215 = vmatpush.bf16.msra.mxu0 %v3539
      %4216 = vmatpush.bf16.msra.mxu0 %v3532
      %4217 = vmatpush.bf16.msra.mxu0 %v3525
      %4218 = vmatpush.bf16.msra.mxu0 %v3518
      %4219 = vmatpush.bf16.msra.mxu0 %v3511
      %4220 = vmatpush.bf16.msra.mxu0 %v3504
      %4221 = vmatmul.bf16.gmra.mxu0 %v2987
      %v4222 = vpop.f32.mrf.mxu0
      %v4223 = vadd.f32 %v3138, %v4222
      %v4224 = vpop.f32.mrf.mxu0
      %v4225 = vadd.f32 %v3138, %v4224
      %4226 = vmatmul.bf16.gmra.mxu0 %v2989
      %v4227 = vpop.f32.mrf.mxu0
      %v4228 = vadd.f32 %v3138, %v4227
      %v4229 = vpop.f32.mrf.mxu0
      %v4230 = vadd.f32 %v3138, %v4229
      %4231 = vmatmul.bf16.gmra.mxu0 %v2991
      %v4232 = vpop.f32.mrf.mxu0
      %v4233 = vadd.f32 %v3138, %v4232
      %v4234 = vpop.f32.mrf.mxu0
      %v4235 = vadd.f32 %v3138, %v4234
      %4236 = vmatmul.bf16.gmra.mxu0 %v2993
      %v4237 = vpop.f32.mrf.mxu0
      %v4238 = vadd.f32 %v3138, %v4237
      %v4239 = vpop.f32.mrf.mxu0
      %v4240 = vadd.f32 %v3138, %v4239
      %4241 = vmatmul.bf16.gmra.mxu0 %v2995
      %v4242 = vpop.f32.mrf.mxu0
      %v4243 = vadd.f32 %v3138, %v4242
      %v4244 = vpop.f32.mrf.mxu0
      %v4245 = vadd.f32 %v3138, %v4244
      %4246 = vmatmul.bf16.gmra.mxu0 %v2997
      %v4247 = vpop.f32.mrf.mxu0
      %v4248 = vadd.f32 %v3138, %v4247
      %v4249 = vpop.f32.mrf.mxu0
      %v4250 = vadd.f32 %v3138, %v4249
      %4251 = vmatmul.bf16.gmra.mxu0 %v2999
      %v4252 = vpop.f32.mrf.mxu0
      %v4253 = vadd.f32 %v3138, %v4252
      %v4254 = vpop.f32.mrf.mxu0
      %v4255 = vadd.f32 %v3138, %v4254
      %4256 = vmatmul.bf16.gmra.mxu0 %v3001
      %v4257 = vpop.f32.mrf.mxu0
      %v4258 = vadd.f32 %v3138, %v4257
      %v4259 = vpop.f32.mrf.mxu0
      %v4260 = vadd.f32 %v3138, %v4259
      %4261 = vdwg.mxu0
      %4262 = vmatpush.bf16.msra.mxu0 %v3609
      %4263 = vmatpush.bf16.msra.mxu0 %v3602
      %4264 = vmatpush.bf16.msra.mxu0 %v3595
      %4265 = vmatpush.bf16.msra.mxu0 %v3588
      %4266 = vmatpush.bf16.msra.mxu0 %v3581
      %4267 = vmatpush.bf16.msra.mxu0 %v3574
      %4268 = vmatpush.bf16.msra.mxu0 %v3567
      %4269 = vmatpush.bf16.msra.mxu0 %v3560
      %4270 = vmatmul.bf16.gmra.mxu0 %v2988
      %v4271 = vpop.f32.mrf.mxu0
      %v4272 = vadd.f32 %v4223, %v4271
      %v4273 = vpop.f32.mrf.mxu0
      %v4274 = vadd.f32 %v4225, %v4273
      %4275 = vmatmul.bf16.gmra.mxu0 %v2990
      %v4276 = vpop.f32.mrf.mxu0
      %v4277 = vadd.f32 %v4228, %v4276
      %v4278 = vpop.f32.mrf.mxu0
      %v4279 = vadd.f32 %v4230, %v4278
      %4280 = vmatmul.bf16.gmra.mxu0 %v2992
      %v4281 = vpop.f32.mrf.mxu0
      %v4282 = vadd.f32 %v4233, %v4281
      %v4283 = vpop.f32.mrf.mxu0
      %v4284 = vadd.f32 %v4235, %v4283
      %4285 = vmatmul.bf16.gmra.mxu0 %v2994
      %v4286 = vpop.f32.mrf.mxu0
      %v4287 = vadd.f32 %v4238, %v4286
      %v4288 = vpop.f32.mrf.mxu0
      %v4289 = vadd.f32 %v4240, %v4288
      %4290 = vmatmul.bf16.gmra.mxu0 %v2996
      %v4291 = vpop.f32.mrf.mxu0
      %v4292 = vadd.f32 %v4243, %v4291
      %v4293 = vpop.f32.mrf.mxu0
      %v4294 = vadd.f32 %v4245, %v4293
      %4295 = vmatmul.bf16.gmra.mxu0 %v2998
      %v4296 = vpop.f32.mrf.mxu0
      %v4297 = vadd.f32 %v4248, %v4296
      %v4298 = vpop.f32.mrf.mxu0
      %v4299 = vadd.f32 %v4250, %v4298
      %4300 = vmatmul.bf16.gmra.mxu0 %v3000
      %v4301 = vpop.f32.mrf.mxu0
      %v4302 = vadd.f32 %v4253, %v4301
      %v4303 = vpop.f32.mrf.mxu0
      %v4304 = vadd.f32 %v4255, %v4303
      %4305 = vmatmul.bf16.gmra.mxu0 %v3002
      %v4306 = vpop.f32.mrf.mxu0
      %v4307 = vadd.f32 %v4258, %v4306
      %v4308 = vpop.f32.mrf.mxu0
      %v4309 = vadd.f32 %v4260, %v4308
      %4310 = vdwg.mxu0
      %4311 = vmatpush.bf16.msra.mxu0 %v3554
      %4312 = vmatpush.bf16.msra.mxu0 %v3547
      %4313 = vmatpush.bf16.msra.mxu0 %v3540
      %4314 = vmatpush.bf16.msra.mxu0 %v3533
      %4315 = vmatpush.bf16.msra.mxu0 %v3526
      %4316 = vmatpush.bf16.msra.mxu0 %v3519
      %4317 = vmatpush.bf16.msra.mxu0 %v3512
      %4318 = vmatpush.bf16.msra.mxu0 %v3505
      %4319 = vmatmul.bf16.gmra.mxu0 %v2987
      %v4320 = vpop.f32.mrf.mxu0
      %v4321 = vadd.f32 %v3139, %v4320
      %v4322 = vpop.f32.mrf.mxu0
      %v4323 = vadd.f32 %v3139, %v4322
      %4324 = vmatmul.bf16.gmra.mxu0 %v2989
      %v4325 = vpop.f32.mrf.mxu0
      %v4326 = vadd.f32 %v3139, %v4325
      %v4327 = vpop.f32.mrf.mxu0
      %v4328 = vadd.f32 %v3139, %v4327
      %4329 = vmatmul.bf16.gmra.mxu0 %v2991
      %v4330 = vpop.f32.mrf.mxu0
      %v4331 = vadd.f32 %v3139, %v4330
      %v4332 = vpop.f32.mrf.mxu0
      %v4333 = vadd.f32 %v3139, %v4332
      %4334 = vmatmul.bf16.gmra.mxu0 %v2993
      %v4335 = vpop.f32.mrf.mxu0
      %v4336 = vadd.f32 %v3139, %v4335
      %v4337 = vpop.f32.mrf.mxu0
      %v4338 = vadd.f32 %v3139, %v4337
      %4339 = vmatmul.bf16.gmra.mxu0 %v2995
      %v4340 = vpop.f32.mrf.mxu0
      %v4341 = vadd.f32 %v3139, %v4340
      %v4342 = vpop.f32.mrf.mxu0
      %v4343 = vadd.f32 %v3139, %v4342
      %4344 = vmatmul.bf16.gmra.mxu0 %v2997
      %v4345 = vpop.f32.mrf.mxu0
      %v4346 = vadd.f32 %v3139, %v4345
      %v4347 = vpop.f32.mrf.mxu0
      %v4348 = vadd.f32 %v3139, %v4347
      %4349 = vmatmul.bf16.gmra.mxu0 %v2999
      %v4350 = vpop.f32.mrf.mxu0
      %v4351 = vadd.f32 %v3139, %v4350
      %v4352 = vpop.f32.mrf.mxu0
      %v4353 = vadd.f32 %v3139, %v4352
      %4354 = vmatmul.bf16.gmra.mxu0 %v3001
      %v4355 = vpop.f32.mrf.mxu0
      %v4356 = vadd.f32 %v3139, %v4355
      %v4357 = vpop.f32.mrf.mxu0
      %v4358 = vadd.f32 %v3139, %v4357
      %4359 = vdwg.mxu0
      %4360 = vmatpush.bf16.msra.mxu0 %v3610
      %4361 = vmatpush.bf16.msra.mxu0 %v3603
      %4362 = vmatpush.bf16.msra.mxu0 %v3596
      %4363 = vmatpush.bf16.msra.mxu0 %v3589
      %4364 = vmatpush.bf16.msra.mxu0 %v3582
      %4365 = vmatpush.bf16.msra.mxu0 %v3575
      %4366 = vmatpush.bf16.msra.mxu0 %v3568
      %4367 = vmatpush.bf16.msra.mxu0 %v3561
      %4368 = vmatmul.bf16.gmra.mxu0 %v2988
      %v4369 = vpop.f32.mrf.mxu0
      %v4370 = vadd.f32 %v4321, %v4369
      %v4371 = vpop.f32.mrf.mxu0
      %v4372 = vadd.f32 %v4323, %v4371
      %4373 = vmatmul.bf16.gmra.mxu0 %v2990
      %v4374 = vpop.f32.mrf.mxu0
      %v4375 = vadd.f32 %v4326, %v4374
      %v4376 = vpop.f32.mrf.mxu0
      %v4377 = vadd.f32 %v4328, %v4376
      %4378 = vmatmul.bf16.gmra.mxu0 %v2992
      %v4379 = vpop.f32.mrf.mxu0
      %v4380 = vadd.f32 %v4331, %v4379
      %v4381 = vpop.f32.mrf.mxu0
      %v4382 = vadd.f32 %v4333, %v4381
      %4383 = vmatmul.bf16.gmra.mxu0 %v2994
      %v4384 = vpop.f32.mrf.mxu0
      %v4385 = vadd.f32 %v4336, %v4384
      %v4386 = vpop.f32.mrf.mxu0
      %v4387 = vadd.f32 %v4338, %v4386
      %4388 = vmatmul.bf16.gmra.mxu0 %v2996
      %v4389 = vpop.f32.mrf.mxu0
      %v4390 = vadd.f32 %v4341, %v4389
      %v4391 = vpop.f32.mrf.mxu0
      %v4392 = vadd.f32 %v4343, %v4391
      %4393 = vmatmul.bf16.gmra.mxu0 %v2998
      %v4394 = vpop.f32.mrf.mxu0
      %v4395 = vadd.f32 %v4346, %v4394
      %v4396 = vpop.f32.mrf.mxu0
      %v4397 = vadd.f32 %v4348, %v4396
      %4398 = vmatmul.bf16.gmra.mxu0 %v3000
      %v4399 = vpop.f32.mrf.mxu0
      %v4400 = vadd.f32 %v4351, %v4399
      %v4401 = vpop.f32.mrf.mxu0
      %v4402 = vadd.f32 %v4353, %v4401
      %4403 = vmatmul.bf16.gmra.mxu0 %v3002
      %v4404 = vpop.f32.mrf.mxu0
      %v4405 = vadd.f32 %v4356, %v4404
      %v4406 = vpop.f32.mrf.mxu0
      %v4407 = vadd.f32 %v4358, %v4406
      %4408 = vdwg.mxu0
      %v4409 = vsub.f32 0.0, %v3782
      %v4410 = vsub.f32 0.0, %v3880
      %v4411 = vsub.f32 0.0, %v3978
      %v4412 = vsub.f32 0.0, %v4076
      %v4413 = vsub.f32 0.0, %v4174
      %v4414 = vsub.f32 0.0, %v4272
      %v4415 = vsub.f32 0.0, %v4370
      %v4416 = vsub.f32 0.0, %v3784
      %v4417 = vsub.f32 0.0, %v3882
      %v4418 = vsub.f32 0.0, %v3980
      %v4419 = vsub.f32 0.0, %v4078
      %v4420 = vsub.f32 0.0, %v4176
      %v4421 = vsub.f32 0.0, %v4274
      %v4422 = vsub.f32 0.0, %v4372
      %v4423 = vsub.f32 0.0, %v3787
      %v4424 = vsub.f32 0.0, %v3885
      %v4425 = vsub.f32 0.0, %v3983
      %v4426 = vsub.f32 0.0, %v4081
      %v4427 = vsub.f32 0.0, %v4179
      %v4428 = vsub.f32 0.0, %v4277
      %v4429 = vsub.f32 0.0, %v4375
      %v4430 = vsub.f32 0.0, %v3789
      %v4431 = vsub.f32 0.0, %v3887
      %v4432 = vsub.f32 0.0, %v3985
      %v4433 = vsub.f32 0.0, %v4083
      %v4434 = vsub.f32 0.0, %v4181
      %v4435 = vsub.f32 0.0, %v4279
      %v4436 = vsub.f32 0.0, %v4377
      %v4437 = vsub.f32 0.0, %v3792
      %v4438 = vsub.f32 0.0, %v3890
      %v4439 = vsub.f32 0.0, %v3988
      %v4440 = vsub.f32 0.0, %v4086
      %v4441 = vsub.f32 0.0, %v4184
      %v4442 = vsub.f32 0.0, %v4282
      %v4443 = vsub.f32 0.0, %v4380
      %v4444 = vsub.f32 0.0, %v3794
      %v4445 = vsub.f32 0.0, %v3892
      %v4446 = vsub.f32 0.0, %v3990
      %v4447 = vsub.f32 0.0, %v4088
      %v4448 = vsub.f32 0.0, %v4186
      %v4449 = vsub.f32 0.0, %v4284
      %v4450 = vsub.f32 0.0, %v4382
      %v4451 = vsub.f32 0.0, %v3797
      %v4452 = vsub.f32 0.0, %v3895
      %v4453 = vsub.f32 0.0, %v3993
      %v4454 = vsub.f32 0.0, %v4091
      %v4455 = vsub.f32 0.0, %v4189
      %v4456 = vsub.f32 0.0, %v4287
      %v4457 = vsub.f32 0.0, %v4385
      %v4458 = vsub.f32 0.0, %v3799
      %v4459 = vsub.f32 0.0, %v3897
      %v4460 = vsub.f32 0.0, %v3995
      %v4461 = vsub.f32 0.0, %v4093
      %v4462 = vsub.f32 0.0, %v4191
      %v4463 = vsub.f32 0.0, %v4289
      %v4464 = vsub.f32 0.0, %v4387
      %v4465 = vsub.f32 0.0, %v3802
      %v4466 = vsub.f32 0.0, %v3900
      %v4467 = vsub.f32 0.0, %v3998
      %v4468 = vsub.f32 0.0, %v4096
      %v4469 = vsub.f32 0.0, %v4194
      %v4470 = vsub.f32 0.0, %v4292
      %v4471 = vsub.f32 0.0, %v4390
      %v4472 = vsub.f32 0.0, %v3804
      %v4473 = vsub.f32 0.0, %v3902
      %v4474 = vsub.f32 0.0, %v4000
      %v4475 = vsub.f32 0.0, %v4098
      %v4476 = vsub.f32 0.0, %v4196
      %v4477 = vsub.f32 0.0, %v4294
      %v4478 = vsub.f32 0.0, %v4392
      %v4479 = vsub.f32 0.0, %v3807
      %v4480 = vsub.f32 0.0, %v3905
      %v4481 = vsub.f32 0.0, %v4003
      %v4482 = vsub.f32 0.0, %v4101
      %v4483 = vsub.f32 0.0, %v4199
      %v4484 = vsub.f32 0.0, %v4297
      %v4485 = vsub.f32 0.0, %v4395
      %v4486 = vsub.f32 0.0, %v3809
      %v4487 = vsub.f32 0.0, %v3907
      %v4488 = vsub.f32 0.0, %v4005
      %v4489 = vsub.f32 0.0, %v4103
      %v4490 = vsub.f32 0.0, %v4201
      %v4491 = vsub.f32 0.0, %v4299
      %v4492 = vsub.f32 0.0, %v4397
      %v4493 = vsub.f32 0.0, %v3812
      %v4494 = vsub.f32 0.0, %v3910
      %v4495 = vsub.f32 0.0, %v4008
      %v4496 = vsub.f32 0.0, %v4106
      %v4497 = vsub.f32 0.0, %v4204
      %v4498 = vsub.f32 0.0, %v4302
      %v4499 = vsub.f32 0.0, %v4400
      %v4500 = vsub.f32 0.0, %v3814
      %v4501 = vsub.f32 0.0, %v3912
      %v4502 = vsub.f32 0.0, %v4010
      %v4503 = vsub.f32 0.0, %v4108
      %v4504 = vsub.f32 0.0, %v4206
      %v4505 = vsub.f32 0.0, %v4304
      %v4506 = vsub.f32 0.0, %v4402
      %v4507 = vsub.f32 0.0, %v3817
      %v4508 = vsub.f32 0.0, %v3915
      %v4509 = vsub.f32 0.0, %v4013
      %v4510 = vsub.f32 0.0, %v4111
      %v4511 = vsub.f32 0.0, %v4209
      %v4512 = vsub.f32 0.0, %v4307
      %v4513 = vsub.f32 0.0, %v4405
      %v4514 = vsub.f32 0.0, %v3819
      %v4515 = vsub.f32 0.0, %v3917
      %v4516 = vsub.f32 0.0, %v4015
      %v4517 = vsub.f32 0.0, %v4113
      %v4518 = vsub.f32 0.0, %v4211
      %v4519 = vsub.f32 0.0, %v4309
      %v4520 = vsub.f32 0.0, %v4407
      %v4521 = vmul.f32 %v4409, 1.442695
      %v4522 = vpow.pop %v4521
      %v4523 = vmul.f32 %v4410, 1.442695
      %v4524 = vpow.pop %v4523
      %v4525 = vmul.f32 %v4411, 1.442695
      %v4526 = vpow.pop %v4525
      %v4527 = vmul.f32 %v4412, 1.442695
      %v4528 = vpow.pop %v4527
      %v4529 = vmul.f32 %v4413, 1.442695
      %v4530 = vpow.pop %v4529
      %v4531 = vmul.f32 %v4414, 1.442695
      %v4532 = vpow.pop %v4531
      %v4533 = vmul.f32 %v4415, 1.442695
      %v4534 = vpow.pop %v4533
      %v4535 = vmul.f32 %v4416, 1.442695
      %v4536 = vpow.pop %v4535
      %v4537 = vmul.f32 %v4417, 1.442695
      %v4538 = vpow.pop %v4537
      %v4539 = vmul.f32 %v4418, 1.442695
      %v4540 = vpow.pop %v4539
      %v4541 = vmul.f32 %v4419, 1.442695
      %v4542 = vpow.pop %v4541
      %v4543 = vmul.f32 %v4420, 1.442695
      %v4544 = vpow.pop %v4543
      %v4545 = vmul.f32 %v4421, 1.442695
      %v4546 = vpow.pop %v4545
      %v4547 = vmul.f32 %v4422, 1.442695
      %v4548 = vpow.pop %v4547
      %v4549 = vmul.f32 %v4423, 1.442695
      %v4550 = vpow.pop %v4549
      %v4551 = vmul.f32 %v4424, 1.442695
      %v4552 = vpow.pop %v4551
      %v4553 = vmul.f32 %v4425, 1.442695
      %v4554 = vpow.pop %v4553
      %v4555 = vmul.f32 %v4426, 1.442695
      %v4556 = vpow.pop %v4555
      %v4557 = vmul.f32 %v4427, 1.442695
      %v4558 = vpow.pop %v4557
      %v4559 = vmul.f32 %v4428, 1.442695
      %v4560 = vpow.pop %v4559
      %v4561 = vmul.f32 %v4429, 1.442695
      %v4562 = vpow.pop %v4561
      %v4563 = vmul.f32 %v4430, 1.442695
      %v4564 = vpow.pop %v4563
      %v4565 = vmul.f32 %v4431, 1.442695
      %v4566 = vpow.pop %v4565
      %v4567 = vmul.f32 %v4432, 1.442695
      %v4568 = vpow.pop %v4567
      %v4569 = vmul.f32 %v4433, 1.442695
      %v4570 = vpow.pop %v4569
      %v4571 = vmul.f32 %v4434, 1.442695
      %v4572 = vpow.pop %v4571
      %v4573 = vmul.f32 %v4435, 1.442695
      %v4574 = vpow.pop %v4573
      %v4575 = vmul.f32 %v4436, 1.442695
      %v4576 = vpow.pop %v4575
      %v4577 = vmul.f32 %v4437, 1.442695
      %v4578 = vpow.pop %v4577
      %v4579 = vmul.f32 %v4438, 1.442695
      %v4580 = vpow.pop %v4579
      %v4581 = vmul.f32 %v4439, 1.442695
      %v4582 = vpow.pop %v4581
      %v4583 = vmul.f32 %v4440, 1.442695
      %v4584 = vpow.pop %v4583
      %v4585 = vmul.f32 %v4441, 1.442695
      %v4586 = vpow.pop %v4585
      %v4587 = vmul.f32 %v4442, 1.442695
      %v4588 = vpow.pop %v4587
      %v4589 = vmul.f32 %v4443, 1.442695
      %v4590 = vpow.pop %v4589
      %v4591 = vmul.f32 %v4444, 1.442695
      %v4592 = vpow.pop %v4591
      %v4593 = vmul.f32 %v4445, 1.442695
      %v4594 = vpow.pop %v4593
      %v4595 = vmul.f32 %v4446, 1.442695
      %v4596 = vpow.pop %v4595
      %v4597 = vmul.f32 %v4447, 1.442695
      %v4598 = vpow.pop %v4597
      %v4599 = vmul.f32 %v4448, 1.442695
      %v4600 = vpow.pop %v4599
      %v4601 = vmul.f32 %v4449, 1.442695
      %v4602 = vpow.pop %v4601
      %v4603 = vmul.f32 %v4450, 1.442695
      %v4604 = vpow.pop %v4603
      %v4605 = vmul.f32 %v4451, 1.442695
      %v4606 = vpow.pop %v4605
      %v4607 = vmul.f32 %v4452, 1.442695
      %v4608 = vpow.pop %v4607
      %v4609 = vmul.f32 %v4453, 1.442695
      %v4610 = vpow.pop %v4609
      %v4611 = vmul.f32 %v4454, 1.442695
      %v4612 = vpow.pop %v4611
      %v4613 = vmul.f32 %v4455, 1.442695
      %v4614 = vpow.pop %v4613
      %v4615 = vmul.f32 %v4456, 1.442695
      %v4616 = vpow.pop %v4615
      %v4617 = vmul.f32 %v4457, 1.442695
      %v4618 = vpow.pop %v4617
      %v4619 = vmul.f32 %v4458, 1.442695
      %v4620 = vpow.pop %v4619
      %v4621 = vmul.f32 %v4459, 1.442695
      %v4622 = vpow.pop %v4621
      %v4623 = vmul.f32 %v4460, 1.442695
      %v4624 = vpow.pop %v4623
      %v4625 = vmul.f32 %v4461, 1.442695
      %v4626 = vpow.pop %v4625
      %v4627 = vmul.f32 %v4462, 1.442695
      %v4628 = vpow.pop %v4627
      %v4629 = vmul.f32 %v4463, 1.442695
      %v4630 = vpow.pop %v4629
      %v4631 = vmul.f32 %v4464, 1.442695
      %v4632 = vpow.pop %v4631
      %v4633 = vmul.f32 %v4465, 1.442695
      %v4634 = vpow.pop %v4633
      %v4635 = vmul.f32 %v4466, 1.442695
      %v4636 = vpow.pop %v4635
      %v4637 = vmul.f32 %v4467, 1.442695
      %v4638 = vpow.pop %v4637
      %v4639 = vmul.f32 %v4468, 1.442695
      %v4640 = vpow.pop %v4639
      %v4641 = vmul.f32 %v4469, 1.442695
      %v4642 = vpow.pop %v4641
      %v4643 = vmul.f32 %v4470, 1.442695
      %v4644 = vpow.pop %v4643
      %v4645 = vmul.f32 %v4471, 1.442695
      %v4646 = vpow.pop %v4645
      %v4647 = vmul.f32 %v4472, 1.442695
      %v4648 = vpow.pop %v4647
      %v4649 = vmul.f32 %v4473, 1.442695
      %v4650 = vpow.pop %v4649
      %v4651 = vmul.f32 %v4474, 1.442695
      %v4652 = vpow.pop %v4651
      %v4653 = vmul.f32 %v4475, 1.442695
      %v4654 = vpow.pop %v4653
      %v4655 = vmul.f32 %v4476, 1.442695
      %v4656 = vpow.pop %v4655
      %v4657 = vmul.f32 %v4477, 1.442695
      %v4658 = vpow.pop %v4657
      %v4659 = vmul.f32 %v4478, 1.442695
      %v4660 = vpow.pop %v4659
      %v4661 = vmul.f32 %v4479, 1.442695
      %v4662 = vpow.pop %v4661
      %v4663 = vmul.f32 %v4480, 1.442695
      %v4664 = vpow.pop %v4663
      %v4665 = vmul.f32 %v4481, 1.442695
      %v4666 = vpow.pop %v4665
      %v4667 = vmul.f32 %v4482, 1.442695
      %v4668 = vpow.pop %v4667
      %v4669 = vmul.f32 %v4483, 1.442695
      %v4670 = vpow.pop %v4669
      %v4671 = vmul.f32 %v4484, 1.442695
      %v4672 = vpow.pop %v4671
      %v4673 = vmul.f32 %v4485, 1.442695
      %v4674 = vpow.pop %v4673
      %v4675 = vmul.f32 %v4486, 1.442695
      %v4676 = vpow.pop %v4675
      %v4677 = vmul.f32 %v4487, 1.442695
      %v4678 = vpow.pop %v4677
      %v4679 = vmul.f32 %v4488, 1.442695
      %v4680 = vpow.pop %v4679
      %v4681 = vmul.f32 %v4489, 1.442695
      %v4682 = vpow.pop %v4681
      %v4683 = vmul.f32 %v4490, 1.442695
      %v4684 = vpow.pop %v4683
      %v4685 = vmul.f32 %v4491, 1.442695
      %v4686 = vpow.pop %v4685
      %v4687 = vmul.f32 %v4492, 1.442695
      %v4688 = vpow.pop %v4687
      %v4689 = vmul.f32 %v4493, 1.442695
      %v4690 = vpow.pop %v4689
      %v4691 = vmul.f32 %v4494, 1.442695
      %v4692 = vpow.pop %v4691
      %v4693 = vmul.f32 %v4495, 1.442695
      %v4694 = vpow.pop %v4693
      %v4695 = vmul.f32 %v4496, 1.442695
      %v4696 = vpow.pop %v4695
      %v4697 = vmul.f32 %v4497, 1.442695
      %v4698 = vpow.pop %v4697
      %v4699 = vmul.f32 %v4498, 1.442695
      %v4700 = vpow.pop %v4699
      %v4701 = vmul.f32 %v4499, 1.442695
      %v4702 = vpow.pop %v4701
      %v4703 = vmul.f32 %v4500, 1.442695
      %v4704 = vpow.pop %v4703
      %v4705 = vmul.f32 %v4501, 1.442695
      %v4706 = vpow.pop %v4705
      %v4707 = vmul.f32 %v4502, 1.442695
      %v4708 = vpow.pop %v4707
      %v4709 = vmul.f32 %v4503, 1.442695
      %v4710 = vpow.pop %v4709
      %v4711 = vmul.f32 %v4504, 1.442695
      %v4712 = vpow.pop %v4711
      %v4713 = vmul.f32 %v4505, 1.442695
      %v4714 = vpow.pop %v4713
      %v4715 = vmul.f32 %v4506, 1.442695
      %v4716 = vpow.pop %v4715
      %v4717 = vmul.f32 %v4507, 1.442695
      %v4718 = vpow.pop %v4717
      %v4719 = vmul.f32 %v4508, 1.442695
      %v4720 = vpow.pop %v4719
      %v4721 = vmul.f32 %v4509, 1.442695
      %v4722 = vpow.pop %v4721
      %v4723 = vmul.f32 %v4510, 1.442695
      %v4724 = vpow.pop %v4723
      %v4725 = vmul.f32 %v4511, 1.442695
      %v4726 = vpow.pop %v4725
      %v4727 = vmul.f32 %v4512, 1.442695
      %v4728 = vpow.pop %v4727
      %v4729 = vmul.f32 %v4513, 1.442695
      %v4730 = vpow.pop %v4729
      %v4731 = vmul.f32 %v4514, 1.442695
      %v4732 = vpow.pop %v4731
      %v4733 = vmul.f32 %v4515, 1.442695
      %v4734 = vpow.pop %v4733
      %v4735 = vmul.f32 %v4516, 1.442695
      %v4736 = vpow.pop %v4735
      %v4737 = vmul.f32 %v4517, 1.442695
      %v4738 = vpow.pop %v4737
      %v4739 = vmul.f32 %v4518, 1.442695
      %v4740 = vpow.pop %v4739
      %v4741 = vmul.f32 %v4519, 1.442695
      %v4742 = vpow.pop %v4741
      %v4743 = vmul.f32 %v4520, 1.442695
      %v4744 = vpow.pop %v4743
      %v4745 = vadd.f32 %v4522, 1.0
      %v4746 = vadd.f32 %v4524, 1.0
      %v4747 = vadd.f32 %v4526, 1.0
      %v4748 = vadd.f32 %v4528, 1.0
      %v4749 = vadd.f32 %v4530, 1.0
      %v4750 = vadd.f32 %v4532, 1.0
      %v4751 = vadd.f32 %v4534, 1.0
      %v4752 = vadd.f32 %v4536, 1.0
      %v4753 = vadd.f32 %v4538, 1.0
      %v4754 = vadd.f32 %v4540, 1.0
      %v4755 = vadd.f32 %v4542, 1.0
      %v4756 = vadd.f32 %v4544, 1.0
      %v4757 = vadd.f32 %v4546, 1.0
      %v4758 = vadd.f32 %v4548, 1.0
      %v4759 = vadd.f32 %v4550, 1.0
      %v4760 = vadd.f32 %v4552, 1.0
      %v4761 = vadd.f32 %v4554, 1.0
      %v4762 = vadd.f32 %v4556, 1.0
      %v4763 = vadd.f32 %v4558, 1.0
      %v4764 = vadd.f32 %v4560, 1.0
      %v4765 = vadd.f32 %v4562, 1.0
      %v4766 = vadd.f32 %v4564, 1.0
      %v4767 = vadd.f32 %v4566, 1.0
      %v4768 = vadd.f32 %v4568, 1.0
      %v4769 = vadd.f32 %v4570, 1.0
      %v4770 = vadd.f32 %v4572, 1.0
      %v4771 = vadd.f32 %v4574, 1.0
      %v4772 = vadd.f32 %v4576, 1.0
      %v4773 = vadd.f32 %v4578, 1.0
      %v4774 = vadd.f32 %v4580, 1.0
      %v4775 = vadd.f32 %v4582, 1.0
      %v4776 = vadd.f32 %v4584, 1.0
      %v4777 = vadd.f32 %v4586, 1.0
      %v4778 = vadd.f32 %v4588, 1.0
      %v4779 = vadd.f32 %v4590, 1.0
      %v4780 = vadd.f32 %v4592, 1.0
      %v4781 = vadd.f32 %v4594, 1.0
      %v4782 = vadd.f32 %v4596, 1.0
      %v4783 = vadd.f32 %v4598, 1.0
      %v4784 = vadd.f32 %v4600, 1.0
      %v4785 = vadd.f32 %v4602, 1.0
      %v4786 = vadd.f32 %v4604, 1.0
      %v4787 = vadd.f32 %v4606, 1.0
      %v4788 = vadd.f32 %v4608, 1.0
      %v4789 = vadd.f32 %v4610, 1.0
      %v4790 = vadd.f32 %v4612, 1.0
      %v4791 = vadd.f32 %v4614, 1.0
      %v4792 = vadd.f32 %v4616, 1.0
      %v4793 = vadd.f32 %v4618, 1.0
      %v4794 = vadd.f32 %v4620, 1.0
      %v4795 = vadd.f32 %v4622, 1.0
      %v4796 = vadd.f32 %v4624, 1.0
      %v4797 = vadd.f32 %v4626, 1.0
      %v4798 = vadd.f32 %v4628, 1.0
      %v4799 = vadd.f32 %v4630, 1.0
      %v4800 = vadd.f32 %v4632, 1.0
      %v4801 = vadd.f32 %v4634, 1.0
      %v4802 = vadd.f32 %v4636, 1.0
      %v4803 = vadd.f32 %v4638, 1.0
      %v4804 = vadd.f32 %v4640, 1.0
      %v4805 = vadd.f32 %v4642, 1.0
      %v4806 = vadd.f32 %v4644, 1.0
      %v4807 = vadd.f32 %v4646, 1.0
      %v4808 = vadd.f32 %v4648, 1.0
      %v4809 = vadd.f32 %v4650, 1.0
      %v4810 = vadd.f32 %v4652, 1.0
      %v4811 = vadd.f32 %v4654, 1.0
      %v4812 = vadd.f32 %v4656, 1.0
      %v4813 = vadd.f32 %v4658, 1.0
      %v4814 = vadd.f32 %v4660, 1.0
      %v4815 = vadd.f32 %v4662, 1.0
      %v4816 = vadd.f32 %v4664, 1.0
      %v4817 = vadd.f32 %v4666, 1.0
      %v4818 = vadd.f32 %v4668, 1.0
      %v4819 = vadd.f32 %v4670, 1.0
      %v4820 = vadd.f32 %v4672, 1.0
      %v4821 = vadd.f32 %v4674, 1.0
      %v4822 = vadd.f32 %v4676, 1.0
      %v4823 = vadd.f32 %v4678, 1.0
      %v4824 = vadd.f32 %v4680, 1.0
      %v4825 = vadd.f32 %v4682, 1.0
      %v4826 = vadd.f32 %v4684, 1.0
      %v4827 = vadd.f32 %v4686, 1.0
      %v4828 = vadd.f32 %v4688, 1.0
      %v4829 = vadd.f32 %v4690, 1.0
      %v4830 = vadd.f32 %v4692, 1.0
      %v4831 = vadd.f32 %v4694, 1.0
      %v4832 = vadd.f32 %v4696, 1.0
      %v4833 = vadd.f32 %v4698, 1.0
      %v4834 = vadd.f32 %v4700, 1.0
      %v4835 = vadd.f32 %v4702, 1.0
      %v4836 = vadd.f32 %v4704, 1.0
      %v4837 = vadd.f32 %v4706, 1.0
      %v4838 = vadd.f32 %v4708, 1.0
      %v4839 = vadd.f32 %v4710, 1.0
      %v4840 = vadd.f32 %v4712, 1.0
      %v4841 = vadd.f32 %v4714, 1.0
      %v4842 = vadd.f32 %v4716, 1.0
      %v4843 = vadd.f32 %v4718, 1.0
      %v4844 = vadd.f32 %v4720, 1.0
      %v4845 = vadd.f32 %v4722, 1.0
      %v4846 = vadd.f32 %v4724, 1.0
      %v4847 = vadd.f32 %v4726, 1.0
      %v4848 = vadd.f32 %v4728, 1.0
      %v4849 = vadd.f32 %v4730, 1.0
      %v4850 = vadd.f32 %v4732, 1.0
      %v4851 = vadd.f32 %v4734, 1.0
      %v4852 = vadd.f32 %v4736, 1.0
      %v4853 = vadd.f32 %v4738, 1.0
      %v4854 = vadd.f32 %v4740, 1.0
      %v4855 = vadd.f32 %v4742, 1.0
      %v4856 = vadd.f32 %v4744, 1.0
      %v4857 = vrcp.pop %v4745
      %v4858 = vrcp.pop %v4746
      %v4859 = vrcp.pop %v4747
      %v4860 = vrcp.pop %v4748
      %v4861 = vrcp.pop %v4749
      %v4862 = vrcp.pop %v4750
      %v4863 = vrcp.pop %v4751
      %v4864 = vrcp.pop %v4752
      %v4865 = vrcp.pop %v4753
      %v4866 = vrcp.pop %v4754
      %v4867 = vrcp.pop %v4755
      %v4868 = vrcp.pop %v4756
      %v4869 = vrcp.pop %v4757
      %v4870 = vrcp.pop %v4758
      %v4871 = vrcp.pop %v4759
      %v4872 = vrcp.pop %v4760
      %v4873 = vrcp.pop %v4761
      %v4874 = vrcp.pop %v4762
      %v4875 = vrcp.pop %v4763
      %v4876 = vrcp.pop %v4764
      %v4877 = vrcp.pop %v4765
      %v4878 = vrcp.pop %v4766
      %v4879 = vrcp.pop %v4767
      %v4880 = vrcp.pop %v4768
      %v4881 = vrcp.pop %v4769
      %v4882 = vrcp.pop %v4770
      %v4883 = vrcp.pop %v4771
      %v4884 = vrcp.pop %v4772
      %v4885 = vrcp.pop %v4773
      %v4886 = vrcp.pop %v4774
      %v4887 = vrcp.pop %v4775
      %v4888 = vrcp.pop %v4776
      %v4889 = vrcp.pop %v4777
      %v4890 = vrcp.pop %v4778
      %v4891 = vrcp.pop %v4779
      %v4892 = vrcp.pop %v4780
      %v4893 = vrcp.pop %v4781
      %v4894 = vrcp.pop %v4782
      %v4895 = vrcp.pop %v4783
      %v4896 = vrcp.pop %v4784
      %v4897 = vrcp.pop %v4785
      %v4898 = vrcp.pop %v4786
      %v4899 = vrcp.pop %v4787
      %v4900 = vrcp.pop %v4788
      %v4901 = vrcp.pop %v4789
      %v4902 = vrcp.pop %v4790
      %v4903 = vrcp.pop %v4791
      %v4904 = vrcp.pop %v4792
      %v4905 = vrcp.pop %v4793
      %v4906 = vrcp.pop %v4794
      %v4907 = vrcp.pop %v4795
      %v4908 = vrcp.pop %v4796
      %v4909 = vrcp.pop %v4797
      %v4910 = vrcp.pop %v4798
      %v4911 = vrcp.pop %v4799
      %v4912 = vrcp.pop %v4800
      %v4913 = vrcp.pop %v4801
      %v4914 = vrcp.pop %v4802
      %v4915 = vrcp.pop %v4803
      %v4916 = vrcp.pop %v4804
      %v4917 = vrcp.pop %v4805
      %v4918 = vrcp.pop %v4806
      %v4919 = vrcp.pop %v4807
      %v4920 = vrcp.pop %v4808
      %v4921 = vrcp.pop %v4809
      %v4922 = vrcp.pop %v4810
      %v4923 = vrcp.pop %v4811
      %v4924 = vrcp.pop %v4812
      %v4925 = vrcp.pop %v4813
      %v4926 = vrcp.pop %v4814
      %v4927 = vrcp.pop %v4815
      %v4928 = vrcp.pop %v4816
      %v4929 = vrcp.pop %v4817
      %v4930 = vrcp.pop %v4818
      %v4931 = vrcp.pop %v4819
      %v4932 = vrcp.pop %v4820
      %v4933 = vrcp.pop %v4821
      %v4934 = vrcp.pop %v4822
      %v4935 = vrcp.pop %v4823
      %v4936 = vrcp.pop %v4824
      %v4937 = vrcp.pop %v4825
      %v4938 = vrcp.pop %v4826
      %v4939 = vrcp.pop %v4827
      %v4940 = vrcp.pop %v4828
      %v4941 = vrcp.pop %v4829
      %v4942 = vrcp.pop %v4830
      %v4943 = vrcp.pop %v4831
      %v4944 = vrcp.pop %v4832
      %v4945 = vrcp.pop %v4833
      %v4946 = vrcp.pop %v4834
      %v4947 = vrcp.pop %v4835
      %v4948 = vrcp.pop %v4836
      %v4949 = vrcp.pop %v4837
      %v4950 = vrcp.pop %v4838
      %v4951 = vrcp.pop %v4839
      %v4952 = vrcp.pop %v4840
      %v4953 = vrcp.pop %v4841
      %v4954 = vrcp.pop %v4842
      %v4955 = vrcp.pop %v4843
      %v4956 = vrcp.pop %v4844
      %v4957 = vrcp.pop %v4845
      %v4958 = vrcp.pop %v4846
      %v4959 = vrcp.pop %v4847
      %v4960 = vrcp.pop %v4848
      %v4961 = vrcp.pop %v4849
      %v4962 = vrcp.pop %v4850
      %v4963 = vrcp.pop %v4851
      %v4964 = vrcp.pop %v4852
      %v4965 = vrcp.pop %v4853
      %v4966 = vrcp.pop %v4854
      %v4967 = vrcp.pop %v4855
      %v4968 = vrcp.pop %v4856
      %v4969 = vmax.f32 %v4857, 0.0
      %v4970 = vmax.f32 %v4858, 0.0
      %v4971 = vmax.f32 %v4859, 0.0
      %v4972 = vmax.f32 %v4860, 0.0
      %v4973 = vmax.f32 %v4861, 0.0
      %v4974 = vmax.f32 %v4862, 0.0
      %v4975 = vmax.f32 %v4863, 0.0
      %v4976 = vmax.f32 %v4864, 0.0
      %v4977 = vmax.f32 %v4865, 0.0
      %v4978 = vmax.f32 %v4866, 0.0
      %v4979 = vmax.f32 %v4867, 0.0
      %v4980 = vmax.f32 %v4868, 0.0
      %v4981 = vmax.f32 %v4869, 0.0
      %v4982 = vmax.f32 %v4870, 0.0
      %v4983 = vmax.f32 %v4871, 0.0
      %v4984 = vmax.f32 %v4872, 0.0
      %v4985 = vmax.f32 %v4873, 0.0
      %v4986 = vmax.f32 %v4874, 0.0
      %v4987 = vmax.f32 %v4875, 0.0
      %v4988 = vmax.f32 %v4876, 0.0
      %v4989 = vmax.f32 %v4877, 0.0
      %v4990 = vmax.f32 %v4878, 0.0
      %v4991 = vmax.f32 %v4879, 0.0
      %v4992 = vmax.f32 %v4880, 0.0
      %v4993 = vmax.f32 %v4881, 0.0
      %v4994 = vmax.f32 %v4882, 0.0
      %v4995 = vmax.f32 %v4883, 0.0
      %v4996 = vmax.f32 %v4884, 0.0
      %v4997 = vmax.f32 %v4885, 0.0
      %v4998 = vmax.f32 %v4886, 0.0
      %v4999 = vmax.f32 %v4887, 0.0
      %v5000 = vmax.f32 %v4888, 0.0
      %v5001 = vmax.f32 %v4889, 0.0
      %v5002 = vmax.f32 %v4890, 0.0
      %v5003 = vmax.f32 %v4891, 0.0
      %v5004 = vmax.f32 %v4892, 0.0
      %v5005 = vmax.f32 %v4893, 0.0
      %v5006 = vmax.f32 %v4894, 0.0
      %v5007 = vmax.f32 %v4895, 0.0
      %v5008 = vmax.f32 %v4896, 0.0
      %v5009 = vmax.f32 %v4897, 0.0
      %v5010 = vmax.f32 %v4898, 0.0
      %v5011 = vmax.f32 %v4899, 0.0
      %v5012 = vmax.f32 %v4900, 0.0
      %v5013 = vmax.f32 %v4901, 0.0
      %v5014 = vmax.f32 %v4902, 0.0
      %v5015 = vmax.f32 %v4903, 0.0
      %v5016 = vmax.f32 %v4904, 0.0
      %v5017 = vmax.f32 %v4905, 0.0
      %v5018 = vmax.f32 %v4906, 0.0
      %v5019 = vmax.f32 %v4907, 0.0
      %v5020 = vmax.f32 %v4908, 0.0
      %v5021 = vmax.f32 %v4909, 0.0
      %v5022 = vmax.f32 %v4910, 0.0
      %v5023 = vmax.f32 %v4911, 0.0
      %v5024 = vmax.f32 %v4912, 0.0
      %v5025 = vmax.f32 %v4913, 0.0
      %v5026 = vmax.f32 %v4914, 0.0
      %v5027 = vmax.f32 %v4915, 0.0
      %v5028 = vmax.f32 %v4916, 0.0
      %v5029 = vmax.f32 %v4917, 0.0
      %v5030 = vmax.f32 %v4918, 0.0
      %v5031 = vmax.f32 %v4919, 0.0
      %v5032 = vmax.f32 %v4920, 0.0
      %v5033 = vmax.f32 %v4921, 0.0
      %v5034 = vmax.f32 %v4922, 0.0
      %v5035 = vmax.f32 %v4923, 0.0
      %v5036 = vmax.f32 %v4924, 0.0
      %v5037 = vmax.f32 %v4925, 0.0
      %v5038 = vmax.f32 %v4926, 0.0
      %v5039 = vmax.f32 %v4927, 0.0
      %v5040 = vmax.f32 %v4928, 0.0
      %v5041 = vmax.f32 %v4929, 0.0
      %v5042 = vmax.f32 %v4930, 0.0
      %v5043 = vmax.f32 %v4931, 0.0
      %v5044 = vmax.f32 %v4932, 0.0
      %v5045 = vmax.f32 %v4933, 0.0
      %v5046 = vmax.f32 %v4934, 0.0
      %v5047 = vmax.f32 %v4935, 0.0
      %v5048 = vmax.f32 %v4936, 0.0
      %v5049 = vmax.f32 %v4937, 0.0
      %v5050 = vmax.f32 %v4938, 0.0
      %v5051 = vmax.f32 %v4939, 0.0
      %v5052 = vmax.f32 %v4940, 0.0
      %v5053 = vmax.f32 %v4941, 0.0
      %v5054 = vmax.f32 %v4942, 0.0
      %v5055 = vmax.f32 %v4943, 0.0
      %v5056 = vmax.f32 %v4944, 0.0
      %v5057 = vmax.f32 %v4945, 0.0
      %v5058 = vmax.f32 %v4946, 0.0
      %v5059 = vmax.f32 %v4947, 0.0
      %v5060 = vmax.f32 %v4948, 0.0
      %v5061 = vmax.f32 %v4949, 0.0
      %v5062 = vmax.f32 %v4950, 0.0
      %v5063 = vmax.f32 %v4951, 0.0
      %v5064 = vmax.f32 %v4952, 0.0
      %v5065 = vmax.f32 %v4953, 0.0
      %v5066 = vmax.f32 %v4954, 0.0
      %v5067 = vmax.f32 %v4955, 0.0
      %v5068 = vmax.f32 %v4956, 0.0
      %v5069 = vmax.f32 %v4957, 0.0
      %v5070 = vmax.f32 %v4958, 0.0
      %v5071 = vmax.f32 %v4959, 0.0
      %v5072 = vmax.f32 %v4960, 0.0
      %v5073 = vmax.f32 %v4961, 0.0
      %v5074 = vmax.f32 %v4962, 0.0
      %v5075 = vmax.f32 %v4963, 0.0
      %v5076 = vmax.f32 %v4964, 0.0
      %v5077 = vmax.f32 %v4965, 0.0
      %v5078 = vmax.f32 %v4966, 0.0
      %v5079 = vmax.f32 %v4967, 0.0
      %v5080 = vmax.f32 %v4968, 0.0
      %v5081 = vmin.f32 %v4969, 1.0
      %v5082 = vmin.f32 %v4970, 1.0
      %v5083 = vmin.f32 %v4971, 1.0
      %v5084 = vmin.f32 %v4972, 1.0
      %v5085 = vmin.f32 %v4973, 1.0
      %v5086 = vmin.f32 %v4974, 1.0
      %v5087 = vmin.f32 %v4975, 1.0
      %v5088 = vmin.f32 %v4976, 1.0
      %v5089 = vmin.f32 %v4977, 1.0
      %v5090 = vmin.f32 %v4978, 1.0
      %v5091 = vmin.f32 %v4979, 1.0
      %v5092 = vmin.f32 %v4980, 1.0
      %v5093 = vmin.f32 %v4981, 1.0
      %v5094 = vmin.f32 %v4982, 1.0
      %v5095 = vmin.f32 %v4983, 1.0
      %v5096 = vmin.f32 %v4984, 1.0
      %v5097 = vmin.f32 %v4985, 1.0
      %v5098 = vmin.f32 %v4986, 1.0
      %v5099 = vmin.f32 %v4987, 1.0
      %v5100 = vmin.f32 %v4988, 1.0
      %v5101 = vmin.f32 %v4989, 1.0
      %v5102 = vmin.f32 %v4990, 1.0
      %v5103 = vmin.f32 %v4991, 1.0
      %v5104 = vmin.f32 %v4992, 1.0
      %v5105 = vmin.f32 %v4993, 1.0
      %v5106 = vmin.f32 %v4994, 1.0
      %v5107 = vmin.f32 %v4995, 1.0
      %v5108 = vmin.f32 %v4996, 1.0
      %v5109 = vmin.f32 %v4997, 1.0
      %v5110 = vmin.f32 %v4998, 1.0
      %v5111 = vmin.f32 %v4999, 1.0
      %v5112 = vmin.f32 %v5000, 1.0
      %v5113 = vmin.f32 %v5001, 1.0
      %v5114 = vmin.f32 %v5002, 1.0
      %v5115 = vmin.f32 %v5003, 1.0
      %v5116 = vmin.f32 %v5004, 1.0
      %v5117 = vmin.f32 %v5005, 1.0
      %v5118 = vmin.f32 %v5006, 1.0
      %v5119 = vmin.f32 %v5007, 1.0
      %v5120 = vmin.f32 %v5008, 1.0
      %v5121 = vmin.f32 %v5009, 1.0
      %v5122 = vmin.f32 %v5010, 1.0
      %v5123 = vmin.f32 %v5011, 1.0
      %v5124 = vmin.f32 %v5012, 1.0
      %v5125 = vmin.f32 %v5013, 1.0
      %v5126 = vmin.f32 %v5014, 1.0
      %v5127 = vmin.f32 %v5015, 1.0
      %v5128 = vmin.f32 %v5016, 1.0
      %v5129 = vmin.f32 %v5017, 1.0
      %v5130 = vmin.f32 %v5018, 1.0
      %v5131 = vmin.f32 %v5019, 1.0
      %v5132 = vmin.f32 %v5020, 1.0
      %v5133 = vmin.f32 %v5021, 1.0
      %v5134 = vmin.f32 %v5022, 1.0
      %v5135 = vmin.f32 %v5023, 1.0
      %v5136 = vmin.f32 %v5024, 1.0
      %v5137 = vmin.f32 %v5025, 1.0
      %v5138 = vmin.f32 %v5026, 1.0
      %v5139 = vmin.f32 %v5027, 1.0
      %v5140 = vmin.f32 %v5028, 1.0
      %v5141 = vmin.f32 %v5029, 1.0
      %v5142 = vmin.f32 %v5030, 1.0
      %v5143 = vmin.f32 %v5031, 1.0
      %v5144 = vmin.f32 %v5032, 1.0
      %v5145 = vmin.f32 %v5033, 1.0
      %v5146 = vmin.f32 %v5034, 1.0
      %v5147 = vmin.f32 %v5035, 1.0
      %v5148 = vmin.f32 %v5036, 1.0
      %v5149 = vmin.f32 %v5037, 1.0
      %v5150 = vmin.f32 %v5038, 1.0
      %v5151 = vmin.f32 %v5039, 1.0
      %v5152 = vmin.f32 %v5040, 1.0
      %v5153 = vmin.f32 %v5041, 1.0
      %v5154 = vmin.f32 %v5042, 1.0
      %v5155 = vmin.f32 %v5043, 1.0
      %v5156 = vmin.f32 %v5044, 1.0
      %v5157 = vmin.f32 %v5045, 1.0
      %v5158 = vmin.f32 %v5046, 1.0
      %v5159 = vmin.f32 %v5047, 1.0
      %v5160 = vmin.f32 %v5048, 1.0
      %v5161 = vmin.f32 %v5049, 1.0
      %v5162 = vmin.f32 %v5050, 1.0
      %v5163 = vmin.f32 %v5051, 1.0
      %v5164 = vmin.f32 %v5052, 1.0
      %v5165 = vmin.f32 %v5053, 1.0
      %v5166 = vmin.f32 %v5054, 1.0
      %v5167 = vmin.f32 %v5055, 1.0
      %v5168 = vmin.f32 %v5056, 1.0
      %v5169 = vmin.f32 %v5057, 1.0
      %v5170 = vmin.f32 %v5058, 1.0
      %v5171 = vmin.f32 %v5059, 1.0
      %v5172 = vmin.f32 %v5060, 1.0
      %v5173 = vmin.f32 %v5061, 1.0
      %v5174 = vmin.f32 %v5062, 1.0
      %v5175 = vmin.f32 %v5063, 1.0
      %v5176 = vmin.f32 %v5064, 1.0
      %v5177 = vmin.f32 %v5065, 1.0
      %v5178 = vmin.f32 %v5066, 1.0
      %v5179 = vmin.f32 %v5067, 1.0
      %v5180 = vmin.f32 %v5068, 1.0
      %v5181 = vmin.f32 %v5069, 1.0
      %v5182 = vmin.f32 %v5070, 1.0
      %v5183 = vmin.f32 %v5071, 1.0
      %v5184 = vmin.f32 %v5072, 1.0
      %v5185 = vmin.f32 %v5073, 1.0
      %v5186 = vmin.f32 %v5074, 1.0
      %v5187 = vmin.f32 %v5075, 1.0
      %v5188 = vmin.f32 %v5076, 1.0
      %v5189 = vmin.f32 %v5077, 1.0
      %v5190 = vmin.f32 %v5078, 1.0
      %v5191 = vmin.f32 %v5079, 1.0
      %v5192 = vmin.f32 %v5080, 1.0
      %v5193 = vpack.c.bf16 %v5082, %v5081
      %v5194 = vpack.c.bf16 %v5084, %v5083
      %v5195 = vpack.c.bf16 %v5086, %v5085
      %v5196 = vpack.c.bf16 %v5087, %v5087
      %v5197 = vpack.c.bf16 %v5089, %v5088
      %v5198 = vpack.c.bf16 %v5091, %v5090
      %v5199 = vpack.c.bf16 %v5093, %v5092
      %v5200 = vpack.c.bf16 %v5094, %v5094
      %v5201 = vpack.c.bf16 %v5096, %v5095
      %v5202 = vpack.c.bf16 %v5098, %v5097
      %v5203 = vpack.c.bf16 %v5100, %v5099
      %v5204 = vpack.c.bf16 %v5101, %v5101
      %v5205 = vpack.c.bf16 %v5103, %v5102
      %v5206 = vpack.c.bf16 %v5105, %v5104
      %v5207 = vpack.c.bf16 %v5107, %v5106
      %v5208 = vpack.c.bf16 %v5108, %v5108
      %v5209 = vpack.c.bf16 %v5110, %v5109
      %v5210 = vpack.c.bf16 %v5112, %v5111
      %v5211 = vpack.c.bf16 %v5114, %v5113
      %v5212 = vpack.c.bf16 %v5115, %v5115
      %v5213 = vpack.c.bf16 %v5117, %v5116
      %v5214 = vpack.c.bf16 %v5119, %v5118
      %v5215 = vpack.c.bf16 %v5121, %v5120
      %v5216 = vpack.c.bf16 %v5122, %v5122
      %v5217 = vpack.c.bf16 %v5124, %v5123
      %v5218 = vpack.c.bf16 %v5126, %v5125
      %v5219 = vpack.c.bf16 %v5128, %v5127
      %v5220 = vpack.c.bf16 %v5129, %v5129
      %v5221 = vpack.c.bf16 %v5131, %v5130
      %v5222 = vpack.c.bf16 %v5133, %v5132
      %v5223 = vpack.c.bf16 %v5135, %v5134
      %v5224 = vpack.c.bf16 %v5136, %v5136
      %v5225 = vpack.c.bf16 %v5138, %v5137
      %v5226 = vpack.c.bf16 %v5140, %v5139
      %v5227 = vpack.c.bf16 %v5142, %v5141
      %v5228 = vpack.c.bf16 %v5143, %v5143
      %v5229 = vpack.c.bf16 %v5145, %v5144
      %v5230 = vpack.c.bf16 %v5147, %v5146
      %v5231 = vpack.c.bf16 %v5149, %v5148
      %v5232 = vpack.c.bf16 %v5150, %v5150
      %v5233 = vpack.c.bf16 %v5152, %v5151
      %v5234 = vpack.c.bf16 %v5154, %v5153
      %v5235 = vpack.c.bf16 %v5156, %v5155
      %v5236 = vpack.c.bf16 %v5157, %v5157
      %v5237 = vpack.c.bf16 %v5159, %v5158
      %v5238 = vpack.c.bf16 %v5161, %v5160
      %v5239 = vpack.c.bf16 %v5163, %v5162
      %v5240 = vpack.c.bf16 %v5164, %v5164
      %v5241 = vpack.c.bf16 %v5166, %v5165
      %v5242 = vpack.c.bf16 %v5168, %v5167
      %v5243 = vpack.c.bf16 %v5170, %v5169
      %v5244 = vpack.c.bf16 %v5171, %v5171
      %v5245 = vpack.c.bf16 %v5173, %v5172
      %v5246 = vpack.c.bf16 %v5175, %v5174
      %v5247 = vpack.c.bf16 %v5177, %v5176
      %v5248 = vpack.c.bf16 %v5178, %v5178
      %v5249 = vpack.c.bf16 %v5180, %v5179
      %v5250 = vpack.c.bf16 %v5182, %v5181
      %v5251 = vpack.c.bf16 %v5184, %v5183
      %v5252 = vpack.c.bf16 %v5185, %v5185
      %v5253 = vpack.c.bf16 %v5187, %v5186
      %v5254 = vpack.c.bf16 %v5189, %v5188
      %v5255 = vpack.c.bf16 %v5191, %v5190
      %v5256 = vpack.c.bf16 %v5192, %v5192
      %5257 = vst [vmem:[%s499] sm:$0xff] %v5193
      %5258 = vst [vmem:[%s499 + $0x8] sm:$0xff] %v5194
      %5259 = vst [vmem:[%s499 + $0x10] sm:$0xff] %v5195
      %vm5260 = vcmask 125952
      %5261 = vst.msk [vmem:[%s499 + $0x18] sm:$0xf] %vm5260, %v5196
      %5262 = vst [vmem:[%s499 + $0x1c] sm:$0xff] %v5197
      %5263 = vst [vmem:[%s499 + $0x24] sm:$0xff] %v5198
      %5264 = vst [vmem:[%s499 + $0x2c] sm:$0xff] %v5199
      %5265 = vst.msk [vmem:[%s499 + $0x34] sm:$0xf] %vm5260, %v5200
      %5266 = vst [vmem:[%s499 + $0x38] sm:$0xff] %v5201
      %5267 = vst [vmem:[%s499 + $0x40] sm:$0xff] %v5202
      %5268 = vst [vmem:[%s499 + $0x48] sm:$0xff] %v5203
      %5269 = vst.msk [vmem:[%s499 + $0x50] sm:$0xf] %vm5260, %v5204
      %5270 = vst [vmem:[%s499 + $0x54] sm:$0xff] %v5205
      %5271 = vst [vmem:[%s499 + $0x5c] sm:$0xff] %v5206
      %5272 = vst [vmem:[%s499 + $0x64] sm:$0xff] %v5207
      %5273 = vst.msk [vmem:[%s499 + $0x6c] sm:$0xf] %vm5260, %v5208
      %5274 = vst [vmem:[%s499 + $0x70] sm:$0xff] %v5209
      %5275 = vst [vmem:[%s499 + $0x78] sm:$0xff] %v5210
      %5276 = vst [vmem:[%s499 + $0x80] sm:$0xff] %v5211
      %5277 = vst.msk [vmem:[%s499 + $0x88] sm:$0xf] %vm5260, %v5212
      %5278 = vst [vmem:[%s499 + $0x8c] sm:$0xff] %v5213
      %5279 = vst [vmem:[%s499 + $0x94] sm:$0xff] %v5214
      %5280 = vst [vmem:[%s499 + $0x9c] sm:$0xff] %v5215
      %5281 = vst.msk [vmem:[%s499 + $0xa4] sm:$0xf] %vm5260, %v5216
      %5282 = vst [vmem:[%s499 + $0xa8] sm:$0xff] %v5217
      %5283 = vst [vmem:[%s499 + $0xb0] sm:$0xff] %v5218
      %5284 = vst [vmem:[%s499 + $0xb8] sm:$0xff] %v5219
      %5285 = vst.msk [vmem:[%s499 + $0xc0] sm:$0xf] %vm5260, %v5220
      %5286 = vst [vmem:[%s499 + $0xc4] sm:$0xff] %v5221
      %5287 = vst [vmem:[%s499 + $0xcc] sm:$0xff] %v5222
      %5288 = vst [vmem:[%s499 + $0xd4] sm:$0xff] %v5223
      %5289 = vst.msk [vmem:[%s499 + $0xdc] sm:$0xf] %vm5260, %v5224
      %5290 = vst [vmem:[%s499 + $0xe0] sm:$0xff] %v5225
      %5291 = vst [vmem:[%s499 + $0xe8] sm:$0xff] %v5226
      %5292 = vst [vmem:[%s499 + $0xf0] sm:$0xff] %v5227
      %5293 = vst.msk [vmem:[%s499 + $0xf8] sm:$0xf] %vm5260, %v5228
      %5294 = vst [vmem:[%s499 + $0xfc] sm:$0xff] %v5229
      %5295 = vst [vmem:[%s499 + $0x104] sm:$0xff] %v5230
      %5296 = vst [vmem:[%s499 + $0x10c] sm:$0xff] %v5231
      %5297 = vst.msk [vmem:[%s499 + $0x114] sm:$0xf] %vm5260, %v5232
      %5298 = vst [vmem:[%s499 + $0x118] sm:$0xff] %v5233
      %5299 = vst [vmem:[%s499 + $0x120] sm:$0xff] %v5234
      %5300 = vst [vmem:[%s499 + $0x128] sm:$0xff] %v5235
      %5301 = vst.msk [vmem:[%s499 + $0x130] sm:$0xf] %vm5260, %v5236
      %5302 = vst [vmem:[%s499 + $0x134] sm:$0xff] %v5237
      %5303 = vst [vmem:[%s499 + $0x13c] sm:$0xff] %v5238
      %5304 = vst [vmem:[%s499 + $0x144] sm:$0xff] %v5239
      %5305 = vst.msk [vmem:[%s499 + $0x14c] sm:$0xf] %vm5260, %v5240
      %5306 = vst [vmem:[%s499 + $0x150] sm:$0xff] %v5241
      %5307 = vst [vmem:[%s499 + $0x158] sm:$0xff] %v5242
      %5308 = vst [vmem:[%s499 + $0x160] sm:$0xff] %v5243
      %5309 = vst.msk [vmem:[%s499 + $0x168] sm:$0xf] %vm5260, %v5244
      %5310 = vst [vmem:[%s499 + $0x16c] sm:$0xff] %v5245
      %5311 = vst [vmem:[%s499 + $0x174] sm:$0xff] %v5246
      %5312 = vst [vmem:[%s499 + $0x17c] sm:$0xff] %v5247
      %5313 = vst.msk [vmem:[%s499 + $0x184] sm:$0xf] %vm5260, %v5248
      %5314 = vst [vmem:[%s499 + $0x188] sm:$0xff] %v5249
      %5315 = vst [vmem:[%s499 + $0x190] sm:$0xff] %v5250
      %5316 = vst [vmem:[%s499 + $0x198] sm:$0xff] %v5251
      %5317 = vst.msk [vmem:[%s499 + $0x1a0] sm:$0xf] %vm5260, %v5252
      %5318 = vst [vmem:[%s499 + $0x1a4] sm:$0xff] %v5253
      %5319 = vst [vmem:[%s499 + $0x1ac] sm:$0xff] %v5254
      %5320 = vst [vmem:[%s499 + $0x1b4] sm:$0xff] %v5255
      %5321 = vst.msk [vmem:[%s499 + $0x1bc] sm:$0xf] %vm5260, %v5256
      %5322 = vst [vmem:[%s505] sm:$0xff] %v2578
      %5323 = vst [vmem:[%s505 + $0x8] sm:$0xff] %v2580
      %5324 = vst [vmem:[%s505 + $0x10] sm:$0xff] %v2583
      %5325 = vst [vmem:[%s505 + $0x18] sm:$0xff] %v2585
      %5326 = vst [vmem:[%s505 + $0x20] sm:$0xff] %v2588
      %5327 = vst [vmem:[%s505 + $0x28] sm:$0xff] %v2590
      %5328 = vst [vmem:[%s505 + $0x30] sm:$0xff] %v2593
      %5329 = vst [vmem:[%s505 + $0x38] sm:$0xff] %v2595
      %5330 = vst [vmem:[%s505 + $0x40] sm:$0xff] %v2598
      %5331 = vst [vmem:[%s505 + $0x48] sm:$0xff] %v2600
      %5332 = vst [vmem:[%s505 + $0x50] sm:$0xff] %v2603
      %5333 = vst [vmem:[%s505 + $0x58] sm:$0xff] %v2605
      %5334 = vst [vmem:[%s505 + $0x60] sm:$0xff] %v2608
      %5335 = vst [vmem:[%s505 + $0x68] sm:$0xff] %v2610
      %5336 = vst [vmem:[%s505 + $0x70] sm:$0xff] %v2613
      %5337 = vst [vmem:[%s505 + $0x78] sm:$0xff] %v2615
      %s5338 = smul.u32 16, %s25
      %p5339 = scmp.lt.s32.totalorder %s5338, 31
      %s5340 = scalar_select %p5339, %s5338, 31
      %s5341 = smul.addr %s5340, 7
      %s5342 = smul.addr %s5341, 4
      %s5343 = scalar_lea.vmem %s12, %s5342
      %s5344 = smul.u32 16, %s25
      %p5345 = scmp.lt.s32.totalorder %s5344, 31
      %s5346 = scalar_select %p5345, %s5344, 31
      %s5347 = smul.addr %s5346, 8
      %s5348 = scalar_lea.vmem %s13, %s5347
      // Predicated region
      $region69: #{cvae_forward.1} parent=67 // pred_check
        %p5349 = pneg %p310
      $region70: #{cvae_forward.1} parent=67 // pred_check_branch
        %5351 = sbr.rel (%p5349) target = $region72
      $region71: #{cvae_forward.1} parent=67 // pred_region
        %s5352 = smul.u32 16, %s25
      $region72: #{cvae_forward.1} parent=67 // pred_fallthru
        _
      // Predicated region
      $region73: #{cvae_forward.1} parent=67 // pred_check
        %p5353 = pneg %p336
      $region74: #{cvae_forward.1} parent=67 // pred_check_branch
        %5355 = sbr.rel (%p5353) target = $region76
      $region75: #{cvae_forward.1} parent=67 // pred_region
        %s5356 = smul.u32 16, %s25
      $region76: #{cvae_forward.1} parent=67 // pred_fallthru
        _
    $region68: #{cvae_forward.1} parent=5 // pred_fallthru
      _
    %p5357 = scmp.le.s32.totalorder 2, %s20
    // Predicated region
    $region77: #{cvae_forward.1} parent=5 // pred_check
      %p5358 = pneg %p5357
    $region78: #{cvae_forward.1} parent=5 // pred_check_branch
      %5360 = sbr.rel (%p5358) target = $region80
    $region79: #{cvae_forward.1} parent=5 // pred_region
      %s5361 = ssub.s32 %s20, 2
      // Predicated region
      $region81: #{cvae_forward.1} parent=79 // pred_check
        %p5362 = pneg %p316
      $region82: #{cvae_forward.1} parent=79 // pred_check_branch
        %5364 = sbr.rel (%p5362) target = $region84
      $region83: #{cvae_forward.1} parent=79 // pred_region
        %s5365 = smul.u32 16, %s26
        %p5366 = scmp.lt.s32.totalorder %s5365, 31
        %s5367 = scalar_select %p5366, %s5365, 31
        %s5368 = smul.addr %s5367, 7
        %s5369 = smul.addr %s5368, 4
        %s5370 = scalar_lea.vmem %s12, %s5369
      $region84: #{cvae_forward.1} parent=79 // pred_fallthru
        _
      // Predicated region
      $region85: #{cvae_forward.1} parent=79 // pred_check
        %p5371 = pneg %p342
      $region86: #{cvae_forward.1} parent=79 // pred_check_branch
        %5373 = sbr.rel (%p5371) target = $region88
      $region87: #{cvae_forward.1} parent=79 // pred_region
        %s5374 = smul.u32 16, %s26
        %p5375 = scmp.lt.s32.totalorder %s5374, 31
        %s5376 = scalar_select %p5375, %s5374, 31
        %s5377 = smul.addr %s5376, 8
        %s5378 = scalar_lea.vmem %s13, %s5377
      $region88: #{cvae_forward.1} parent=79 // pred_fallthru
        _
    $region80: #{cvae_forward.1} parent=5 // pred_fallthru
      _
  $region6: #{cvae_forward.1} parent=0 // loop_footer
    %s24 = sadd.s32 1, %s20
  $region7: #{cvae_forward.1} parent=0 // loop_footer_branch
    %19 = sbr.rel target = $region3
  $region8: #{cvae_forward.1} parent=0 // loop_exit
    _

</llo_original>
